<compile_context>
chip_gen: v6e
topology: v6e:2x2x1
jax: 0.10.0
libtpu: 0.0.40
codegen_flags: <defaults>
</compile_context>

<pallas_src>
import functools
import math

import jax
import jax.numpy as jnp
from jax.experimental import pallas as pl
from jax.experimental.pallas import tpu as pltpu

# ----------------------------- configuration -----------------------------
B = 2        # batch
T = 8        # sequence length
H = 32       # hidden_size
INNER = 32   # inner_hidden_size (LSTM state size)
FC = 64      # fc_hidden_size
NUM_LAYERS = 2
EPS = 1e-5

_INV_SQRT2 = 1.0 / math.sqrt(2.0)


def _gelu_exact(x):
    # PyTorch nn.GELU() default: exact erf formulation.
    return 0.5 * x * (1.0 + jax.lax.erf(x * _INV_SQRT2))


def _layer_norm(x, gamma, beta):
    mu = jnp.mean(x, axis=-1, keepdims=True)
    var = jnp.mean((x - mu) ** 2, axis=-1, keepdims=True)
    return (x - mu) * jax.lax.rsqrt(var + EPS) * gamma + beta


# ------------------------------ Pallas kernel ------------------------------
def memory_layers_kernel(
    # inputs (per-layer params stacked on a leading layer axis)
    src_ref, h0_ref, c0_ref,
    g1_ref, b1_ref,
    wih_ref, bih_ref, whh_ref, bhh_ref,
    wp_ref, bp_ref,
    g2_ref, b2_ref,
    w1_ref, bl1_ref, w2_ref, bl2_ref,
    # outputs
    out_ref, hT_ref, cT_ref,
    # scratch
    h_all_sc,
    *, num_layers: int, t_len: int, batch: int, inner: int,
):
    act = src_ref[...]                                      # (T*B, H)

    for l in range(num_layers):                             # fused layer loop
        # ---- norm1 over all timesteps at once ----
        x = _layer_norm(act, g1_ref[l], b1_ref[l])          # (T*B, H)

        # ---- hoisted input-side gate matmul (time-invariant part) ----
        gates_x = (
            jnp.dot(x, wih_ref[l], preferred_element_type=jnp.float32)
            + bih_ref[l] + bhh_ref[l]
        )                                                   # (T*B, 4*inner)

        whh = whh_ref[l]                                    # (inner, 4*inner)
        h = h0_ref[l]                                       # (B, inner)
        c = c0_ref[l]                                       # (B, inner)

        # ---- serial recurrence: only h @ W_hh + nonlinearities per step ----
        for t in range(t_len):                              # static unroll
            g = (gates_x[t * batch:(t + 1) * batch, :]
                 + jnp.dot(h, whh, preferred_element_type=jnp.float32))
            # PyTorch LSTM gate order: i, f, g, o
            i_g = jax.nn.sigmoid(g[:, 0 * inner:1 * inner])
            f_g = jax.nn.sigmoid(g[:, 1 * inner:2 * inner])
            g_g = jnp.tanh(g[:, 2 * inner:3 * inner])
            o_g = jax.nn.sigmoid(g[:, 3 * inner:4 * inner])
            c = f_g * c + i_g * g_g
            h = o_g * jnp.tanh(c)
            h_all_sc[t * batch:(t + 1) * batch, :] = h      # stack h_t

        # final cache written once per layer
        hT_ref[l] = h
        cT_ref[l] = c

        # ---- batched non-recurrent tail over all T timesteps ----
        h_all = h_all_sc[...]                               # (T*B, inner)
        out1 = (jnp.dot(h_all, wp_ref[l], preferred_element_type=jnp.float32)
                + bp_ref[l] + act)                          # proj + residual
        z = _layer_norm(out1, g2_ref[l], b2_ref[l])
        ff = _gelu_exact(
            jnp.dot(z, w1_ref[l], preferred_element_type=jnp.float32)
            + bl1_ref[l])
        ff = jnp.dot(ff, w2_ref[l], preferred_element_type=jnp.float32) + bl2_ref[l]
        act = out1 + ff                                     # FFN residual

    out_ref[...] = act


# --------------------------- MemoryLayers wrapper ---------------------------
def memory_layers_forward(src_bth, params_list, cache=None, need_cache=True):
    """src_bth: (B, T, H) like PyTorch.  Returns (output (B,T,H), new_cache)."""
    b, t_len, h = src_bth.shape
    num_layers = len(params_list)
    inner = params_list[0]["whh"].shape[0]
    fc = params_list[0]["w1"].shape[-1]

    # time-major flatten: rows [t*B : (t+1)*B) hold timestep t
    src_flat = jnp.transpose(src_bth, (1, 0, 2)).reshape(t_len * b, h)

    if cache is None:
        h0 = jnp.zeros((num_layers, b, inner), jnp.float32)
        c0 = jnp.zeros((num_layers, b, inner), jnp.float32)
    else:
        h0 = jnp.stack([hc[0] for hc in cache], axis=0)
        c0 = jnp.stack([hc[1] for hc in cache], axis=0)

    stk = lambda name: jnp.stack([p[name] for p in params_list], axis=0)

    def full(shape):
        nd = len(shape)
        return pl.BlockSpec(shape, lambda i, _nd=nd: (0,) * _nd)

    kernel = functools.partial(
        memory_layers_kernel,
        num_layers=num_layers, t_len=t_len, batch=b, inner=inner)

    out_flat, hT, cT = pl.pallas_call(
        kernel,
        out_shape=(
            jax.ShapeDtypeStruct((t_len * b, h), jnp.float32),
            jax.ShapeDtypeStruct((num_layers, b, inner), jnp.float32),
            jax.ShapeDtypeStruct((num_layers, b, inner), jnp.float32),
        ),
        grid=(1,),   # single step: whole problem fits VMEM, no pipeline needed
        in_specs=[
            full((t_len * b, h)),                                   # src
            full((num_layers, b, inner)), full((num_layers, b, inner)),   # h0, c0
            full((num_layers, 1, h)), full((num_layers, 1, h)),     # norm1 g/b
            full((num_layers, h, 4 * inner)), full((num_layers, 1, 4 * inner)),  # W_ih, b_ih
            full((num_layers, inner, 4 * inner)), full((num_layers, 1, 4 * inner)),  # W_hh, b_hh
            full((num_layers, inner, h)), full((num_layers, 1, h)), # proj W, b
            full((num_layers, 1, h)), full((num_layers, 1, h)),     # norm2 g/b
            full((num_layers, h, fc)), full((num_layers, 1, fc)),   # linear1
            full((num_layers, fc, h)), full((num_layers, 1, h)),    # linear2
        ],
        out_specs=[
            full((t_len * b, h)),
            full((num_layers, b, inner)),
            full((num_layers, b, inner)),
        ],
        scratch_shapes=[pltpu.VMEM((t_len * b, inner), jnp.float32)],
        compiler_params=pltpu.CompilerParams(
            dimension_semantics=("arbitrary",)),
    )(
        src_flat, h0, c0,
        stk("g1"), stk("b1"),
        stk("wih"), stk("bih"), stk("whh"), stk("bhh"),
        stk("wp"), stk("bp"),
        stk("g2"), stk("b2"),
        stk("w1"), stk("bl1"), stk("w2"), stk("bl2"),
    )

    out = jnp.transpose(out_flat.reshape(t_len, b, h), (1, 0, 2))   # -> (B,T,H)
    new_cache = ([(hT[i], cT[i]) for i in range(num_layers)]
                 if need_cache else None)
    return out, new_cache


# ------------------------- deterministic parameters -------------------------
def make_layer_params(key):
    ks = jax.random.split(key, 8)
    n = lambda k, shape, s: (jax.random.normal(k, shape, jnp.float32) * s)
    return dict(
        g1=jnp.ones((1, H), jnp.float32), b1=jnp.zeros((1, H), jnp.float32),
        wih=n(ks[0], (H, 4 * INNER), 0.1), bih=n(ks[1], (1, 4 * INNER), 0.02),
        whh=n(ks[2], (INNER, 4 * INNER), 0.1), bhh=jnp.zeros((1, 4 * INNER), jnp.float32),
        wp=n(ks[3], (INNER, H), 0.1), bp=jnp.zeros((1, H), jnp.float32),
        g2=jnp.ones((1, H), jnp.float32), b2=jnp.zeros((1, H), jnp.float32),
        w1=n(ks[4], (H, FC), 0.1), bl1=n(ks[5], (1, FC), 0.02),
        w2=n(ks[6], (FC, H), 0.1), bl2=jnp.zeros((1, H), jnp.float32),
    )


# ----------------------------- pure-JAX reference -----------------------------
def layer_ref(src_tbh, h0, c0, p):
    h, c = h0, c0
    outs = []
    for t in range(src_tbh.shape[0]):
        s = src_tbh[t]
        x = _layer_norm(s, p["g1"], p["b1"])
        gates = x @ p["wih"] + p["bih"] + h @ p["whh"] + p["bhh"]
        i_g, f_g, g_g, o_g = jnp.split(gates, 4, axis=-1)
        i_g = jax.nn.sigmoid(i_g); f_g = jax.nn.sigmoid(f_g)
        g_g = jnp.tanh(g_g); o_g = jax.nn.sigmoid(o_g)
        c = f_g * c + i_g * g_g
        h = o_g * jnp.tanh(c)
        out1 = h @ p["wp"] + p["bp"] + s
        z = _layer_norm(out1, p["g2"], p["b2"])
        ff = _gelu_exact(z @ p["w1"] + p["bl1"]) @ p["w2"] + p["bl2"]
        outs.append(out1 + ff)
    return jnp.stack(outs, axis=0), h, c


def memory_layers_ref(src_bth, params_list):
    x = jnp.transpose(src_bth, (1, 0, 2))
    caches = []
    for p in params_list:
        h0 = jnp.zeros((x.shape[1], INNER), jnp.float32)
        c0 = jnp.zeros((x.shape[1], INNER), jnp.float32)
        x, hT, cT = layer_ref(x, h0, c0, p)
        caches.append((hT, cT))
    return jnp.transpose(x, (1, 0, 2)), caches


# ---------------------------------- main ----------------------------------
if __name__ == "__main__":
    key = jax.random.PRNGKey(0)
    k_src, k_p = jax.random.split(key)
    src = jax.random.normal(k_src, (B, T, H), jnp.float32)

    layer_keys = jax.random.split(k_p, NUM_LAYERS)
    params_list = [make_layer_params(k) for k in layer_keys]

    out, new_cache = memory_layers_forward(src, params_list, cache=None,
                                           need_cache=True)
    out = jax.block_until_ready(out)
    for (hT, cT) in new_cache:
        jax.block_until_ready(hT)
        jax.block_until_ready(cT)

    # correctness check against pure-JAX reference
    out_ref, cache_ref = memory_layers_ref(src, params_list)
    assert jnp.allclose(out, out_ref, atol=1e-4, rtol=1e-4), "output mismatch"
    for (h_k, c_k), (h_r, c_r) in zip(new_cache, cache_ref):
        assert jnp.allclose(h_k, h_r, atol=1e-4, rtol=1e-4), "h cache mismatch"
        assert jnp.allclose(c_k, c_r, atol=1e-4, rtol=1e-4), "c cache mismatch"

    print("KERNEL_OK")
</pallas_src>

<mosaic_0001>
module attributes {stable_mosaic.version = 11 : i64} {
  func.func @memory_layers_kernel(%arg0: i32, %arg1: memref<16x32xf32, #tpu.memory_space<vmem>>, %arg2: memref<2x2x32xf32, #tpu.memory_space<vmem>>, %arg3: memref<2x2x32xf32, #tpu.memory_space<vmem>>, %arg4: memref<2x1x32xf32, #tpu.memory_space<vmem>>, %arg5: memref<2x1x32xf32, #tpu.memory_space<vmem>>, %arg6: memref<2x32x128xf32, #tpu.memory_space<vmem>>, %arg7: memref<2x1x128xf32, #tpu.memory_space<vmem>>, %arg8: memref<2x32x128xf32, #tpu.memory_space<vmem>>, %arg9: memref<2x1x128xf32, #tpu.memory_space<vmem>>, %arg10: memref<2x32x32xf32, #tpu.memory_space<vmem>>, %arg11: memref<2x1x32xf32, #tpu.memory_space<vmem>>, %arg12: memref<2x1x32xf32, #tpu.memory_space<vmem>>, %arg13: memref<2x1x32xf32, #tpu.memory_space<vmem>>, %arg14: memref<2x32x64xf32, #tpu.memory_space<vmem>>, %arg15: memref<2x1x64xf32, #tpu.memory_space<vmem>>, %arg16: memref<2x64x32xf32, #tpu.memory_space<vmem>>, %arg17: memref<2x1x32xf32, #tpu.memory_space<vmem>>, %arg18: memref<16x32xf32, #tpu.memory_space<vmem>>, %arg19: memref<2x2x32xf32, #tpu.memory_space<vmem>>, %arg20: memref<2x2x32xf32, #tpu.memory_space<vmem>>, %arg21: memref<16x32xf32, #tpu.memory_space<vmem>>) attributes {dimension_semantics = [#tpu.dimension_semantics<arbitrary>], iteration_bounds = array<i64: 1>, scalar_prefetch = 0 : i64, scratch_operands = 1 : i64, tpu.core_type = #tpu.core_type<tc>, window_params = [{pipeline_mode = #tpu.pipeline_mode<synchronous>, transform_indices = @transform_0, window_bounds = array<i64: 16, 32>}, {pipeline_mode = #tpu.pipeline_mode<synchronous>, transform_indices = @transform_1, window_bounds = array<i64: 2, 2, 32>}, {pipeline_mode = #tpu.pipeline_mode<synchronous>, transform_indices = @transform_2, window_bounds = array<i64: 2, 2, 32>}, {pipeline_mode = #tpu.pipeline_mode<synchronous>, transform_indices = @transform_3, window_bounds = array<i64: 2, 1, 32>}, {pipeline_mode = #tpu.pipeline_mode<synchronous>, transform_indices = @transform_4, window_bounds = array<i64: 2, 1, 32>}, {pipeline_mode = #tpu.pipeline_mode<synchronous>, transform_indices = @transform_5, window_bounds = array<i64: 2, 32, 128>}, {pipeline_mode = #tpu.pipeline_mode<synchronous>, transform_indices = @transform_6, window_bounds = array<i64: 2, 1, 128>}, {pipeline_mode = #tpu.pipeline_mode<synchronous>, transform_indices = @transform_7, window_bounds = array<i64: 2, 32, 128>}, {pipeline_mode = #tpu.pipeline_mode<synchronous>, transform_indices = @transform_8, window_bounds = array<i64: 2, 1, 128>}, {pipeline_mode = #tpu.pipeline_mode<synchronous>, transform_indices = @transform_9, window_bounds = array<i64: 2, 32, 32>}, {pipeline_mode = #tpu.pipeline_mode<synchronous>, transform_indices = @transform_10, window_bounds = array<i64: 2, 1, 32>}, {pipeline_mode = #tpu.pipeline_mode<synchronous>, transform_indices = @transform_11, window_bounds = array<i64: 2, 1, 32>}, {pipeline_mode = #tpu.pipeline_mode<synchronous>, transform_indices = @transform_12, window_bounds = array<i64: 2, 1, 32>}, {pipeline_mode = #tpu.pipeline_mode<synchronous>, transform_indices = @transform_13, window_bounds = array<i64: 2, 32, 64>}, {pipeline_mode = #tpu.pipeline_mode<synchronous>, transform_indices = @transform_14, window_bounds = array<i64: 2, 1, 64>}, {pipeline_mode = #tpu.pipeline_mode<synchronous>, transform_indices = @transform_15, window_bounds = array<i64: 2, 64, 32>}, {pipeline_mode = #tpu.pipeline_mode<synchronous>, transform_indices = @transform_16, window_bounds = array<i64: 2, 1, 32>}, {pipeline_mode = #tpu.pipeline_mode<synchronous>, transform_indices = @transform_17, window_bounds = array<i64: 16, 32>}, {pipeline_mode = #tpu.pipeline_mode<synchronous>, transform_indices = @transform_18, window_bounds = array<i64: 2, 2, 32>}, {pipeline_mode = #tpu.pipeline_mode<synchronous>, transform_indices = @transform_19, window_bounds = array<i64: 2, 2, 32>}]} {
    %c0 = arith.constant 0 : index
    %c0_0 = arith.constant 0 : index
    %0 = vector.load %arg1[%c0, %c0_0] : memref<16x32xf32, #tpu.memory_space<vmem>>, vector<16x32xf32>
    %c0_1 = arith.constant 0 : index
    %c0_2 = arith.constant 0 : index
    %c0_3 = arith.constant 0 : index
    %1 = vector.load %arg4[%c0_1, %c0_2, %c0_3] : memref<2x1x32xf32, #tpu.memory_space<vmem>>, vector<1x1x32xf32>
    %2 = vector.shape_cast %1 : vector<1x1x32xf32> to vector<1x32xf32>
    %c0_4 = arith.constant 0 : index
    %c0_5 = arith.constant 0 : index
    %c0_6 = arith.constant 0 : index
    %3 = vector.load %arg5[%c0_4, %c0_5, %c0_6] : memref<2x1x32xf32, #tpu.memory_space<vmem>>, vector<1x1x32xf32>
    %4 = vector.shape_cast %3 : vector<1x1x32xf32> to vector<1x32xf32>
    %cst = arith.constant dense<0.000000e+00> : vector<16xf32>
    %5 = vector.multi_reduction <add>, %0, %cst [1] : vector<16x32xf32> to vector<16xf32>
    %6 = vector.shape_cast %5 : vector<16xf32> to vector<16x1xf32>
    %cst_7 = arith.constant 3.200000e+01 : f32
    %7 = vector.broadcast %cst_7 : f32 to vector<16x1xf32>
    %8 = arith.divf %6, %7 : vector<16x1xf32>
    %9 = vector.broadcast %8 : vector<16x1xf32> to vector<16x32xf32>
    %10 = arith.subf %0, %9 : vector<16x32xf32>
    %11 = arith.mulf %10, %10 : vector<16x32xf32>
    %cst_8 = arith.constant dense<0.000000e+00> : vector<16xf32>
    %12 = vector.multi_reduction <add>, %11, %cst_8 [1] : vector<16x32xf32> to vector<16xf32>
    %13 = vector.shape_cast %12 : vector<16xf32> to vector<16x1xf32>
    %cst_9 = arith.constant 3.200000e+01 : f32
    %14 = vector.broadcast %cst_9 : f32 to vector<16x1xf32>
    %15 = arith.divf %13, %14 : vector<16x1xf32>
    %16 = vector.broadcast %8 : vector<16x1xf32> to vector<16x32xf32>
    %17 = arith.subf %0, %16 : vector<16x32xf32>
    %cst_10 = arith.constant 9.99999974E-6 : f32
    %18 = vector.broadcast %cst_10 : f32 to vector<16x1xf32>
    %19 = arith.addf %15, %18 : vector<16x1xf32>
    %20 = math.rsqrt %19 : vector<16x1xf32>
    %21 = vector.broadcast %20 : vector<16x1xf32> to vector<16x32xf32>
    %22 = arith.mulf %17, %21 : vector<16x32xf32>
    %23 = vector.broadcast %2 : vector<1x32xf32> to vector<16x32xf32>
    %24 = arith.mulf %22, %23 : vector<16x32xf32>
    %25 = vector.broadcast %4 : vector<1x32xf32> to vector<16x32xf32>
    %26 = arith.addf %24, %25 : vector<16x32xf32>
    %c0_11 = arith.constant 0 : index
    %c0_12 = arith.constant 0 : index
    %c0_13 = arith.constant 0 : index
    %27 = vector.load %arg6[%c0_11, %c0_12, %c0_13] : memref<2x32x128xf32, #tpu.memory_space<vmem>>, vector<1x32x128xf32>
    %28 = vector.shape_cast %27 : vector<1x32x128xf32> to vector<32x128xf32>
    %cst_14 = arith.constant dense<0.000000e+00> : vector<16x128xf32>
    %29 = tpu.matmul %26, %28, %cst_14 {dimension_numbers = #tpu.dot_dimension_numbers<[1], [0], [0], [1], [0, 0, 1, 1], [], []>} : vector<16x32xf32>, vector<32x128xf32>, vector<16x128xf32> -> vector<16x128xf32>
    %c0_15 = arith.constant 0 : index
    %c0_16 = arith.constant 0 : index
    %c0_17 = arith.constant 0 : index
    %30 = vector.load %arg7[%c0_15, %c0_16, %c0_17] : memref<2x1x128xf32, #tpu.memory_space<vmem>>, vector<1x1x128xf32>
    %31 = vector.shape_cast %30 : vector<1x1x128xf32> to vector<1x128xf32>
    %32 = vector.broadcast %31 : vector<1x128xf32> to vector<16x128xf32>
    %33 = arith.addf %29, %32 : vector<16x128xf32>
    %c0_18 = arith.constant 0 : index
    %c0_19 = arith.constant 0 : index
    %c0_20 = arith.constant 0 : index
    %34 = vector.load %arg9[%c0_18, %c0_19, %c0_20] : memref<2x1x128xf32, #tpu.memory_space<vmem>>, vector<1x1x128xf32>
    %35 = vector.shape_cast %34 : vector<1x1x128xf32> to vector<1x128xf32>
    %36 = vector.broadcast %35 : vector<1x128xf32> to vector<16x128xf32>
    %37 = arith.addf %33, %36 : vector<16x128xf32>
    %c0_21 = arith.constant 0 : index
    %c0_22 = arith.constant 0 : index
    %c0_23 = arith.constant 0 : index
    %38 = vector.load %arg8[%c0_21, %c0_22, %c0_23] : memref<2x32x128xf32, #tpu.memory_space<vmem>>, vector<1x32x128xf32>
    %39 = vector.shape_cast %38 : vector<1x32x128xf32> to vector<32x128xf32>
    %c0_24 = arith.constant 0 : index
    %c0_25 = arith.constant 0 : index
    %c0_26 = arith.constant 0 : index
    %40 = vector.load %arg2[%c0_24, %c0_25, %c0_26] : memref<2x2x32xf32, #tpu.memory_space<vmem>>, vector<1x2x32xf32>
    %41 = vector.shape_cast %40 : vector<1x2x32xf32> to vector<2x32xf32>
    %c0_27 = arith.constant 0 : index
    %c0_28 = arith.constant 0 : index
    %c0_29 = arith.constant 0 : index
    %42 = vector.load %arg3[%c0_27, %c0_28, %c0_29] : memref<2x2x32xf32, #tpu.memory_space<vmem>>, vector<1x2x32xf32>
    %43 = vector.shape_cast %42 : vector<1x2x32xf32> to vector<2x32xf32>
    %44 = vector.extract_strided_slice %37 {offsets = [0, 0], sizes = [2, 128], strides = [1, 1]} : vector<16x128xf32> to vector<2x128xf32>
    %cst_30 = arith.constant dense<0.000000e+00> : vector<2x128xf32>
    %45 = tpu.matmul %41, %39, %cst_30 {dimension_numbers = #tpu.dot_dimension_numbers<[1], [0], [0], [1], [0, 0, 1, 1], [], []>} : vector<2x32xf32>, vector<32x128xf32>, vector<2x128xf32> -> vector<2x128xf32>
    %46 = arith.addf %44, %45 : vector<2x128xf32>
    %47 = vector.extract_strided_slice %46 {offsets = [0, 0], sizes = [2, 32], strides = [1, 1]} : vector<2x128xf32> to vector<2x32xf32>
    %48 = arith.negf %47 : vector<2x32xf32>
    %49 = math.exp %48 : vector<2x32xf32>
    %cst_31 = arith.constant 1.000000e+00 : f32
    %50 = vector.broadcast %cst_31 : f32 to vector<2x32xf32>
    %51 = arith.addf %50, %49 : vector<2x32xf32>
    %52 = arith.divf %50, %51 : vector<2x32xf32>
    %53 = vector.extract_strided_slice %46 {offsets = [0, 32], sizes = [2, 32], strides = [1, 1]} : vector<2x128xf32> to vector<2x32xf32>
    %54 = arith.negf %53 : vector<2x32xf32>
    %55 = math.exp %54 : vector<2x32xf32>
    %cst_32 = arith.constant 1.000000e+00 : f32
    %56 = vector.broadcast %cst_32 : f32 to vector<2x32xf32>
    %57 = arith.addf %56, %55 : vector<2x32xf32>
    %58 = arith.divf %56, %57 : vector<2x32xf32>
    %59 = vector.extract_strided_slice %46 {offsets = [0, 64], sizes = [2, 32], strides = [1, 1]} : vector<2x128xf32> to vector<2x32xf32>
    %60 = math.tanh %59 : vector<2x32xf32>
    %61 = vector.extract_strided_slice %46 {offsets = [0, 96], sizes = [2, 32], strides = [1, 1]} : vector<2x128xf32> to vector<2x32xf32>
    %62 = arith.negf %61 : vector<2x32xf32>
    %63 = math.exp %62 : vector<2x32xf32>
    %cst_33 = arith.constant 1.000000e+00 : f32
    %64 = vector.broadcast %cst_33 : f32 to vector<2x32xf32>
    %65 = arith.addf %64, %63 : vector<2x32xf32>
    %66 = arith.divf %64, %65 : vector<2x32xf32>
    %67 = arith.mulf %58, %43 : vector<2x32xf32>
    %68 = arith.mulf %52, %60 : vector<2x32xf32>
    %69 = arith.addf %67, %68 : vector<2x32xf32>
    %70 = math.tanh %69 : vector<2x32xf32>
    %71 = arith.mulf %66, %70 : vector<2x32xf32>
    %c0_34 = arith.constant 0 : index
    %c0_35 = arith.constant 0 : index
    %72 = vector.load %arg21[%c0_34, %c0_35] : memref<16x32xf32, #tpu.memory_space<vmem>>, vector<2x32xf32>
    tpu.vector_store %arg21[%c0_34, %c0_35], %71 {strides = array<i32>} : memref<16x32xf32, #tpu.memory_space<vmem>>, vector<2x32xf32>,
    %73 = vector.extract_strided_slice %37 {offsets = [2, 0], sizes = [2, 128], strides = [1, 1]} : vector<16x128xf32> to vector<2x128xf32>
    %cst_36 = arith.constant dense<0.000000e+00> : vector<2x128xf32>
    %74 = tpu.matmul %71, %39, %cst_36 {dimension_numbers = #tpu.dot_dimension_numbers<[1], [0], [0], [1], [0, 0, 1, 1], [], []>} : vector<2x32xf32>, vector<32x128xf32>, vector<2x128xf32> -> vector<2x128xf32>
    %75 = arith.addf %73, %74 : vector<2x128xf32>
    %76 = vector.extract_strided_slice %75 {offsets = [0, 0], sizes = [2, 32], strides = [1, 1]} : vector<2x128xf32> to vector<2x32xf32>
    %77 = arith.negf %76 : vector<2x32xf32>
    %78 = math.exp %77 : vector<2x32xf32>
    %cst_37 = arith.constant 1.000000e+00 : f32
    %79 = vector.broadcast %cst_37 : f32 to vector<2x32xf32>
    %80 = arith.addf %79, %78 : vector<2x32xf32>
    %81 = arith.divf %79, %80 : vector<2x32xf32>
    %82 = vector.extract_strided_slice %75 {offsets = [0, 32], sizes = [2, 32], strides = [1, 1]} : vector<2x128xf32> to vector<2x32xf32>
    %83 = arith.negf %82 : vector<2x32xf32>
    %84 = math.exp %83 : vector<2x32xf32>
    %cst_38 = arith.constant 1.000000e+00 : f32
    %85 = vector.broadcast %cst_38 : f32 to vector<2x32xf32>
    %86 = arith.addf %85, %84 : vector<2x32xf32>
    %87 = arith.divf %85, %86 : vector<2x32xf32>
    %88 = vector.extract_strided_slice %75 {offsets = [0, 64], sizes = [2, 32], strides = [1, 1]} : vector<2x128xf32> to vector<2x32xf32>
    %89 = math.tanh %88 : vector<2x32xf32>
    %90 = vector.extract_strided_slice %75 {offsets = [0, 96], sizes = [2, 32], strides = [1, 1]} : vector<2x128xf32> to vector<2x32xf32>
    %91 = arith.negf %90 : vector<2x32xf32>
    %92 = math.exp %91 : vector<2x32xf32>
    %cst_39 = arith.constant 1.000000e+00 : f32
    %93 = vector.broadcast %cst_39 : f32 to vector<2x32xf32>
    %94 = arith.addf %93, %92 : vector<2x32xf32>
    %95 = arith.divf %93, %94 : vector<2x32xf32>
    %96 = arith.mulf %87, %69 : vector<2x32xf32>
    %97 = arith.mulf %81, %89 : vector<2x32xf32>
    %98 = arith.addf %96, %97 : vector<2x32xf32>
    %99 = math.tanh %98 : vector<2x32xf32>
    %100 = arith.mulf %95, %99 : vector<2x32xf32>
    %c2 = arith.constant 2 : index
    %c0_40 = arith.constant 0 : index
    %101 = vector.load %arg21[%c2, %c0_40] : memref<16x32xf32, #tpu.memory_space<vmem>>, vector<2x32xf32>
    tpu.vector_store %arg21[%c2, %c0_40], %100 {strides = array<i32>} : memref<16x32xf32, #tpu.memory_space<vmem>>, vector<2x32xf32>,
    %102 = vector.extract_strided_slice %37 {offsets = [4, 0], sizes = [2, 128], strides = [1, 1]} : vector<16x128xf32> to vector<2x128xf32>
    %cst_41 = arith.constant dense<0.000000e+00> : vector<2x128xf32>
    %103 = tpu.matmul %100, %39, %cst_41 {dimension_numbers = #tpu.dot_dimension_numbers<[1], [0], [0], [1], [0, 0, 1, 1], [], []>} : vector<2x32xf32>, vector<32x128xf32>, vector<2x128xf32> -> vector<2x128xf32>
    %104 = arith.addf %102, %103 : vector<2x128xf32>
    %105 = vector.extract_strided_slice %104 {offsets = [0, 0], sizes = [2, 32], strides = [1, 1]} : vector<2x128xf32> to vector<2x32xf32>
    %106 = arith.negf %105 : vector<2x32xf32>
    %107 = math.exp %106 : vector<2x32xf32>
    %cst_42 = arith.constant 1.000000e+00 : f32
    %108 = vector.broadcast %cst_42 : f32 to vector<2x32xf32>
    %109 = arith.addf %108, %107 : vector<2x32xf32>
    %110 = arith.divf %108, %109 : vector<2x32xf32>
    %111 = vector.extract_strided_slice %104 {offsets = [0, 32], sizes = [2, 32], strides = [1, 1]} : vector<2x128xf32> to vector<2x32xf32>
    %112 = arith.negf %111 : vector<2x32xf32>
    %113 = math.exp %112 : vector<2x32xf32>
    %cst_43 = arith.constant 1.000000e+00 : f32
    %114 = vector.broadcast %cst_43 : f32 to vector<2x32xf32>
    %115 = arith.addf %114, %113 : vector<2x32xf32>
    %116 = arith.divf %114, %115 : vector<2x32xf32>
    %117 = vector.extract_strided_slice %104 {offsets = [0, 64], sizes = [2, 32], strides = [1, 1]} : vector<2x128xf32> to vector<2x32xf32>
    %118 = math.tanh %117 : vector<2x32xf32>
    %119 = vector.extract_strided_slice %104 {offsets = [0, 96], sizes = [2, 32], strides = [1, 1]} : vector<2x128xf32> to vector<2x32xf32>
    %120 = arith.negf %119 : vector<2x32xf32>
    %121 = math.exp %120 : vector<2x32xf32>
    %cst_44 = arith.constant 1.000000e+00 : f32
    %122 = vector.broadcast %cst_44 : f32 to vector<2x32xf32>
    %123 = arith.addf %122, %121 : vector<2x32xf32>
    %124 = arith.divf %122, %123 : vector<2x32xf32>
    %125 = arith.mulf %116, %98 : vector<2x32xf32>
    %126 = arith.mulf %110, %118 : vector<2x32xf32>
    %127 = arith.addf %125, %126 : vector<2x32xf32>
    %128 = math.tanh %127 : vector<2x32xf32>
    %129 = arith.mulf %124, %128 : vector<2x32xf32>
    %c4 = arith.constant 4 : index
    %c0_45 = arith.constant 0 : index
    %130 = vector.load %arg21[%c4, %c0_45] : memref<16x32xf32, #tpu.memory_space<vmem>>, vector<2x32xf32>
    tpu.vector_store %arg21[%c4, %c0_45], %129 {strides = array<i32>} : memref<16x32xf32, #tpu.memory_space<vmem>>, vector<2x32xf32>,
    %131 = vector.extract_strided_slice %37 {offsets = [6, 0], sizes = [2, 128], strides = [1, 1]} : vector<16x128xf32> to vector<2x128xf32>
    %cst_46 = arith.constant dense<0.000000e+00> : vector<2x128xf32>
    %132 = tpu.matmul %129, %39, %cst_46 {dimension_numbers = #tpu.dot_dimension_numbers<[1], [0], [0], [1], [0, 0, 1, 1], [], []>} : vector<2x32xf32>, vector<32x128xf32>, vector<2x128xf32> -> vector<2x128xf32>
    %133 = arith.addf %131, %132 : vector<2x128xf32>
    %134 = vector.extract_strided_slice %133 {offsets = [0, 0], sizes = [2, 32], strides = [1, 1]} : vector<2x128xf32> to vector<2x32xf32>
    %135 = arith.negf %134 : vector<2x32xf32>
    %136 = math.exp %135 : vector<2x32xf32>
    %cst_47 = arith.constant 1.000000e+00 : f32
    %137 = vector.broadcast %cst_47 : f32 to vector<2x32xf32>
    %138 = arith.addf %137, %136 : vector<2x32xf32>
    %139 = arith.divf %137, %138 : vector<2x32xf32>
    %140 = vector.extract_strided_slice %133 {offsets = [0, 32], sizes = [2, 32], strides = [1, 1]} : vector<2x128xf32> to vector<2x32xf32>
    %141 = arith.negf %140 : vector<2x32xf32>
    %142 = math.exp %141 : vector<2x32xf32>
    %cst_48 = arith.constant 1.000000e+00 : f32
    %143 = vector.broadcast %cst_48 : f32 to vector<2x32xf32>
    %144 = arith.addf %143, %142 : vector<2x32xf32>
    %145 = arith.divf %143, %144 : vector<2x32xf32>
    %146 = vector.extract_strided_slice %133 {offsets = [0, 64], sizes = [2, 32], strides = [1, 1]} : vector<2x128xf32> to vector<2x32xf32>
    %147 = math.tanh %146 : vector<2x32xf32>
    %148 = vector.extract_strided_slice %133 {offsets = [0, 96], sizes = [2, 32], strides = [1, 1]} : vector<2x128xf32> to vector<2x32xf32>
    %149 = arith.negf %148 : vector<2x32xf32>
    %150 = math.exp %149 : vector<2x32xf32>
    %cst_49 = arith.constant 1.000000e+00 : f32
    %151 = vector.broadcast %cst_49 : f32 to vector<2x32xf32>
    %152 = arith.addf %151, %150 : vector<2x32xf32>
    %153 = arith.divf %151, %152 : vector<2x32xf32>
    %154 = arith.mulf %145, %127 : vector<2x32xf32>
    %155 = arith.mulf %139, %147 : vector<2x32xf32>
    %156 = arith.addf %154, %155 : vector<2x32xf32>
    %157 = math.tanh %156 : vector<2x32xf32>
    %158 = arith.mulf %153, %157 : vector<2x32xf32>
    %c6 = arith.constant 6 : index
    %c0_50 = arith.constant 0 : index
    %159 = vector.load %arg21[%c6, %c0_50] : memref<16x32xf32, #tpu.memory_space<vmem>>, vector<2x32xf32>
    tpu.vector_store %arg21[%c6, %c0_50], %158 {strides = array<i32>} : memref<16x32xf32, #tpu.memory_space<vmem>>, vector<2x32xf32>,
    %160 = vector.extract_strided_slice %37 {offsets = [8, 0], sizes = [2, 128], strides = [1, 1]} : vector<16x128xf32> to vector<2x128xf32>
    %cst_51 = arith.constant dense<0.000000e+00> : vector<2x128xf32>
    %161 = tpu.matmul %158, %39, %cst_51 {dimension_numbers = #tpu.dot_dimension_numbers<[1], [0], [0], [1], [0, 0, 1, 1], [], []>} : vector<2x32xf32>, vector<32x128xf32>, vector<2x128xf32> -> vector<2x128xf32>
    %162 = arith.addf %160, %161 : vector<2x128xf32>
    %163 = vector.extract_strided_slice %162 {offsets = [0, 0], sizes = [2, 32], strides = [1, 1]} : vector<2x128xf32> to vector<2x32xf32>
    %164 = arith.negf %163 : vector<2x32xf32>
    %165 = math.exp %164 : vector<2x32xf32>
    %cst_52 = arith.constant 1.000000e+00 : f32
    %166 = vector.broadcast %cst_52 : f32 to vector<2x32xf32>
    %167 = arith.addf %166, %165 : vector<2x32xf32>
    %168 = arith.divf %166, %167 : vector<2x32xf32>
    %169 = vector.extract_strided_slice %162 {offsets = [0, 32], sizes = [2, 32], strides = [1, 1]} : vector<2x128xf32> to vector<2x32xf32>
    %170 = arith.negf %169 : vector<2x32xf32>
    %171 = math.exp %170 : vector<2x32xf32>
    %cst_53 = arith.constant 1.000000e+00 : f32
    %172 = vector.broadcast %cst_53 : f32 to vector<2x32xf32>
    %173 = arith.addf %172, %171 : vector<2x32xf32>
    %174 = arith.divf %172, %173 : vector<2x32xf32>
    %175 = vector.extract_strided_slice %162 {offsets = [0, 64], sizes = [2, 32], strides = [1, 1]} : vector<2x128xf32> to vector<2x32xf32>
    %176 = math.tanh %175 : vector<2x32xf32>
    %177 = vector.extract_strided_slice %162 {offsets = [0, 96], sizes = [2, 32], strides = [1, 1]} : vector<2x128xf32> to vector<2x32xf32>
    %178 = arith.negf %177 : vector<2x32xf32>
    %179 = math.exp %178 : vector<2x32xf32>
    %cst_54 = arith.constant 1.000000e+00 : f32
    %180 = vector.broadcast %cst_54 : f32 to vector<2x32xf32>
    %181 = arith.addf %180, %179 : vector<2x32xf32>
    %182 = arith.divf %180, %181 : vector<2x32xf32>
    %183 = arith.mulf %174, %156 : vector<2x32xf32>
    %184 = arith.mulf %168, %176 : vector<2x32xf32>
    %185 = arith.addf %183, %184 : vector<2x32xf32>
    %186 = math.tanh %185 : vector<2x32xf32>
    %187 = arith.mulf %182, %186 : vector<2x32xf32>
    %c8 = arith.constant 8 : index
    %c0_55 = arith.constant 0 : index
    %188 = vector.load %arg21[%c8, %c0_55] : memref<16x32xf32, #tpu.memory_space<vmem>>, vector<2x32xf32>
    tpu.vector_store %arg21[%c8, %c0_55], %187 {strides = array<i32>} : memref<16x32xf32, #tpu.memory_space<vmem>>, vector<2x32xf32>,
    %189 = vector.extract_strided_slice %37 {offsets = [10, 0], sizes = [2, 128], strides = [1, 1]} : vector<16x128xf32> to vector<2x128xf32>
    %cst_56 = arith.constant dense<0.000000e+00> : vector<2x128xf32>
    %190 = tpu.matmul %187, %39, %cst_56 {dimension_numbers = #tpu.dot_dimension_numbers<[1], [0], [0], [1], [0, 0, 1, 1], [], []>} : vector<2x32xf32>, vector<32x128xf32>, vector<2x128xf32> -> vector<2x128xf32>
    %191 = arith.addf %189, %190 : vector<2x128xf32>
    %192 = vector.extract_strided_slice %191 {offsets = [0, 0], sizes = [2, 32], strides = [1, 1]} : vector<2x128xf32> to vector<2x32xf32>
    %193 = arith.negf %192 : vector<2x32xf32>
    %194 = math.exp %193 : vector<2x32xf32>
    %cst_57 = arith.constant 1.000000e+00 : f32
    %195 = vector.broadcast %cst_57 : f32 to vector<2x32xf32>
    %196 = arith.addf %195, %194 : vector<2x32xf32>
    %197 = arith.divf %195, %196 : vector<2x32xf32>
    %198 = vector.extract_strided_slice %191 {offsets = [0, 32], sizes = [2, 32], strides = [1, 1]} : vector<2x128xf32> to vector<2x32xf32>
    %199 = arith.negf %198 : vector<2x32xf32>
    %200 = math.exp %199 : vector<2x32xf32>
    %cst_58 = arith.constant 1.000000e+00 : f32
    %201 = vector.broadcast %cst_58 : f32 to vector<2x32xf32>
    %202 = arith.addf %201, %200 : vector<2x32xf32>
    %203 = arith.divf %201, %202 : vector<2x32xf32>
    %204 = vector.extract_strided_slice %191 {offsets = [0, 64], sizes = [2, 32], strides = [1, 1]} : vector<2x128xf32> to vector<2x32xf32>
    %205 = math.tanh %204 : vector<2x32xf32>
    %206 = vector.extract_strided_slice %191 {offsets = [0, 96], sizes = [2, 32], strides = [1, 1]} : vector<2x128xf32> to vector<2x32xf32>
    %207 = arith.negf %206 : vector<2x32xf32>
    %208 = math.exp %207 : vector<2x32xf32>
    %cst_59 = arith.constant 1.000000e+00 : f32
    %209 = vector.broadcast %cst_59 : f32 to vector<2x32xf32>
    %210 = arith.addf %209, %208 : vector<2x32xf32>
    %211 = arith.divf %209, %210 : vector<2x32xf32>
    %212 = arith.mulf %203, %185 : vector<2x32xf32>
    %213 = arith.mulf %197, %205 : vector<2x32xf32>
    %214 = arith.addf %212, %213 : vector<2x32xf32>
    %215 = math.tanh %214 : vector<2x32xf32>
    %216 = arith.mulf %211, %215 : vector<2x32xf32>
    %c10 = arith.constant 10 : index
    %c0_60 = arith.constant 0 : index
    %217 = vector.load %arg21[%c10, %c0_60] : memref<16x32xf32, #tpu.memory_space<vmem>>, vector<2x32xf32>
    tpu.vector_store %arg21[%c10, %c0_60], %216 {strides = array<i32>} : memref<16x32xf32, #tpu.memory_space<vmem>>, vector<2x32xf32>,
    %218 = vector.extract_strided_slice %37 {offsets = [12, 0], sizes = [2, 128], strides = [1, 1]} : vector<16x128xf32> to vector<2x128xf32>
    %cst_61 = arith.constant dense<0.000000e+00> : vector<2x128xf32>
    %219 = tpu.matmul %216, %39, %cst_61 {dimension_numbers = #tpu.dot_dimension_numbers<[1], [0], [0], [1], [0, 0, 1, 1], [], []>} : vector<2x32xf32>, vector<32x128xf32>, vector<2x128xf32> -> vector<2x128xf32>
    %220 = arith.addf %218, %219 : vector<2x128xf32>
    %221 = vector.extract_strided_slice %220 {offsets = [0, 0], sizes = [2, 32], strides = [1, 1]} : vector<2x128xf32> to vector<2x32xf32>
    %222 = arith.negf %221 : vector<2x32xf32>
    %223 = math.exp %222 : vector<2x32xf32>
    %cst_62 = arith.constant 1.000000e+00 : f32
    %224 = vector.broadcast %cst_62 : f32 to vector<2x32xf32>
    %225 = arith.addf %224, %223 : vector<2x32xf32>
    %226 = arith.divf %224, %225 : vector<2x32xf32>
    %227 = vector.extract_strided_slice %220 {offsets = [0, 32], sizes = [2, 32], strides = [1, 1]} : vector<2x128xf32> to vector<2x32xf32>
    %228 = arith.negf %227 : vector<2x32xf32>
    %229 = math.exp %228 : vector<2x32xf32>
    %cst_63 = arith.constant 1.000000e+00 : f32
    %230 = vector.broadcast %cst_63 : f32 to vector<2x32xf32>
    %231 = arith.addf %230, %229 : vector<2x32xf32>
    %232 = arith.divf %230, %231 : vector<2x32xf32>
    %233 = vector.extract_strided_slice %220 {offsets = [0, 64], sizes = [2, 32], strides = [1, 1]} : vector<2x128xf32> to vector<2x32xf32>
    %234 = math.tanh %233 : vector<2x32xf32>
    %235 = vector.extract_strided_slice %220 {offsets = [0, 96], sizes = [2, 32], strides = [1, 1]} : vector<2x128xf32> to vector<2x32xf32>
    %236 = arith.negf %235 : vector<2x32xf32>
    %237 = math.exp %236 : vector<2x32xf32>
    %cst_64 = arith.constant 1.000000e+00 : f32
    %238 = vector.broadcast %cst_64 : f32 to vector<2x32xf32>
    %239 = arith.addf %238, %237 : vector<2x32xf32>
    %240 = arith.divf %238, %239 : vector<2x32xf32>
    %241 = arith.mulf %232, %214 : vector<2x32xf32>
    %242 = arith.mulf %226, %234 : vector<2x32xf32>
    %243 = arith.addf %241, %242 : vector<2x32xf32>
    %244 = math.tanh %243 : vector<2x32xf32>
    %245 = arith.mulf %240, %244 : vector<2x32xf32>
    %c12 = arith.constant 12 : index
    %c0_65 = arith.constant 0 : index
    %246 = vector.load %arg21[%c12, %c0_65] : memref<16x32xf32, #tpu.memory_space<vmem>>, vector<2x32xf32>
    tpu.vector_store %arg21[%c12, %c0_65], %245 {strides = array<i32>} : memref<16x32xf32, #tpu.memory_space<vmem>>, vector<2x32xf32>,
    %247 = vector.extract_strided_slice %37 {offsets = [14, 0], sizes = [2, 128], strides = [1, 1]} : vector<16x128xf32> to vector<2x128xf32>
    %cst_66 = arith.constant dense<0.000000e+00> : vector<2x128xf32>
    %248 = tpu.matmul %245, %39, %cst_66 {dimension_numbers = #tpu.dot_dimension_numbers<[1], [0], [0], [1], [0, 0, 1, 1], [], []>} : vector<2x32xf32>, vector<32x128xf32>, vector<2x128xf32> -> vector<2x128xf32>
    %249 = arith.addf %247, %248 : vector<2x128xf32>
    %250 = vector.extract_strided_slice %249 {offsets = [0, 0], sizes = [2, 32], strides = [1, 1]} : vector<2x128xf32> to vector<2x32xf32>
    %251 = arith.negf %250 : vector<2x32xf32>
    %252 = math.exp %251 : vector<2x32xf32>
    %cst_67 = arith.constant 1.000000e+00 : f32
    %253 = vector.broadcast %cst_67 : f32 to vector<2x32xf32>
    %254 = arith.addf %253, %252 : vector<2x32xf32>
    %255 = arith.divf %253, %254 : vector<2x32xf32>
    %256 = vector.extract_strided_slice %249 {offsets = [0, 32], sizes = [2, 32], strides = [1, 1]} : vector<2x128xf32> to vector<2x32xf32>
    %257 = arith.negf %256 : vector<2x32xf32>
    %258 = math.exp %257 : vector<2x32xf32>
    %cst_68 = arith.constant 1.000000e+00 : f32
    %259 = vector.broadcast %cst_68 : f32 to vector<2x32xf32>
    %260 = arith.addf %259, %258 : vector<2x32xf32>
    %261 = arith.divf %259, %260 : vector<2x32xf32>
    %262 = vector.extract_strided_slice %249 {offsets = [0, 64], sizes = [2, 32], strides = [1, 1]} : vector<2x128xf32> to vector<2x32xf32>
    %263 = math.tanh %262 : vector<2x32xf32>
    %264 = vector.extract_strided_slice %249 {offsets = [0, 96], sizes = [2, 32], strides = [1, 1]} : vector<2x128xf32> to vector<2x32xf32>
    %265 = arith.negf %264 : vector<2x32xf32>
    %266 = math.exp %265 : vector<2x32xf32>
    %cst_69 = arith.constant 1.000000e+00 : f32
    %267 = vector.broadcast %cst_69 : f32 to vector<2x32xf32>
    %268 = arith.addf %267, %266 : vector<2x32xf32>
    %269 = arith.divf %267, %268 : vector<2x32xf32>
    %270 = arith.mulf %261, %243 : vector<2x32xf32>
    %271 = arith.mulf %255, %263 : vector<2x32xf32>
    %272 = arith.addf %270, %271 : vector<2x32xf32>
    %273 = math.tanh %272 : vector<2x32xf32>
    %274 = arith.mulf %269, %273 : vector<2x32xf32>
    %c14 = arith.constant 14 : index
    %c0_70 = arith.constant 0 : index
    %275 = vector.load %arg21[%c14, %c0_70] : memref<16x32xf32, #tpu.memory_space<vmem>>, vector<2x32xf32>
    tpu.vector_store %arg21[%c14, %c0_70], %274 {strides = array<i32>} : memref<16x32xf32, #tpu.memory_space<vmem>>, vector<2x32xf32>,
    %c0_71 = arith.constant 0 : index
    %c0_72 = arith.constant 0 : index
    %c0_73 = arith.constant 0 : index
    %276 = vector.load %arg19[%c0_71, %c0_72, %c0_73] : memref<2x2x32xf32, #tpu.memory_space<vmem>>, vector<1x2x32xf32>
    %277 = vector.shape_cast %276 : vector<1x2x32xf32> to vector<2x32xf32>
    %278 = vector.shape_cast %274 : vector<2x32xf32> to vector<1x2x32xf32>
    tpu.vector_store %arg19[%c0_71, %c0_72, %c0_73], %278 {strides = array<i32>} : memref<2x2x32xf32, #tpu.memory_space<vmem>>, vector<1x2x32xf32>,
    %c0_74 = arith.constant 0 : index
    %c0_75 = arith.constant 0 : index
    %c0_76 = arith.constant 0 : index
    %279 = vector.load %arg20[%c0_74, %c0_75, %c0_76] : memref<2x2x32xf32, #tpu.memory_space<vmem>>, vector<1x2x32xf32>
    %280 = vector.shape_cast %279 : vector<1x2x32xf32> to vector<2x32xf32>
    %281 = vector.shape_cast %272 : vector<2x32xf32> to vector<1x2x32xf32>
    tpu.vector_store %arg20[%c0_74, %c0_75, %c0_76], %281 {strides = array<i32>} : memref<2x2x32xf32, #tpu.memory_space<vmem>>, vector<1x2x32xf32>,
    %c0_77 = arith.constant 0 : index
    %c0_78 = arith.constant 0 : index
    %282 = vector.load %arg21[%c0_77, %c0_78] : memref<16x32xf32, #tpu.memory_space<vmem>>, vector<16x32xf32>
    %c0_79 = arith.constant 0 : index
    %c0_80 = arith.constant 0 : index
    %c0_81 = arith.constant 0 : index
    %283 = vector.load %arg10[%c0_79, %c0_80, %c0_81] : memref<2x32x32xf32, #tpu.memory_space<vmem>>, vector<1x32x32xf32>
    %284 = vector.shape_cast %283 : vector<1x32x32xf32> to vector<32x32xf32>
    %cst_82 = arith.constant dense<0.000000e+00> : vector<16x32xf32>
    %285 = tpu.matmul %282, %284, %cst_82 {dimension_numbers = #tpu.dot_dimension_numbers<[1], [0], [0], [1], [0, 0, 1, 1], [], []>} : vector<16x32xf32>, vector<32x32xf32>, vector<16x32xf32> -> vector<16x32xf32>
    %c0_83 = arith.constant 0 : index
    %c0_84 = arith.constant 0 : index
    %c0_85 = arith.constant 0 : index
    %286 = vector.load %arg11[%c0_83, %c0_84, %c0_85] : memref<2x1x32xf32, #tpu.memory_space<vmem>>, vector<1x1x32xf32>
    %287 = vector.shape_cast %286 : vector<1x1x32xf32> to vector<1x32xf32>
    %288 = vector.broadcast %287 : vector<1x32xf32> to vector<16x32xf32>
    %289 = arith.addf %285, %288 : vector<16x32xf32>
    %290 = arith.addf %289, %0 : vector<16x32xf32>
    %c0_86 = arith.constant 0 : index
    %c0_87 = arith.constant 0 : index
    %c0_88 = arith.constant 0 : index
    %291 = vector.load %arg12[%c0_86, %c0_87, %c0_88] : memref<2x1x32xf32, #tpu.memory_space<vmem>>, vector<1x1x32xf32>
    %292 = vector.shape_cast %291 : vector<1x1x32xf32> to vector<1x32xf32>
    %c0_89 = arith.constant 0 : index
    %c0_90 = arith.constant 0 : index
    %c0_91 = arith.constant 0 : index
    %293 = vector.load %arg13[%c0_89, %c0_90, %c0_91] : memref<2x1x32xf32, #tpu.memory_space<vmem>>, vector<1x1x32xf32>
    %294 = vector.shape_cast %293 : vector<1x1x32xf32> to vector<1x32xf32>
    %cst_92 = arith.constant dense<0.000000e+00> : vector<16xf32>
    %295 = vector.multi_reduction <add>, %290, %cst_92 [1] : vector<16x32xf32> to vector<16xf32>
    %296 = vector.shape_cast %295 : vector<16xf32> to vector<16x1xf32>
    %cst_93 = arith.constant 3.200000e+01 : f32
    %297 = vector.broadcast %cst_93 : f32 to vector<16x1xf32>
    %298 = arith.divf %296, %297 : vector<16x1xf32>
    %299 = vector.broadcast %298 : vector<16x1xf32> to vector<16x32xf32>
    %300 = arith.subf %290, %299 : vector<16x32xf32>
    %301 = arith.mulf %300, %300 : vector<16x32xf32>
    %cst_94 = arith.constant dense<0.000000e+00> : vector<16xf32>
    %302 = vector.multi_reduction <add>, %301, %cst_94 [1] : vector<16x32xf32> to vector<16xf32>
    %303 = vector.shape_cast %302 : vector<16xf32> to vector<16x1xf32>
    %cst_95 = arith.constant 3.200000e+01 : f32
    %304 = vector.broadcast %cst_95 : f32 to vector<16x1xf32>
    %305 = arith.divf %303, %304 : vector<16x1xf32>
    %306 = vector.broadcast %298 : vector<16x1xf32> to vector<16x32xf32>
    %307 = arith.subf %290, %306 : vector<16x32xf32>
    %cst_96 = arith.constant 9.99999974E-6 : f32
    %308 = vector.broadcast %cst_96 : f32 to vector<16x1xf32>
    %309 = arith.addf %305, %308 : vector<16x1xf32>
    %310 = math.rsqrt %309 : vector<16x1xf32>
    %311 = vector.broadcast %310 : vector<16x1xf32> to vector<16x32xf32>
    %312 = arith.mulf %307, %311 : vector<16x32xf32>
    %313 = vector.broadcast %292 : vector<1x32xf32> to vector<16x32xf32>
    %314 = arith.mulf %312, %313 : vector<16x32xf32>
    %315 = vector.broadcast %294 : vector<1x32xf32> to vector<16x32xf32>
    %316 = arith.addf %314, %315 : vector<16x32xf32>
    %c0_97 = arith.constant 0 : index
    %c0_98 = arith.constant 0 : index
    %c0_99 = arith.constant 0 : index
    %317 = vector.load %arg14[%c0_97, %c0_98, %c0_99] : memref<2x32x64xf32, #tpu.memory_space<vmem>>, vector<1x32x64xf32>
    %318 = vector.shape_cast %317 : vector<1x32x64xf32> to vector<32x64xf32>
    %cst_100 = arith.constant dense<0.000000e+00> : vector<16x64xf32>
    %319 = tpu.matmul %316, %318, %cst_100 {dimension_numbers = #tpu.dot_dimension_numbers<[1], [0], [0], [1], [0, 0, 1, 1], [], []>} : vector<16x32xf32>, vector<32x64xf32>, vector<16x64xf32> -> vector<16x64xf32>
    %c0_101 = arith.constant 0 : index
    %c0_102 = arith.constant 0 : index
    %c0_103 = arith.constant 0 : index
    %320 = vector.load %arg15[%c0_101, %c0_102, %c0_103] : memref<2x1x64xf32, #tpu.memory_space<vmem>>, vector<1x1x64xf32>
    %321 = vector.shape_cast %320 : vector<1x1x64xf32> to vector<1x64xf32>
    %322 = vector.broadcast %321 : vector<1x64xf32> to vector<16x64xf32>
    %323 = arith.addf %319, %322 : vector<16x64xf32>
    %cst_104 = arith.constant 5.000000e-01 : f32
    %324 = vector.broadcast %cst_104 : f32 to vector<16x64xf32>
    %325 = arith.mulf %324, %323 : vector<16x64xf32>
    %cst_105 = arith.constant 0.707106769 : f32
    %326 = vector.broadcast %cst_105 : f32 to vector<16x64xf32>
    %327 = arith.mulf %323, %326 : vector<16x64xf32>
    %328 = math.erf %327 : vector<16x64xf32>
    %cst_106 = arith.constant 1.000000e+00 : f32
    %329 = vector.broadcast %cst_106 : f32 to vector<16x64xf32>
    %330 = arith.addf %329, %328 : vector<16x64xf32>
    %331 = arith.mulf %325, %330 : vector<16x64xf32>
    %c0_107 = arith.constant 0 : index
    %c0_108 = arith.constant 0 : index
    %c0_109 = arith.constant 0 : index
    %332 = vector.load %arg16[%c0_107, %c0_108, %c0_109] : memref<2x64x32xf32, #tpu.memory_space<vmem>>, vector<1x64x32xf32>
    %333 = vector.shape_cast %332 : vector<1x64x32xf32> to vector<64x32xf32>
    %cst_110 = arith.constant dense<0.000000e+00> : vector<16x32xf32>
    %334 = tpu.matmul %331, %333, %cst_110 {dimension_numbers = #tpu.dot_dimension_numbers<[1], [0], [0], [1], [0, 0, 1, 1], [], []>} : vector<16x64xf32>, vector<64x32xf32>, vector<16x32xf32> -> vector<16x32xf32>
    %c0_111 = arith.constant 0 : index
    %c0_112 = arith.constant 0 : index
    %c0_113 = arith.constant 0 : index
    %335 = vector.load %arg17[%c0_111, %c0_112, %c0_113] : memref<2x1x32xf32, #tpu.memory_space<vmem>>, vector<1x1x32xf32>
    %336 = vector.shape_cast %335 : vector<1x1x32xf32> to vector<1x32xf32>
    %337 = vector.broadcast %336 : vector<1x32xf32> to vector<16x32xf32>
    %338 = arith.addf %334, %337 : vector<16x32xf32>
    %339 = arith.addf %290, %338 : vector<16x32xf32>
    %c1 = arith.constant 1 : index
    %c0_114 = arith.constant 0 : index
    %c0_115 = arith.constant 0 : index
    %340 = vector.load %arg4[%c1, %c0_114, %c0_115] : memref<2x1x32xf32, #tpu.memory_space<vmem>>, vector<1x1x32xf32>
    %341 = vector.shape_cast %340 : vector<1x1x32xf32> to vector<1x32xf32>
    %c1_116 = arith.constant 1 : index
    %c0_117 = arith.constant 0 : index
    %c0_118 = arith.constant 0 : index
    %342 = vector.load %arg5[%c1_116, %c0_117, %c0_118] : memref<2x1x32xf32, #tpu.memory_space<vmem>>, vector<1x1x32xf32>
    %343 = vector.shape_cast %342 : vector<1x1x32xf32> to vector<1x32xf32>
    %cst_119 = arith.constant dense<0.000000e+00> : vector<16xf32>
    %344 = vector.multi_reduction <add>, %339, %cst_119 [1] : vector<16x32xf32> to vector<16xf32>
    %345 = vector.shape_cast %344 : vector<16xf32> to vector<16x1xf32>
    %cst_120 = arith.constant 3.200000e+01 : f32
    %346 = vector.broadcast %cst_120 : f32 to vector<16x1xf32>
    %347 = arith.divf %345, %346 : vector<16x1xf32>
    %348 = vector.broadcast %347 : vector<16x1xf32> to vector<16x32xf32>
    %349 = arith.subf %339, %348 : vector<16x32xf32>
    %350 = arith.mulf %349, %349 : vector<16x32xf32>
    %cst_121 = arith.constant dense<0.000000e+00> : vector<16xf32>
    %351 = vector.multi_reduction <add>, %350, %cst_121 [1] : vector<16x32xf32> to vector<16xf32>
    %352 = vector.shape_cast %351 : vector<16xf32> to vector<16x1xf32>
    %cst_122 = arith.constant 3.200000e+01 : f32
    %353 = vector.broadcast %cst_122 : f32 to vector<16x1xf32>
    %354 = arith.divf %352, %353 : vector<16x1xf32>
    %355 = vector.broadcast %347 : vector<16x1xf32> to vector<16x32xf32>
    %356 = arith.subf %339, %355 : vector<16x32xf32>
    %cst_123 = arith.constant 9.99999974E-6 : f32
    %357 = vector.broadcast %cst_123 : f32 to vector<16x1xf32>
    %358 = arith.addf %354, %357 : vector<16x1xf32>
    %359 = math.rsqrt %358 : vector<16x1xf32>
    %360 = vector.broadcast %359 : vector<16x1xf32> to vector<16x32xf32>
    %361 = arith.mulf %356, %360 : vector<16x32xf32>
    %362 = vector.broadcast %341 : vector<1x32xf32> to vector<16x32xf32>
    %363 = arith.mulf %361, %362 : vector<16x32xf32>
    %364 = vector.broadcast %343 : vector<1x32xf32> to vector<16x32xf32>
    %365 = arith.addf %363, %364 : vector<16x32xf32>
    %c1_124 = arith.constant 1 : index
    %c0_125 = arith.constant 0 : index
    %c0_126 = arith.constant 0 : index
    %366 = vector.load %arg6[%c1_124, %c0_125, %c0_126] : memref<2x32x128xf32, #tpu.memory_space<vmem>>, vector<1x32x128xf32>
    %367 = vector.shape_cast %366 : vector<1x32x128xf32> to vector<32x128xf32>
    %cst_127 = arith.constant dense<0.000000e+00> : vector<16x128xf32>
    %368 = tpu.matmul %365, %367, %cst_127 {dimension_numbers = #tpu.dot_dimension_numbers<[1], [0], [0], [1], [0, 0, 1, 1], [], []>} : vector<16x32xf32>, vector<32x128xf32>, vector<16x128xf32> -> vector<16x128xf32>
    %c1_128 = arith.constant 1 : index
    %c0_129 = arith.constant 0 : index
    %c0_130 = arith.constant 0 : index
    %369 = vector.load %arg7[%c1_128, %c0_129, %c0_130] : memref<2x1x128xf32, #tpu.memory_space<vmem>>, vector<1x1x128xf32>
    %370 = vector.shape_cast %369 : vector<1x1x128xf32> to vector<1x128xf32>
    %371 = vector.broadcast %370 : vector<1x128xf32> to vector<16x128xf32>
    %372 = arith.addf %368, %371 : vector<16x128xf32>
    %c1_131 = arith.constant 1 : index
    %c0_132 = arith.constant 0 : index
    %c0_133 = arith.constant 0 : index
    %373 = vector.load %arg9[%c1_131, %c0_132, %c0_133] : memref<2x1x128xf32, #tpu.memory_space<vmem>>, vector<1x1x128xf32>
    %374 = vector.shape_cast %373 : vector<1x1x128xf32> to vector<1x128xf32>
    %375 = vector.broadcast %374 : vector<1x128xf32> to vector<16x128xf32>
    %376 = arith.addf %372, %375 : vector<16x128xf32>
    %c1_134 = arith.constant 1 : index
    %c0_135 = arith.constant 0 : index
    %c0_136 = arith.constant 0 : index
    %377 = vector.load %arg8[%c1_134, %c0_135, %c0_136] : memref<2x32x128xf32, #tpu.memory_space<vmem>>, vector<1x32x128xf32>
    %378 = vector.shape_cast %377 : vector<1x32x128xf32> to vector<32x128xf32>
    %c1_137 = arith.constant 1 : index
    %c0_138 = arith.constant 0 : index
    %c0_139 = arith.constant 0 : index
    %379 = vector.load %arg2[%c1_137, %c0_138, %c0_139] : memref<2x2x32xf32, #tpu.memory_space<vmem>>, vector<1x2x32xf32>
    %380 = vector.shape_cast %379 : vector<1x2x32xf32> to vector<2x32xf32>
    %c1_140 = arith.constant 1 : index
    %c0_141 = arith.constant 0 : index
    %c0_142 = arith.constant 0 : index
    %381 = vector.load %arg3[%c1_140, %c0_141, %c0_142] : memref<2x2x32xf32, #tpu.memory_space<vmem>>, vector<1x2x32xf32>
    %382 = vector.shape_cast %381 : vector<1x2x32xf32> to vector<2x32xf32>
    %383 = vector.extract_strided_slice %376 {offsets = [0, 0], sizes = [2, 128], strides = [1, 1]} : vector<16x128xf32> to vector<2x128xf32>
    %cst_143 = arith.constant dense<0.000000e+00> : vector<2x128xf32>
    %384 = tpu.matmul %380, %378, %cst_143 {dimension_numbers = #tpu.dot_dimension_numbers<[1], [0], [0], [1], [0, 0, 1, 1], [], []>} : vector<2x32xf32>, vector<32x128xf32>, vector<2x128xf32> -> vector<2x128xf32>
    %385 = arith.addf %383, %384 : vector<2x128xf32>
    %386 = vector.extract_strided_slice %385 {offsets = [0, 0], sizes = [2, 32], strides = [1, 1]} : vector<2x128xf32> to vector<2x32xf32>
    %387 = arith.negf %386 : vector<2x32xf32>
    %388 = math.exp %387 : vector<2x32xf32>
    %cst_144 = arith.constant 1.000000e+00 : f32
    %389 = vector.broadcast %cst_144 : f32 to vector<2x32xf32>
    %390 = arith.addf %389, %388 : vector<2x32xf32>
    %391 = arith.divf %389, %390 : vector<2x32xf32>
    %392 = vector.extract_strided_slice %385 {offsets = [0, 32], sizes = [2, 32], strides = [1, 1]} : vector<2x128xf32> to vector<2x32xf32>
    %393 = arith.negf %392 : vector<2x32xf32>
    %394 = math.exp %393 : vector<2x32xf32>
    %cst_145 = arith.constant 1.000000e+00 : f32
    %395 = vector.broadcast %cst_145 : f32 to vector<2x32xf32>
    %396 = arith.addf %395, %394 : vector<2x32xf32>
    %397 = arith.divf %395, %396 : vector<2x32xf32>
    %398 = vector.extract_strided_slice %385 {offsets = [0, 64], sizes = [2, 32], strides = [1, 1]} : vector<2x128xf32> to vector<2x32xf32>
    %399 = math.tanh %398 : vector<2x32xf32>
    %400 = vector.extract_strided_slice %385 {offsets = [0, 96], sizes = [2, 32], strides = [1, 1]} : vector<2x128xf32> to vector<2x32xf32>
    %401 = arith.negf %400 : vector<2x32xf32>
    %402 = math.exp %401 : vector<2x32xf32>
    %cst_146 = arith.constant 1.000000e+00 : f32
    %403 = vector.broadcast %cst_146 : f32 to vector<2x32xf32>
    %404 = arith.addf %403, %402 : vector<2x32xf32>
    %405 = arith.divf %403, %404 : vector<2x32xf32>
    %406 = arith.mulf %397, %382 : vector<2x32xf32>
    %407 = arith.mulf %391, %399 : vector<2x32xf32>
    %408 = arith.addf %406, %407 : vector<2x32xf32>
    %409 = math.tanh %408 : vector<2x32xf32>
    %410 = arith.mulf %405, %409 : vector<2x32xf32>
    %c0_147 = arith.constant 0 : index
    %c0_148 = arith.constant 0 : index
    %411 = vector.load %arg21[%c0_147, %c0_148] : memref<16x32xf32, #tpu.memory_space<vmem>>, vector<2x32xf32>
    tpu.vector_store %arg21[%c0_147, %c0_148], %410 {strides = array<i32>} : memref<16x32xf32, #tpu.memory_space<vmem>>, vector<2x32xf32>,
    %412 = vector.extract_strided_slice %376 {offsets = [2, 0], sizes = [2, 128], strides = [1, 1]} : vector<16x128xf32> to vector<2x128xf32>
    %cst_149 = arith.constant dense<0.000000e+00> : vector<2x128xf32>
    %413 = tpu.matmul %410, %378, %cst_149 {dimension_numbers = #tpu.dot_dimension_numbers<[1], [0], [0], [1], [0, 0, 1, 1], [], []>} : vector<2x32xf32>, vector<32x128xf32>, vector<2x128xf32> -> vector<2x128xf32>
    %414 = arith.addf %412, %413 : vector<2x128xf32>
    %415 = vector.extract_strided_slice %414 {offsets = [0, 0], sizes = [2, 32], strides = [1, 1]} : vector<2x128xf32> to vector<2x32xf32>
    %416 = arith.negf %415 : vector<2x32xf32>
    %417 = math.exp %416 : vector<2x32xf32>
    %cst_150 = arith.constant 1.000000e+00 : f32
    %418 = vector.broadcast %cst_150 : f32 to vector<2x32xf32>
    %419 = arith.addf %418, %417 : vector<2x32xf32>
    %420 = arith.divf %418, %419 : vector<2x32xf32>
    %421 = vector.extract_strided_slice %414 {offsets = [0, 32], sizes = [2, 32], strides = [1, 1]} : vector<2x128xf32> to vector<2x32xf32>
    %422 = arith.negf %421 : vector<2x32xf32>
    %423 = math.exp %422 : vector<2x32xf32>
    %cst_151 = arith.constant 1.000000e+00 : f32
    %424 = vector.broadcast %cst_151 : f32 to vector<2x32xf32>
    %425 = arith.addf %424, %423 : vector<2x32xf32>
    %426 = arith.divf %424, %425 : vector<2x32xf32>
    %427 = vector.extract_strided_slice %414 {offsets = [0, 64], sizes = [2, 32], strides = [1, 1]} : vector<2x128xf32> to vector<2x32xf32>
    %428 = math.tanh %427 : vector<2x32xf32>
    %429 = vector.extract_strided_slice %414 {offsets = [0, 96], sizes = [2, 32], strides = [1, 1]} : vector<2x128xf32> to vector<2x32xf32>
    %430 = arith.negf %429 : vector<2x32xf32>
    %431 = math.exp %430 : vector<2x32xf32>
    %cst_152 = arith.constant 1.000000e+00 : f32
    %432 = vector.broadcast %cst_152 : f32 to vector<2x32xf32>
    %433 = arith.addf %432, %431 : vector<2x32xf32>
    %434 = arith.divf %432, %433 : vector<2x32xf32>
    %435 = arith.mulf %426, %408 : vector<2x32xf32>
    %436 = arith.mulf %420, %428 : vector<2x32xf32>
    %437 = arith.addf %435, %436 : vector<2x32xf32>
    %438 = math.tanh %437 : vector<2x32xf32>
    %439 = arith.mulf %434, %438 : vector<2x32xf32>
    %c2_153 = arith.constant 2 : index
    %c0_154 = arith.constant 0 : index
    %440 = vector.load %arg21[%c2_153, %c0_154] : memref<16x32xf32, #tpu.memory_space<vmem>>, vector<2x32xf32>
    tpu.vector_store %arg21[%c2_153, %c0_154], %439 {strides = array<i32>} : memref<16x32xf32, #tpu.memory_space<vmem>>, vector<2x32xf32>,
    %441 = vector.extract_strided_slice %376 {offsets = [4, 0], sizes = [2, 128], strides = [1, 1]} : vector<16x128xf32> to vector<2x128xf32>
    %cst_155 = arith.constant dense<0.000000e+00> : vector<2x128xf32>
    %442 = tpu.matmul %439, %378, %cst_155 {dimension_numbers = #tpu.dot_dimension_numbers<[1], [0], [0], [1], [0, 0, 1, 1], [], []>} : vector<2x32xf32>, vector<32x128xf32>, vector<2x128xf32> -> vector<2x128xf32>
    %443 = arith.addf %441, %442 : vector<2x128xf32>
    %444 = vector.extract_strided_slice %443 {offsets = [0, 0], sizes = [2, 32], strides = [1, 1]} : vector<2x128xf32> to vector<2x32xf32>
    %445 = arith.negf %444 : vector<2x32xf32>
    %446 = math.exp %445 : vector<2x32xf32>
    %cst_156 = arith.constant 1.000000e+00 : f32
    %447 = vector.broadcast %cst_156 : f32 to vector<2x32xf32>
    %448 = arith.addf %447, %446 : vector<2x32xf32>
    %449 = arith.divf %447, %448 : vector<2x32xf32>
    %450 = vector.extract_strided_slice %443 {offsets = [0, 32], sizes = [2, 32], strides = [1, 1]} : vector<2x128xf32> to vector<2x32xf32>
    %451 = arith.negf %450 : vector<2x32xf32>
    %452 = math.exp %451 : vector<2x32xf32>
    %cst_157 = arith.constant 1.000000e+00 : f32
    %453 = vector.broadcast %cst_157 : f32 to vector<2x32xf32>
    %454 = arith.addf %453, %452 : vector<2x32xf32>
    %455 = arith.divf %453, %454 : vector<2x32xf32>
    %456 = vector.extract_strided_slice %443 {offsets = [0, 64], sizes = [2, 32], strides = [1, 1]} : vector<2x128xf32> to vector<2x32xf32>
    %457 = math.tanh %456 : vector<2x32xf32>
    %458 = vector.extract_strided_slice %443 {offsets = [0, 96], sizes = [2, 32], strides = [1, 1]} : vector<2x128xf32> to vector<2x32xf32>
    %459 = arith.negf %458 : vector<2x32xf32>
    %460 = math.exp %459 : vector<2x32xf32>
    %cst_158 = arith.constant 1.000000e+00 : f32
    %461 = vector.broadcast %cst_158 : f32 to vector<2x32xf32>
    %462 = arith.addf %461, %460 : vector<2x32xf32>
    %463 = arith.divf %461, %462 : vector<2x32xf32>
    %464 = arith.mulf %455, %437 : vector<2x32xf32>
    %465 = arith.mulf %449, %457 : vector<2x32xf32>
    %466 = arith.addf %464, %465 : vector<2x32xf32>
    %467 = math.tanh %466 : vector<2x32xf32>
    %468 = arith.mulf %463, %467 : vector<2x32xf32>
    %c4_159 = arith.constant 4 : index
    %c0_160 = arith.constant 0 : index
    %469 = vector.load %arg21[%c4_159, %c0_160] : memref<16x32xf32, #tpu.memory_space<vmem>>, vector<2x32xf32>
    tpu.vector_store %arg21[%c4_159, %c0_160], %468 {strides = array<i32>} : memref<16x32xf32, #tpu.memory_space<vmem>>, vector<2x32xf32>,
    %470 = vector.extract_strided_slice %376 {offsets = [6, 0], sizes = [2, 128], strides = [1, 1]} : vector<16x128xf32> to vector<2x128xf32>
    %cst_161 = arith.constant dense<0.000000e+00> : vector<2x128xf32>
    %471 = tpu.matmul %468, %378, %cst_161 {dimension_numbers = #tpu.dot_dimension_numbers<[1], [0], [0], [1], [0, 0, 1, 1], [], []>} : vector<2x32xf32>, vector<32x128xf32>, vector<2x128xf32> -> vector<2x128xf32>
    %472 = arith.addf %470, %471 : vector<2x128xf32>
    %473 = vector.extract_strided_slice %472 {offsets = [0, 0], sizes = [2, 32], strides = [1, 1]} : vector<2x128xf32> to vector<2x32xf32>
    %474 = arith.negf %473 : vector<2x32xf32>
    %475 = math.exp %474 : vector<2x32xf32>
    %cst_162 = arith.constant 1.000000e+00 : f32
    %476 = vector.broadcast %cst_162 : f32 to vector<2x32xf32>
    %477 = arith.addf %476, %475 : vector<2x32xf32>
    %478 = arith.divf %476, %477 : vector<2x32xf32>
    %479 = vector.extract_strided_slice %472 {offsets = [0, 32], sizes = [2, 32], strides = [1, 1]} : vector<2x128xf32> to vector<2x32xf32>
    %480 = arith.negf %479 : vector<2x32xf32>
    %481 = math.exp %480 : vector<2x32xf32>
    %cst_163 = arith.constant 1.000000e+00 : f32
    %482 = vector.broadcast %cst_163 : f32 to vector<2x32xf32>
    %483 = arith.addf %482, %481 : vector<2x32xf32>
    %484 = arith.divf %482, %483 : vector<2x32xf32>
    %485 = vector.extract_strided_slice %472 {offsets = [0, 64], sizes = [2, 32], strides = [1, 1]} : vector<2x128xf32> to vector<2x32xf32>
    %486 = math.tanh %485 : vector<2x32xf32>
    %487 = vector.extract_strided_slice %472 {offsets = [0, 96], sizes = [2, 32], strides = [1, 1]} : vector<2x128xf32> to vector<2x32xf32>
    %488 = arith.negf %487 : vector<2x32xf32>
    %489 = math.exp %488 : vector<2x32xf32>
    %cst_164 = arith.constant 1.000000e+00 : f32
    %490 = vector.broadcast %cst_164 : f32 to vector<2x32xf32>
    %491 = arith.addf %490, %489 : vector<2x32xf32>
    %492 = arith.divf %490, %491 : vector<2x32xf32>
    %493 = arith.mulf %484, %466 : vector<2x32xf32>
    %494 = arith.mulf %478, %486 : vector<2x32xf32>
    %495 = arith.addf %493, %494 : vector<2x32xf32>
    %496 = math.tanh %495 : vector<2x32xf32>
    %497 = arith.mulf %492, %496 : vector<2x32xf32>
    %c6_165 = arith.constant 6 : index
    %c0_166 = arith.constant 0 : index
    %498 = vector.load %arg21[%c6_165, %c0_166] : memref<16x32xf32, #tpu.memory_space<vmem>>, vector<2x32xf32>
    tpu.vector_store %arg21[%c6_165, %c0_166], %497 {strides = array<i32>} : memref<16x32xf32, #tpu.memory_space<vmem>>, vector<2x32xf32>,
    %499 = vector.extract_strided_slice %376 {offsets = [8, 0], sizes = [2, 128], strides = [1, 1]} : vector<16x128xf32> to vector<2x128xf32>
    %cst_167 = arith.constant dense<0.000000e+00> : vector<2x128xf32>
    %500 = tpu.matmul %497, %378, %cst_167 {dimension_numbers = #tpu.dot_dimension_numbers<[1], [0], [0], [1], [0, 0, 1, 1], [], []>} : vector<2x32xf32>, vector<32x128xf32>, vector<2x128xf32> -> vector<2x128xf32>
    %501 = arith.addf %499, %500 : vector<2x128xf32>
    %502 = vector.extract_strided_slice %501 {offsets = [0, 0], sizes = [2, 32], strides = [1, 1]} : vector<2x128xf32> to vector<2x32xf32>
    %503 = arith.negf %502 : vector<2x32xf32>
    %504 = math.exp %503 : vector<2x32xf32>
    %cst_168 = arith.constant 1.000000e+00 : f32
    %505 = vector.broadcast %cst_168 : f32 to vector<2x32xf32>
    %506 = arith.addf %505, %504 : vector<2x32xf32>
    %507 = arith.divf %505, %506 : vector<2x32xf32>
    %508 = vector.extract_strided_slice %501 {offsets = [0, 32], sizes = [2, 32], strides = [1, 1]} : vector<2x128xf32> to vector<2x32xf32>
    %509 = arith.negf %508 : vector<2x32xf32>
    %510 = math.exp %509 : vector<2x32xf32>
    %cst_169 = arith.constant 1.000000e+00 : f32
    %511 = vector.broadcast %cst_169 : f32 to vector<2x32xf32>
    %512 = arith.addf %511, %510 : vector<2x32xf32>
    %513 = arith.divf %511, %512 : vector<2x32xf32>
    %514 = vector.extract_strided_slice %501 {offsets = [0, 64], sizes = [2, 32], strides = [1, 1]} : vector<2x128xf32> to vector<2x32xf32>
    %515 = math.tanh %514 : vector<2x32xf32>
    %516 = vector.extract_strided_slice %501 {offsets = [0, 96], sizes = [2, 32], strides = [1, 1]} : vector<2x128xf32> to vector<2x32xf32>
    %517 = arith.negf %516 : vector<2x32xf32>
    %518 = math.exp %517 : vector<2x32xf32>
    %cst_170 = arith.constant 1.000000e+00 : f32
    %519 = vector.broadcast %cst_170 : f32 to vector<2x32xf32>
    %520 = arith.addf %519, %518 : vector<2x32xf32>
    %521 = arith.divf %519, %520 : vector<2x32xf32>
    %522 = arith.mulf %513, %495 : vector<2x32xf32>
    %523 = arith.mulf %507, %515 : vector<2x32xf32>
    %524 = arith.addf %522, %523 : vector<2x32xf32>
    %525 = math.tanh %524 : vector<2x32xf32>
    %526 = arith.mulf %521, %525 : vector<2x32xf32>
    %c8_171 = arith.constant 8 : index
    %c0_172 = arith.constant 0 : index
    %527 = vector.load %arg21[%c8_171, %c0_172] : memref<16x32xf32, #tpu.memory_space<vmem>>, vector<2x32xf32>
    tpu.vector_store %arg21[%c8_171, %c0_172], %526 {strides = array<i32>} : memref<16x32xf32, #tpu.memory_space<vmem>>, vector<2x32xf32>,
    %528 = vector.extract_strided_slice %376 {offsets = [10, 0], sizes = [2, 128], strides = [1, 1]} : vector<16x128xf32> to vector<2x128xf32>
    %cst_173 = arith.constant dense<0.000000e+00> : vector<2x128xf32>
    %529 = tpu.matmul %526, %378, %cst_173 {dimension_numbers = #tpu.dot_dimension_numbers<[1], [0], [0], [1], [0, 0, 1, 1], [], []>} : vector<2x32xf32>, vector<32x128xf32>, vector<2x128xf32> -> vector<2x128xf32>
    %530 = arith.addf %528, %529 : vector<2x128xf32>
    %531 = vector.extract_strided_slice %530 {offsets = [0, 0], sizes = [2, 32], strides = [1, 1]} : vector<2x128xf32> to vector<2x32xf32>
    %532 = arith.negf %531 : vector<2x32xf32>
    %533 = math.exp %532 : vector<2x32xf32>
    %cst_174 = arith.constant 1.000000e+00 : f32
    %534 = vector.broadcast %cst_174 : f32 to vector<2x32xf32>
    %535 = arith.addf %534, %533 : vector<2x32xf32>
    %536 = arith.divf %534, %535 : vector<2x32xf32>
    %537 = vector.extract_strided_slice %530 {offsets = [0, 32], sizes = [2, 32], strides = [1, 1]} : vector<2x128xf32> to vector<2x32xf32>
    %538 = arith.negf %537 : vector<2x32xf32>
    %539 = math.exp %538 : vector<2x32xf32>
    %cst_175 = arith.constant 1.000000e+00 : f32
    %540 = vector.broadcast %cst_175 : f32 to vector<2x32xf32>
    %541 = arith.addf %540, %539 : vector<2x32xf32>
    %542 = arith.divf %540, %541 : vector<2x32xf32>
    %543 = vector.extract_strided_slice %530 {offsets = [0, 64], sizes = [2, 32], strides = [1, 1]} : vector<2x128xf32> to vector<2x32xf32>
    %544 = math.tanh %543 : vector<2x32xf32>
    %545 = vector.extract_strided_slice %530 {offsets = [0, 96], sizes = [2, 32], strides = [1, 1]} : vector<2x128xf32> to vector<2x32xf32>
    %546 = arith.negf %545 : vector<2x32xf32>
    %547 = math.exp %546 : vector<2x32xf32>
    %cst_176 = arith.constant 1.000000e+00 : f32
    %548 = vector.broadcast %cst_176 : f32 to vector<2x32xf32>
    %549 = arith.addf %548, %547 : vector<2x32xf32>
    %550 = arith.divf %548, %549 : vector<2x32xf32>
    %551 = arith.mulf %542, %524 : vector<2x32xf32>
    %552 = arith.mulf %536, %544 : vector<2x32xf32>
    %553 = arith.addf %551, %552 : vector<2x32xf32>
    %554 = math.tanh %553 : vector<2x32xf32>
    %555 = arith.mulf %550, %554 : vector<2x32xf32>
    %c10_177 = arith.constant 10 : index
    %c0_178 = arith.constant 0 : index
    %556 = vector.load %arg21[%c10_177, %c0_178] : memref<16x32xf32, #tpu.memory_space<vmem>>, vector<2x32xf32>
    tpu.vector_store %arg21[%c10_177, %c0_178], %555 {strides = array<i32>} : memref<16x32xf32, #tpu.memory_space<vmem>>, vector<2x32xf32>,
    %557 = vector.extract_strided_slice %376 {offsets = [12, 0], sizes = [2, 128], strides = [1, 1]} : vector<16x128xf32> to vector<2x128xf32>
    %cst_179 = arith.constant dense<0.000000e+00> : vector<2x128xf32>
    %558 = tpu.matmul %555, %378, %cst_179 {dimension_numbers = #tpu.dot_dimension_numbers<[1], [0], [0], [1], [0, 0, 1, 1], [], []>} : vector<2x32xf32>, vector<32x128xf32>, vector<2x128xf32> -> vector<2x128xf32>
    %559 = arith.addf %557, %558 : vector<2x128xf32>
    %560 = vector.extract_strided_slice %559 {offsets = [0, 0], sizes = [2, 32], strides = [1, 1]} : vector<2x128xf32> to vector<2x32xf32>
    %561 = arith.negf %560 : vector<2x32xf32>
    %562 = math.exp %561 : vector<2x32xf32>
    %cst_180 = arith.constant 1.000000e+00 : f32
    %563 = vector.broadcast %cst_180 : f32 to vector<2x32xf32>
    %564 = arith.addf %563, %562 : vector<2x32xf32>
    %565 = arith.divf %563, %564 : vector<2x32xf32>
    %566 = vector.extract_strided_slice %559 {offsets = [0, 32], sizes = [2, 32], strides = [1, 1]} : vector<2x128xf32> to vector<2x32xf32>
    %567 = arith.negf %566 : vector<2x32xf32>
    %568 = math.exp %567 : vector<2x32xf32>
    %cst_181 = arith.constant 1.000000e+00 : f32
    %569 = vector.broadcast %cst_181 : f32 to vector<2x32xf32>
    %570 = arith.addf %569, %568 : vector<2x32xf32>
    %571 = arith.divf %569, %570 : vector<2x32xf32>
    %572 = vector.extract_strided_slice %559 {offsets = [0, 64], sizes = [2, 32], strides = [1, 1]} : vector<2x128xf32> to vector<2x32xf32>
    %573 = math.tanh %572 : vector<2x32xf32>
    %574 = vector.extract_strided_slice %559 {offsets = [0, 96], sizes = [2, 32], strides = [1, 1]} : vector<2x128xf32> to vector<2x32xf32>
    %575 = arith.negf %574 : vector<2x32xf32>
    %576 = math.exp %575 : vector<2x32xf32>
    %cst_182 = arith.constant 1.000000e+00 : f32
    %577 = vector.broadcast %cst_182 : f32 to vector<2x32xf32>
    %578 = arith.addf %577, %576 : vector<2x32xf32>
    %579 = arith.divf %577, %578 : vector<2x32xf32>
    %580 = arith.mulf %571, %553 : vector<2x32xf32>
    %581 = arith.mulf %565, %573 : vector<2x32xf32>
    %582 = arith.addf %580, %581 : vector<2x32xf32>
    %583 = math.tanh %582 : vector<2x32xf32>
    %584 = arith.mulf %579, %583 : vector<2x32xf32>
    %c12_183 = arith.constant 12 : index
    %c0_184 = arith.constant 0 : index
    %585 = vector.load %arg21[%c12_183, %c0_184] : memref<16x32xf32, #tpu.memory_space<vmem>>, vector<2x32xf32>
    tpu.vector_store %arg21[%c12_183, %c0_184], %584 {strides = array<i32>} : memref<16x32xf32, #tpu.memory_space<vmem>>, vector<2x32xf32>,
    %586 = vector.extract_strided_slice %376 {offsets = [14, 0], sizes = [2, 128], strides = [1, 1]} : vector<16x128xf32> to vector<2x128xf32>
    %cst_185 = arith.constant dense<0.000000e+00> : vector<2x128xf32>
    %587 = tpu.matmul %584, %378, %cst_185 {dimension_numbers = #tpu.dot_dimension_numbers<[1], [0], [0], [1], [0, 0, 1, 1], [], []>} : vector<2x32xf32>, vector<32x128xf32>, vector<2x128xf32> -> vector<2x128xf32>
    %588 = arith.addf %586, %587 : vector<2x128xf32>
    %589 = vector.extract_strided_slice %588 {offsets = [0, 0], sizes = [2, 32], strides = [1, 1]} : vector<2x128xf32> to vector<2x32xf32>
    %590 = arith.negf %589 : vector<2x32xf32>
    %591 = math.exp %590 : vector<2x32xf32>
    %cst_186 = arith.constant 1.000000e+00 : f32
    %592 = vector.broadcast %cst_186 : f32 to vector<2x32xf32>
    %593 = arith.addf %592, %591 : vector<2x32xf32>
    %594 = arith.divf %592, %593 : vector<2x32xf32>
    %595 = vector.extract_strided_slice %588 {offsets = [0, 32], sizes = [2, 32], strides = [1, 1]} : vector<2x128xf32> to vector<2x32xf32>
    %596 = arith.negf %595 : vector<2x32xf32>
    %597 = math.exp %596 : vector<2x32xf32>
    %cst_187 = arith.constant 1.000000e+00 : f32
    %598 = vector.broadcast %cst_187 : f32 to vector<2x32xf32>
    %599 = arith.addf %598, %597 : vector<2x32xf32>
    %600 = arith.divf %598, %599 : vector<2x32xf32>
    %601 = vector.extract_strided_slice %588 {offsets = [0, 64], sizes = [2, 32], strides = [1, 1]} : vector<2x128xf32> to vector<2x32xf32>
    %602 = math.tanh %601 : vector<2x32xf32>
    %603 = vector.extract_strided_slice %588 {offsets = [0, 96], sizes = [2, 32], strides = [1, 1]} : vector<2x128xf32> to vector<2x32xf32>
    %604 = arith.negf %603 : vector<2x32xf32>
    %605 = math.exp %604 : vector<2x32xf32>
    %cst_188 = arith.constant 1.000000e+00 : f32
    %606 = vector.broadcast %cst_188 : f32 to vector<2x32xf32>
    %607 = arith.addf %606, %605 : vector<2x32xf32>
    %608 = arith.divf %606, %607 : vector<2x32xf32>
    %609 = arith.mulf %600, %582 : vector<2x32xf32>
    %610 = arith.mulf %594, %602 : vector<2x32xf32>
    %611 = arith.addf %609, %610 : vector<2x32xf32>
    %612 = math.tanh %611 : vector<2x32xf32>
    %613 = arith.mulf %608, %612 : vector<2x32xf32>
    %c14_189 = arith.constant 14 : index
    %c0_190 = arith.constant 0 : index
    %614 = vector.load %arg21[%c14_189, %c0_190] : memref<16x32xf32, #tpu.memory_space<vmem>>, vector<2x32xf32>
    tpu.vector_store %arg21[%c14_189, %c0_190], %613 {strides = array<i32>} : memref<16x32xf32, #tpu.memory_space<vmem>>, vector<2x32xf32>,
    %c1_191 = arith.constant 1 : index
    %c0_192 = arith.constant 0 : index
    %c0_193 = arith.constant 0 : index
    %615 = vector.load %arg19[%c1_191, %c0_192, %c0_193] : memref<2x2x32xf32, #tpu.memory_space<vmem>>, vector<1x2x32xf32>
    %616 = vector.shape_cast %615 : vector<1x2x32xf32> to vector<2x32xf32>
    %617 = vector.shape_cast %613 : vector<2x32xf32> to vector<1x2x32xf32>
    tpu.vector_store %arg19[%c1_191, %c0_192, %c0_193], %617 {strides = array<i32>} : memref<2x2x32xf32, #tpu.memory_space<vmem>>, vector<1x2x32xf32>,
    %c1_194 = arith.constant 1 : index
    %c0_195 = arith.constant 0 : index
    %c0_196 = arith.constant 0 : index
    %618 = vector.load %arg20[%c1_194, %c0_195, %c0_196] : memref<2x2x32xf32, #tpu.memory_space<vmem>>, vector<1x2x32xf32>
    %619 = vector.shape_cast %618 : vector<1x2x32xf32> to vector<2x32xf32>
    %620 = vector.shape_cast %611 : vector<2x32xf32> to vector<1x2x32xf32>
    tpu.vector_store %arg20[%c1_194, %c0_195, %c0_196], %620 {strides = array<i32>} : memref<2x2x32xf32, #tpu.memory_space<vmem>>, vector<1x2x32xf32>,
    %c0_197 = arith.constant 0 : index
    %c0_198 = arith.constant 0 : index
    %621 = vector.load %arg21[%c0_197, %c0_198] : memref<16x32xf32, #tpu.memory_space<vmem>>, vector<16x32xf32>
    %c1_199 = arith.constant 1 : index
    %c0_200 = arith.constant 0 : index
    %c0_201 = arith.constant 0 : index
    %622 = vector.load %arg10[%c1_199, %c0_200, %c0_201] : memref<2x32x32xf32, #tpu.memory_space<vmem>>, vector<1x32x32xf32>
    %623 = vector.shape_cast %622 : vector<1x32x32xf32> to vector<32x32xf32>
    %cst_202 = arith.constant dense<0.000000e+00> : vector<16x32xf32>
    %624 = tpu.matmul %621, %623, %cst_202 {dimension_numbers = #tpu.dot_dimension_numbers<[1], [0], [0], [1], [0, 0, 1, 1], [], []>} : vector<16x32xf32>, vector<32x32xf32>, vector<16x32xf32> -> vector<16x32xf32>
    %c1_203 = arith.constant 1 : index
    %c0_204 = arith.constant 0 : index
    %c0_205 = arith.constant 0 : index
    %625 = vector.load %arg11[%c1_203, %c0_204, %c0_205] : memref<2x1x32xf32, #tpu.memory_space<vmem>>, vector<1x1x32xf32>
    %626 = vector.shape_cast %625 : vector<1x1x32xf32> to vector<1x32xf32>
    %627 = vector.broadcast %626 : vector<1x32xf32> to vector<16x32xf32>
    %628 = arith.addf %624, %627 : vector<16x32xf32>
    %629 = arith.addf %628, %339 : vector<16x32xf32>
    %c1_206 = arith.constant 1 : index
    %c0_207 = arith.constant 0 : index
    %c0_208 = arith.constant 0 : index
    %630 = vector.load %arg12[%c1_206, %c0_207, %c0_208] : memref<2x1x32xf32, #tpu.memory_space<vmem>>, vector<1x1x32xf32>
    %631 = vector.shape_cast %630 : vector<1x1x32xf32> to vector<1x32xf32>
    %c1_209 = arith.constant 1 : index
    %c0_210 = arith.constant 0 : index
    %c0_211 = arith.constant 0 : index
    %632 = vector.load %arg13[%c1_209, %c0_210, %c0_211] : memref<2x1x32xf32, #tpu.memory_space<vmem>>, vector<1x1x32xf32>
    %633 = vector.shape_cast %632 : vector<1x1x32xf32> to vector<1x32xf32>
    %cst_212 = arith.constant dense<0.000000e+00> : vector<16xf32>
    %634 = vector.multi_reduction <add>, %629, %cst_212 [1] : vector<16x32xf32> to vector<16xf32>
    %635 = vector.shape_cast %634 : vector<16xf32> to vector<16x1xf32>
    %cst_213 = arith.constant 3.200000e+01 : f32
    %636 = vector.broadcast %cst_213 : f32 to vector<16x1xf32>
    %637 = arith.divf %635, %636 : vector<16x1xf32>
    %638 = vector.broadcast %637 : vector<16x1xf32> to vector<16x32xf32>
    %639 = arith.subf %629, %638 : vector<16x32xf32>
    %640 = arith.mulf %639, %639 : vector<16x32xf32>
    %cst_214 = arith.constant dense<0.000000e+00> : vector<16xf32>
    %641 = vector.multi_reduction <add>, %640, %cst_214 [1] : vector<16x32xf32> to vector<16xf32>
    %642 = vector.shape_cast %641 : vector<16xf32> to vector<16x1xf32>
    %cst_215 = arith.constant 3.200000e+01 : f32
    %643 = vector.broadcast %cst_215 : f32 to vector<16x1xf32>
    %644 = arith.divf %642, %643 : vector<16x1xf32>
    %645 = vector.broadcast %637 : vector<16x1xf32> to vector<16x32xf32>
    %646 = arith.subf %629, %645 : vector<16x32xf32>
    %cst_216 = arith.constant 9.99999974E-6 : f32
    %647 = vector.broadcast %cst_216 : f32 to vector<16x1xf32>
    %648 = arith.addf %644, %647 : vector<16x1xf32>
    %649 = math.rsqrt %648 : vector<16x1xf32>
    %650 = vector.broadcast %649 : vector<16x1xf32> to vector<16x32xf32>
    %651 = arith.mulf %646, %650 : vector<16x32xf32>
    %652 = vector.broadcast %631 : vector<1x32xf32> to vector<16x32xf32>
    %653 = arith.mulf %651, %652 : vector<16x32xf32>
    %654 = vector.broadcast %633 : vector<1x32xf32> to vector<16x32xf32>
    %655 = arith.addf %653, %654 : vector<16x32xf32>
    %c1_217 = arith.constant 1 : index
    %c0_218 = arith.constant 0 : index
    %c0_219 = arith.constant 0 : index
    %656 = vector.load %arg14[%c1_217, %c0_218, %c0_219] : memref<2x32x64xf32, #tpu.memory_space<vmem>>, vector<1x32x64xf32>
    %657 = vector.shape_cast %656 : vector<1x32x64xf32> to vector<32x64xf32>
    %cst_220 = arith.constant dense<0.000000e+00> : vector<16x64xf32>
    %658 = tpu.matmul %655, %657, %cst_220 {dimension_numbers = #tpu.dot_dimension_numbers<[1], [0], [0], [1], [0, 0, 1, 1], [], []>} : vector<16x32xf32>, vector<32x64xf32>, vector<16x64xf32> -> vector<16x64xf32>
    %c1_221 = arith.constant 1 : index
    %c0_222 = arith.constant 0 : index
    %c0_223 = arith.constant 0 : index
    %659 = vector.load %arg15[%c1_221, %c0_222, %c0_223] : memref<2x1x64xf32, #tpu.memory_space<vmem>>, vector<1x1x64xf32>
    %660 = vector.shape_cast %659 : vector<1x1x64xf32> to vector<1x64xf32>
    %661 = vector.broadcast %660 : vector<1x64xf32> to vector<16x64xf32>
    %662 = arith.addf %658, %661 : vector<16x64xf32>
    %cst_224 = arith.constant 5.000000e-01 : f32
    %663 = vector.broadcast %cst_224 : f32 to vector<16x64xf32>
    %664 = arith.mulf %663, %662 : vector<16x64xf32>
    %cst_225 = arith.constant 0.707106769 : f32
    %665 = vector.broadcast %cst_225 : f32 to vector<16x64xf32>
    %666 = arith.mulf %662, %665 : vector<16x64xf32>
    %667 = math.erf %666 : vector<16x64xf32>
    %cst_226 = arith.constant 1.000000e+00 : f32
    %668 = vector.broadcast %cst_226 : f32 to vector<16x64xf32>
    %669 = arith.addf %668, %667 : vector<16x64xf32>
    %670 = arith.mulf %664, %669 : vector<16x64xf32>
    %c1_227 = arith.constant 1 : index
    %c0_228 = arith.constant 0 : index
    %c0_229 = arith.constant 0 : index
    %671 = vector.load %arg16[%c1_227, %c0_228, %c0_229] : memref<2x64x32xf32, #tpu.memory_space<vmem>>, vector<1x64x32xf32>
    %672 = vector.shape_cast %671 : vector<1x64x32xf32> to vector<64x32xf32>
    %cst_230 = arith.constant dense<0.000000e+00> : vector<16x32xf32>
    %673 = tpu.matmul %670, %672, %cst_230 {dimension_numbers = #tpu.dot_dimension_numbers<[1], [0], [0], [1], [0, 0, 1, 1], [], []>} : vector<16x64xf32>, vector<64x32xf32>, vector<16x32xf32> -> vector<16x32xf32>
    %c1_231 = arith.constant 1 : index
    %c0_232 = arith.constant 0 : index
    %c0_233 = arith.constant 0 : index
    %674 = vector.load %arg17[%c1_231, %c0_232, %c0_233] : memref<2x1x32xf32, #tpu.memory_space<vmem>>, vector<1x1x32xf32>
    %675 = vector.shape_cast %674 : vector<1x1x32xf32> to vector<1x32xf32>
    %676 = vector.broadcast %675 : vector<1x32xf32> to vector<16x32xf32>
    %677 = arith.addf %673, %676 : vector<16x32xf32>
    %678 = arith.addf %629, %677 : vector<16x32xf32>
    %c0_234 = arith.constant 0 : index
    %c0_235 = arith.constant 0 : index
    %679 = vector.load %arg18[%c0_234, %c0_235] : memref<16x32xf32, #tpu.memory_space<vmem>>, vector<16x32xf32>
    tpu.vector_store %arg18[%c0_234, %c0_235], %678 {strides = array<i32>} : memref<16x32xf32, #tpu.memory_space<vmem>>, vector<16x32xf32>,
    return
  }
  func.func @transform_0(%arg0: i32) -> (i32, i32) {
    %c0_i32 = arith.constant 0 : i32
    %c0_i32_0 = arith.constant 0 : i32
    %c0_i32_1 = arith.constant 0 : i32
    return %c0_i32, %c0_i32_0 : i32, i32
  }
  func.func @transform_1(%arg0: i32) -> (i32, i32, i32) {
    %c0_i32 = arith.constant 0 : i32
    %c0_i32_0 = arith.constant 0 : i32
    %c0_i32_1 = arith.constant 0 : i32
    %c0_i32_2 = arith.constant 0 : i32
    return %c0_i32, %c0_i32_0, %c0_i32_1 : i32, i32, i32
  }
  func.func @transform_2(%arg0: i32) -> (i32, i32, i32) {
    %c0_i32 = arith.constant 0 : i32
    %c0_i32_0 = arith.constant 0 : i32
    %c0_i32_1 = arith.constant 0 : i32
    %c0_i32_2 = arith.constant 0 : i32
    return %c0_i32, %c0_i32_0, %c0_i32_1 : i32, i32, i32
  }
  func.func @transform_3(%arg0: i32) -> (i32, i32, i32) {
    %c0_i32 = arith.constant 0 : i32
    %c0_i32_0 = arith.constant 0 : i32
    %c0_i32_1 = arith.constant 0 : i32
    %c0_i32_2 = arith.constant 0 : i32
    return %c0_i32, %c0_i32_0, %c0_i32_1 : i32, i32, i32
  }
  func.func @transform_4(%arg0: i32) -> (i32, i32, i32) {
    %c0_i32 = arith.constant 0 : i32
    %c0_i32_0 = arith.constant 0 : i32
    %c0_i32_1 = arith.constant 0 : i32
    %c0_i32_2 = arith.constant 0 : i32
    return %c0_i32, %c0_i32_0, %c0_i32_1 : i32, i32, i32
  }
  func.func @transform_5(%arg0: i32) -> (i32, i32, i32) {
    %c0_i32 = arith.constant 0 : i32
    %c0_i32_0 = arith.constant 0 : i32
    %c0_i32_1 = arith.constant 0 : i32
    %c0_i32_2 = arith.constant 0 : i32
    return %c0_i32, %c0_i32_0, %c0_i32_1 : i32, i32, i32
  }
  func.func @transform_6(%arg0: i32) -> (i32, i32, i32) {
    %c0_i32 = arith.constant 0 : i32
    %c0_i32_0 = arith.constant 0 : i32
    %c0_i32_1 = arith.constant 0 : i32
    %c0_i32_2 = arith.constant 0 : i32
    return %c0_i32, %c0_i32_0, %c0_i32_1 : i32, i32, i32
  }
  func.func @transform_7(%arg0: i32) -> (i32, i32, i32) {
    %c0_i32 = arith.constant 0 : i32
    %c0_i32_0 = arith.constant 0 : i32
    %c0_i32_1 = arith.constant 0 : i32
    %c0_i32_2 = arith.constant 0 : i32
    return %c0_i32, %c0_i32_0, %c0_i32_1 : i32, i32, i32
  }
  func.func @transform_8(%arg0: i32) -> (i32, i32, i32) {
    %c0_i32 = arith.constant 0 : i32
    %c0_i32_0 = arith.constant 0 : i32
    %c0_i32_1 = arith.constant 0 : i32
    %c0_i32_2 = arith.constant 0 : i32
    return %c0_i32, %c0_i32_0, %c0_i32_1 : i32, i32, i32
  }
  func.func @transform_9(%arg0: i32) -> (i32, i32, i32) {
    %c0_i32 = arith.constant 0 : i32
    %c0_i32_0 = arith.constant 0 : i32
    %c0_i32_1 = arith.constant 0 : i32
    %c0_i32_2 = arith.constant 0 : i32
    return %c0_i32, %c0_i32_0, %c0_i32_1 : i32, i32, i32
  }
  func.func @transform_10(%arg0: i32) -> (i32, i32, i32) {
    %c0_i32 = arith.constant 0 : i32
    %c0_i32_0 = arith.constant 0 : i32
    %c0_i32_1 = arith.constant 0 : i32
    %c0_i32_2 = arith.constant 0 : i32
    return %c0_i32, %c0_i32_0, %c0_i32_1 : i32, i32, i32
  }
  func.func @transform_11(%arg0: i32) -> (i32, i32, i32) {
    %c0_i32 = arith.constant 0 : i32
    %c0_i32_0 = arith.constant 0 : i32
    %c0_i32_1 = arith.constant 0 : i32
    %c0_i32_2 = arith.constant 0 : i32
    return %c0_i32, %c0_i32_0, %c0_i32_1 : i32, i32, i32
  }
  func.func @transform_12(%arg0: i32) -> (i32, i32, i32) {
    %c0_i32 = arith.constant 0 : i32
    %c0_i32_0 = arith.constant 0 : i32
    %c0_i32_1 = arith.constant 0 : i32
    %c0_i32_2 = arith.constant 0 : i32
    return %c0_i32, %c0_i32_0, %c0_i32_1 : i32, i32, i32
  }
  func.func @transform_13(%arg0: i32) -> (i32, i32, i32) {
    %c0_i32 = arith.constant 0 : i32
    %c0_i32_0 = arith.constant 0 : i32
    %c0_i32_1 = arith.constant 0 : i32
    %c0_i32_2 = arith.constant 0 : i32
    return %c0_i32, %c0_i32_0, %c0_i32_1 : i32, i32, i32
  }
  func.func @transform_14(%arg0: i32) -> (i32, i32, i32) {
    %c0_i32 = arith.constant 0 : i32
    %c0_i32_0 = arith.constant 0 : i32
    %c0_i32_1 = arith.constant 0 : i32
    %c0_i32_2 = arith.constant 0 : i32
    return %c0_i32, %c0_i32_0, %c0_i32_1 : i32, i32, i32
  }
  func.func @transform_15(%arg0: i32) -> (i32, i32, i32) {
    %c0_i32 = arith.constant 0 : i32
    %c0_i32_0 = arith.constant 0 : i32
    %c0_i32_1 = arith.constant 0 : i32
    %c0_i32_2 = arith.constant 0 : i32
    return %c0_i32, %c0_i32_0, %c0_i32_1 : i32, i32, i32
  }
  func.func @transform_16(%arg0: i32) -> (i32, i32, i32) {
    %c0_i32 = arith.constant 0 : i32
    %c0_i32_0 = arith.constant 0 : i32
    %c0_i32_1 = arith.constant 0 : i32
    %c0_i32_2 = arith.constant 0 : i32
    return %c0_i32, %c0_i32_0, %c0_i32_1 : i32, i32, i32
  }
  func.func @transform_17(%arg0: i32) -> (i32, i32) {
    %c0_i32 = arith.constant 0 : i32
    %c0_i32_0 = arith.constant 0 : i32
    %c0_i32_1 = arith.constant 0 : i32
    return %c0_i32, %c0_i32_0 : i32, i32
  }
  func.func @transform_18(%arg0: i32) -> (i32, i32, i32) {
    %c0_i32 = arith.constant 0 : i32
    %c0_i32_0 = arith.constant 0 : i32
    %c0_i32_1 = arith.constant 0 : i32
    %c0_i32_2 = arith.constant 0 : i32
    return %c0_i32, %c0_i32_0, %c0_i32_1 : i32, i32, i32
  }
  func.func @transform_19(%arg0: i32) -> (i32, i32, i32) {
    %c0_i32 = arith.constant 0 : i32
    %c0_i32_0 = arith.constant 0 : i32
    %c0_i32_1 = arith.constant 0 : i32
    %c0_i32_2 = arith.constant 0 : i32
    return %c0_i32, %c0_i32_0, %c0_i32_1 : i32, i32, i32
  }
}

</mosaic_0001>

<llo_original>
// kernel: tpu_custom_call.1
$region0: #{tpu_custom_call.1}
  #allocation0 [shape = 'u32[]', space=smem, size = 0x4, offset = 0x4, fixed_abs, tag = 'smem constant byte address 0x4 - core index']
  #allocation1 [shape = 'u32[144,128]{1,0:T(1,128)}', space=vmem, size = 0x12000, scoped, tag = 'internal scratch']
  #allocation2 [shape = 'f32[16,32]{1,0:T(8,128)}', space=vmem, size = 0x2000, scoped, tag = 'scratch operand']
  %s0 = inlined_call_operand.hbm [shape: f32[16,32], index: 0, kind: input, shape index: {}]
  %s1 = inlined_call_operand.hbm [shape: f32[2,2,32], index: 1, kind: input, shape index: {}]
  %s2 = inlined_call_operand.hbm [shape: f32[2,2,32], index: 2, kind: input, shape index: {}]
  %s3 = inlined_call_operand.vmem [shape: f32[2,1,32], index: 3, kind: input, shape index: {}]
  %s4 = inlined_call_operand.vmem [shape: f32[2,1,32], index: 4, kind: input, shape index: {}]
  %s5 = inlined_call_operand.vmem [shape: f32[2,32,128], index: 5, kind: input, shape index: {}]
  %s6 = inlined_call_operand.vmem [shape: f32[2,1,128], index: 6, kind: input, shape index: {}]
  %s7 = inlined_call_operand.vmem [shape: f32[2,32,128], index: 7, kind: input, shape index: {}]
  %s8 = inlined_call_operand.vmem [shape: f32[2,1,128], index: 8, kind: input, shape index: {}]
  %s9 = inlined_call_operand.vmem [shape: f32[2,32,32], index: 9, kind: input, shape index: {}]
  %s10 = inlined_call_operand.vmem [shape: f32[2,1,32], index: 10, kind: input, shape index: {}]
  %s11 = inlined_call_operand.vmem [shape: f32[2,1,32], index: 11, kind: input, shape index: {}]
  %s12 = inlined_call_operand.vmem [shape: f32[2,1,32], index: 12, kind: input, shape index: {}]
  %s13 = inlined_call_operand.hbm [shape: f32[2,32,64], index: 13, kind: input, shape index: {}]
  %s14 = inlined_call_operand.vmem [shape: f32[2,1,64], index: 14, kind: input, shape index: {}]
  %s15 = inlined_call_operand.vmem [shape: f32[2,64,32], index: 15, kind: input, shape index: {}]
  %s16 = inlined_call_operand.vmem [shape: f32[2,1,32], index: 16, kind: input, shape index: {}]
  %s17 = inlined_call_operand.hbm [shape: f32[16,32], index: 17, kind: output, shape index: {0}]
  %s18 = inlined_call_operand.hbm [shape: f32[2,2,32], index: 18, kind: output, shape index: {1}]
  %s19 = inlined_call_operand.hbm [shape: f32[2,2,32], index: 19, kind: output, shape index: {2}]
  %20 = xla_tuple %s17, %s18, %s19
  %s21 = sld [smem:[#allocation0]]
  $region110: #{tpu_custom_call.1} parent=0
    _
  %s23 = ssub.s32 1, %s21
  %s24 = scalar_select 0, %s23, %s21
  $region1: #{tpu_custom_call.1} parent=0
    #allocation3 [shape = 'u8[8192]{0}', space=vmem, size = 0x2000, scoped, tag = 'input window, operand 0, single buffered']
    #allocation4 [shape = 's32[1]{0}', space=sflag, size = 0x4, scoped, tag = 'scoped memory for tpu_custom_call.1']
    #allocation5 [shape = 's32[1]{0}', space=sflag, size = 0x4, scoped, tag = 'scoped memory for tpu_custom_call.1']
    #allocation6 [shape = 'u8[2048]{0}', space=vmem, size = 0x800, scoped, tag = 'input window, operand 1, single buffered']
    #allocation7 [shape = 's32[1]{0}', space=sflag, size = 0x4, scoped, tag = 'scoped memory for tpu_custom_call.1']
    #allocation8 [shape = 'u8[2048]{0}', space=vmem, size = 0x800, scoped, tag = 'input window, operand 2, single buffered']
    #allocation9 [shape = 'u8[32768]{0}', space=vmem, size = 0x8000, scoped, tag = 'input window, operand 13, single buffered']
    #allocation10 [shape = 's32[1]{0}', space=sflag, size = 0x4, scoped, tag = 'scoped memory for tpu_custom_call.1']
    #allocation11 [shape = 'u8[8192]{0}', space=vmem, size = 0x2000, scoped, tag = 'output window, operand 0, single buffered']
    #allocation12 [shape = 'u8[2048]{0}', space=vmem, size = 0x800, scoped, tag = 'output window, operand 1, single buffered']
    #allocation13 [shape = 's32[1]{0}', space=sflag, size = 0x4, scoped, tag = 'scoped memory for tpu_custom_call.1']
    #allocation14 [shape = 'u8[2048]{0}', space=vmem, size = 0x800, scoped, tag = 'output window, operand 2, single buffered']
    %25 = vsyncpa [#allocation4], 0
    %26 = vsyncpa [#allocation7], 0
    %27 = vsyncpa [#allocation10], 0
    %28 = vsyncpa [#allocation5], 0
    %29 = vsyncpa [#allocation13], 0
    // Predicated region
    $region2: #{tpu_custom_call.1} parent=1 // pred_check
      _
    $region3: #{tpu_custom_call.1} parent=1 // pred_check_branch
      %31 = sbr.rel (0) target = $region5
    $region4: #{tpu_custom_call.1} parent=1 // pred_region
      %s33 = ssub.s32 256, 256
      %34 = vsyncadd [#allocation4], %s33
      %s35 = sshll.u32 [#allocation3], 4
      %s36 = int_to_ptr.vmem [resolvable:$true] %s35
      %41 = dma.hbm_to_vmem [thread:$0]  %s0, 256, %s36, [#allocation4], 128, 128, 8
    $region5: #{tpu_custom_call.1} parent=1 // pred_fallthru
      _
    // Predicated region
    $region6: #{tpu_custom_call.1} parent=1 // pred_check
      _
    $region7: #{tpu_custom_call.1} parent=1 // pred_check_branch
      %43 = sbr.rel (0) target = $region9
    $region8: #{tpu_custom_call.1} parent=1 // pred_region
      %s45 = ssub.s32 64, 64
      %46 = vsyncadd [#allocation7], %s45
      %s47 = sshll.u32 [#allocation6], 4
      %s48 = int_to_ptr.vmem [resolvable:$true] %s47
      %53 = dma.hbm_to_vmem [thread:$0]  %s1, 64, %s48, [#allocation7], 32, 32, 2
    $region9: #{tpu_custom_call.1} parent=1 // pred_fallthru
      _
    // Predicated region
    $region10: #{tpu_custom_call.1} parent=1 // pred_check
      _
    $region11: #{tpu_custom_call.1} parent=1 // pred_check_branch
      %55 = sbr.rel (0) target = $region13
    $region12: #{tpu_custom_call.1} parent=1 // pred_region
      %s57 = ssub.s32 64, 64
      %58 = vsyncadd [#allocation7], %s57
      %s59 = sshll.u32 [#allocation8], 4
      %s60 = int_to_ptr.vmem [resolvable:$true] %s59
      %65 = dma.hbm_to_vmem [thread:$0]  %s2, 64, %s60, [#allocation7], 32, 32, 2
    $region13: #{tpu_custom_call.1} parent=1 // pred_fallthru
      _
    // Predicated region
    $region14: #{tpu_custom_call.1} parent=1 // pred_check
      _
    $region15: #{tpu_custom_call.1} parent=1 // pred_check_branch
      %67 = sbr.rel (0) target = $region17
    $region16: #{tpu_custom_call.1} parent=1 // pred_region
      _
    $region17: #{tpu_custom_call.1} parent=1 // pred_fallthru
      _
    // Predicated region
    $region18: #{tpu_custom_call.1} parent=1 // pred_check
      _
    $region19: #{tpu_custom_call.1} parent=1 // pred_check_branch
      %69 = sbr.rel (0) target = $region21
    $region20: #{tpu_custom_call.1} parent=1 // pred_region
      _
    $region21: #{tpu_custom_call.1} parent=1 // pred_fallthru
      _
    // Predicated region
    $region22: #{tpu_custom_call.1} parent=1 // pred_check
      _
    $region23: #{tpu_custom_call.1} parent=1 // pred_check_branch
      %71 = sbr.rel (0) target = $region25
    $region24: #{tpu_custom_call.1} parent=1 // pred_region
      _
    $region25: #{tpu_custom_call.1} parent=1 // pred_fallthru
      _
    // Predicated region
    $region26: #{tpu_custom_call.1} parent=1 // pred_check
      _
    $region27: #{tpu_custom_call.1} parent=1 // pred_check_branch
      %73 = sbr.rel (0) target = $region29
    $region28: #{tpu_custom_call.1} parent=1 // pred_region
      _
    $region29: #{tpu_custom_call.1} parent=1 // pred_fallthru
      _
    // Predicated region
    $region30: #{tpu_custom_call.1} parent=1 // pred_check
      _
    $region31: #{tpu_custom_call.1} parent=1 // pred_check_branch
      %75 = sbr.rel (0) target = $region33
    $region32: #{tpu_custom_call.1} parent=1 // pred_region
      _
    $region33: #{tpu_custom_call.1} parent=1 // pred_fallthru
      _
    // Predicated region
    $region34: #{tpu_custom_call.1} parent=1 // pred_check
      _
    $region35: #{tpu_custom_call.1} parent=1 // pred_check_branch
      %77 = sbr.rel (0) target = $region37
    $region36: #{tpu_custom_call.1} parent=1 // pred_region
      _
    $region37: #{tpu_custom_call.1} parent=1 // pred_fallthru
      _
    // Predicated region
    $region38: #{tpu_custom_call.1} parent=1 // pred_check
      _
    $region39: #{tpu_custom_call.1} parent=1 // pred_check_branch
      %79 = sbr.rel (0) target = $region41
    $region40: #{tpu_custom_call.1} parent=1 // pred_region
      _
    $region41: #{tpu_custom_call.1} parent=1 // pred_fallthru
      _
    // Predicated region
    $region42: #{tpu_custom_call.1} parent=1 // pred_check
      _
    $region43: #{tpu_custom_call.1} parent=1 // pred_check_branch
      %81 = sbr.rel (0) target = $region45
    $region44: #{tpu_custom_call.1} parent=1 // pred_region
      _
    $region45: #{tpu_custom_call.1} parent=1 // pred_fallthru
      _
    // Predicated region
    $region46: #{tpu_custom_call.1} parent=1 // pred_check
      _
    $region47: #{tpu_custom_call.1} parent=1 // pred_check_branch
      %83 = sbr.rel (0) target = $region49
    $region48: #{tpu_custom_call.1} parent=1 // pred_region
      _
    $region49: #{tpu_custom_call.1} parent=1 // pred_fallthru
      _
    // Predicated region
    $region50: #{tpu_custom_call.1} parent=1 // pred_check
      _
    $region51: #{tpu_custom_call.1} parent=1 // pred_check_branch
      %85 = sbr.rel (0) target = $region53
    $region52: #{tpu_custom_call.1} parent=1 // pred_region
      _
    $region53: #{tpu_custom_call.1} parent=1 // pred_fallthru
      _
    // Predicated region
    $region54: #{tpu_custom_call.1} parent=1 // pred_check
      _
    $region55: #{tpu_custom_call.1} parent=1 // pred_check_branch
      %87 = sbr.rel (0) target = $region57
    $region56: #{tpu_custom_call.1} parent=1 // pred_region
      %s89 = ssub.s32 1024, 1024
      %90 = vsyncadd [#allocation10], %s89
      %s91 = sshll.u32 [#allocation9], 4
      %s92 = int_to_ptr.vmem [resolvable:$true] %s91
      %97 = dma.hbm_to_vmem [thread:$0]  %s13, 1024, %s92, [#allocation10], 128, 128, 8
    $region57: #{tpu_custom_call.1} parent=1 // pred_fallthru
      _
    // Predicated region
    $region58: #{tpu_custom_call.1} parent=1 // pred_check
      _
    $region59: #{tpu_custom_call.1} parent=1 // pred_check_branch
      %99 = sbr.rel (0) target = $region61
    $region60: #{tpu_custom_call.1} parent=1 // pred_region
      _
    $region61: #{tpu_custom_call.1} parent=1 // pred_fallthru
      _
    // Predicated region
    $region62: #{tpu_custom_call.1} parent=1 // pred_check
      _
    $region63: #{tpu_custom_call.1} parent=1 // pred_check_branch
      %101 = sbr.rel (0) target = $region65
    $region64: #{tpu_custom_call.1} parent=1 // pred_region
      _
    $region65: #{tpu_custom_call.1} parent=1 // pred_fallthru
      _
    // Predicated region
    $region66: #{tpu_custom_call.1} parent=1 // pred_check
      _
    $region67: #{tpu_custom_call.1} parent=1 // pred_check_branch
      %103 = sbr.rel (0) target = $region69
    $region68: #{tpu_custom_call.1} parent=1 // pred_region
      _
    $region69: #{tpu_custom_call.1} parent=1 // pred_fallthru
      _
    // Predicated region
    $region70: #{tpu_custom_call.1} parent=1 // pred_check
      _
    $region71: #{tpu_custom_call.1} parent=1 // pred_check_branch
      %105 = sbr.rel (0) target = $region73
    $region72: #{tpu_custom_call.1} parent=1 // pred_region
      %106 = dma.done [#allocation4], 256
    $region73: #{tpu_custom_call.1} parent=1 // pred_fallthru
      _
    // Predicated region
    $region74: #{tpu_custom_call.1} parent=1 // pred_check
      _
    $region75: #{tpu_custom_call.1} parent=1 // pred_check_branch
      %108 = sbr.rel (0) target = $region77
    $region76: #{tpu_custom_call.1} parent=1 // pred_region
      %109 = dma.done [#allocation7], 64
    $region77: #{tpu_custom_call.1} parent=1 // pred_fallthru
      _
    // Predicated region
    $region78: #{tpu_custom_call.1} parent=1 // pred_check
      _
    $region79: #{tpu_custom_call.1} parent=1 // pred_check_branch
      %111 = sbr.rel (0) target = $region81
    $region80: #{tpu_custom_call.1} parent=1 // pred_region
      %112 = dma.done [#allocation7], 64
    $region81: #{tpu_custom_call.1} parent=1 // pred_fallthru
      _
    // Predicated region
    $region82: #{tpu_custom_call.1} parent=1 // pred_check
      _
    $region83: #{tpu_custom_call.1} parent=1 // pred_check_branch
      %114 = sbr.rel (0) target = $region85
    $region84: #{tpu_custom_call.1} parent=1 // pred_region
      %115 = dma.done [#allocation10], 1024
    $region85: #{tpu_custom_call.1} parent=1 // pred_fallthru
      _
    %v116 = vld [vmem:[#allocation3] sm:$0xff]
    %v117 = vld [vmem:[#allocation3 + $0x8] sm:$0xff]
    %v118 = vld [vmem:[%s3] sm:$0x1]
    %v119 = vld [vmem:[%s4] sm:$0x1]
    %vm120 = vcmask 261120
    %v121 = vsel %vm120, %v116, 0.0
    %122 = vadd.xlane.f32.xlu0 %v121
    %v123 = vpop.xlane.xlu0 %122
    %v124 = vsel %vm120, %v117, 0.0
    %125 = vadd.xlane.f32.xlu0 %v124
    %v126 = vpop.xlane.xlu0 %125
    %v127 = vrcp.pop 32.0
    %v128 = vmul.f32 %v123, %v127
    %v129 = vmul.f32 %v126, %v127
    %v130 = vsub.f32 %v116, %v128
    %v131 = vsub.f32 %v117, %v129
    %v132 = vmul.f32 %v130, %v130
    %v133 = vmul.f32 %v131, %v131
    %v134 = vsel %vm120, %v132, 0.0
    %135 = vadd.xlane.f32.xlu0 %v134
    %v136 = vpop.xlane.xlu0 %135
    %v137 = vsel %vm120, %v133, 0.0
    %138 = vadd.xlane.f32.xlu0 %v137
    %v139 = vpop.xlane.xlu0 %138
    %v140 = vmul.f32 %v136, %v127
    %v141 = vmul.f32 %v139, %v127
    %v142 = vadd.f32 %v140, 1e-05
    %v143 = vadd.f32 %v141, 1e-05
    %v144 = vrsqrt.pop %v142
    %v145 = vrsqrt.pop %v143
    %v146 = vmul.f32 %v130, %v144
    %v147 = vmul.f32 %v131, %v145
    %v149 = vlaneseq
    %v150 = vshrl.u32 %v149, 7
    %v151 = vsub.s32 0, %v150
    %v152 = vrot.slane %v118, %v151
    %v154 = vmul.f32 %v146, %v152
    %v155 = vmul.f32 %v147, %v152
    %v157 = vlaneseq
    %v158 = vshrl.u32 %v157, 7
    %v159 = vsub.s32 0, %v158
    %v160 = vrot.slane %v119, %v159
    %v162 = vadd.f32 %v154, %v160
    %v163 = vadd.f32 %v155, %v160
    %v164 = vld [vmem:[%s5] sm:$0xff]
    %v165 = vld [vmem:[%s5 + $0x8] sm:$0xff]
    %v166 = vld [vmem:[%s5 + $0x10] sm:$0xff]
    %v167 = vld [vmem:[%s5 + $0x18] sm:$0xff]
    %v168 = vld [vmem:[%s6] sm:$0x1]
    %v170 = vlaneseq
    %v171 = vshrl.u32 %v170, 7
    %v172 = vsub.s32 0, %v171
    %v173 = vrot.slane %v168, %v172
    %v176 = vsel %vm120, %v162, 0
    %v179 = vsel %vm120, %v163, 0
    %181 = vmatprep.subr.mxu0 0.0
    %182 = vmatpush1.msra.mxu0 0.0
    %183 = vmatprep.subr.mxu0 0.0
    %184 = vmatpush1.msra.mxu0 0.0
    %185 = vmatprep.subr.mxu0 0.0
    %186 = vmatpush1.msra.mxu0 0.0
    %187 = vmatprep.subr.mxu0 0.0
    %188 = vmatpush1.msra.mxu0 0.0
    %189 = vmatprep.subr.mxu0 0.0
    %190 = vmatpush1.msra.mxu0 0.0
    %191 = vmatprep.subr.mxu0 0.0
    %192 = vmatpush1.msra.mxu0 0.0
    %193 = vmatprep.subr.mxu0 0.0
    %194 = vmatpush1.msra.mxu0 0.0
    %195 = vmatprep.subr.mxu0 0.0
    %196 = vmatpush1.msra.mxu0 0.0
    %197 = vmatprep.subr.mxu0 0.0
    %198 = vmatpush1.msra.mxu0 0.0
    %199 = vmatprep.subr.mxu0 0.0
    %200 = vmatpush1.msra.mxu0 0.0
    %201 = vmatprep.subr.mxu0 0.0
    %202 = vmatpush1.msra.mxu0 0.0
    %203 = vmatprep.subr.mxu0 0.0
    %204 = vmatpush1.msra.mxu0 0.0
    %205 = vmatprep.subr.mxu0 0.0
    %206 = vmatpush1.msra.mxu0 %v167
    %207 = vmatprep.subr.mxu0 0.0
    %208 = vmatpush1.msra.mxu0 %v166
    %209 = vmatprep.subr.mxu0 0.0
    %210 = vmatpush1.msra.mxu0 %v165
    %211 = vmatprep.subr.mxu0 0.0
    %212 = vmatpush1.msra.mxu0 %v164
    %213 = vmatprep.subr.mxu0 0.0
    %214 = vmatpush2.msra.mxu0 0.0
    %215 = vmatprep.subr.mxu0 0.0
    %216 = vmatpush2.msra.mxu0 0.0
    %217 = vmatprep.subr.mxu0 0.0
    %218 = vmatpush2.msra.mxu0 0.0
    %219 = vmatprep.subr.mxu0 0.0
    %220 = vmatpush2.msra.mxu0 0.0
    %221 = vmatprep.subr.mxu0 0.0
    %222 = vmatpush2.msra.mxu0 0.0
    %223 = vmatprep.subr.mxu0 0.0
    %224 = vmatpush2.msra.mxu0 0.0
    %225 = vmatprep.subr.mxu0 0.0
    %226 = vmatpush2.msra.mxu0 0.0
    %227 = vmatprep.subr.mxu0 0.0
    %228 = vmatpush2.msra.mxu0 0.0
    %229 = vmatprep.subr.mxu0 0.0
    %230 = vmatpush2.msra.mxu0 0.0
    %231 = vmatprep.subr.mxu0 0.0
    %232 = vmatpush2.msra.mxu0 0.0
    %233 = vmatprep.subr.mxu0 0.0
    %234 = vmatpush2.msra.mxu0 0.0
    %235 = vmatprep.subr.mxu0 0.0
    %236 = vmatpush2.msra.mxu0 0.0
    %237 = vmatprep.subr.mxu0 0.0
    %238 = vmatpush2.msra.mxu0 0.0
    %239 = vmatprep.subr.mxu0 0.0
    %240 = vmatpush2.msra.mxu0 0.0
    %241 = vmatprep.subr.mxu0 0.0
    %242 = vmatpush2.msra.mxu0 0.0
    %243 = vmatprep.subr.mxu0 0.0
    %244 = vmatpush2.msra.mxu0 0.0
    %245 = vmatprep.mubr.f32.mxu0 0.0
    %246 = vmatmul.mubr.f32.gmra.mxu0 %v176
    %v247 = vpop.f32.mrf.mxu0
    %v248 = vadd.f32 %v173, %v247
    %v249 = vpop.f32.mrf.mxu0
    %250 = vmatprep.mubr.f32.mxu0 0.0
    %251 = vmatmul.mubr.f32.gmra.mxu0 %v179
    %v252 = vpop.f32.mrf.mxu0
    %v253 = vadd.f32 %v173, %v252
    %v254 = vpop.f32.mrf.mxu0
    %255 = vdwg.mxu0
    %v256 = vld [vmem:[%s8] sm:$0x1]
    %v258 = vlaneseq
    %v259 = vshrl.u32 %v258, 7
    %v260 = vsub.s32 0, %v259
    %v261 = vrot.slane %v256, %v260
    %v263 = vadd.f32 %v248, %v261
    %v264 = vadd.f32 %v253, %v261
    %v265 = vld [vmem:[%s7] sm:$0xff]
    %v266 = vld [vmem:[%s7 + $0x8] sm:$0xff]
    %v267 = vld [vmem:[%s7 + $0x10] sm:$0xff]
    %v268 = vld [vmem:[%s7 + $0x18] sm:$0xff]
    %v269 = vld [vmem:[#allocation6] sm:$0x3]
    %v270 = vld [vmem:[#allocation8] sm:$0x3]
    %v272 = vsel %vm120, %v269, 0
    %274 = vmatprep.subr.mxu0 0.0
    %275 = vmatpush1.msra.mxu0 0.0
    %276 = vmatprep.subr.mxu0 0.0
    %277 = vmatpush1.msra.mxu0 0.0
    %278 = vmatprep.subr.mxu0 0.0
    %279 = vmatpush1.msra.mxu0 0.0
    %280 = vmatprep.subr.mxu0 0.0
    %281 = vmatpush1.msra.mxu0 0.0
    %282 = vmatprep.subr.mxu0 0.0
    %283 = vmatpush1.msra.mxu0 0.0
    %284 = vmatprep.subr.mxu0 0.0
    %285 = vmatpush1.msra.mxu0 0.0
    %286 = vmatprep.subr.mxu0 0.0
    %287 = vmatpush1.msra.mxu0 0.0
    %288 = vmatprep.subr.mxu0 0.0
    %289 = vmatpush1.msra.mxu0 0.0
    %290 = vmatprep.subr.mxu0 0.0
    %291 = vmatpush1.msra.mxu0 0.0
    %292 = vmatprep.subr.mxu0 0.0
    %293 = vmatpush1.msra.mxu0 0.0
    %294 = vmatprep.subr.mxu0 0.0
    %295 = vmatpush1.msra.mxu0 0.0
    %296 = vmatprep.subr.mxu0 0.0
    %297 = vmatpush1.msra.mxu0 0.0
    %298 = vmatprep.subr.mxu0 0.0
    %299 = vmatpush1.msra.mxu0 %v268
    %300 = vmatprep.subr.mxu0 0.0
    %301 = vmatpush1.msra.mxu0 %v267
    %302 = vmatprep.subr.mxu0 0.0
    %303 = vmatpush1.msra.mxu0 %v266
    %304 = vmatprep.subr.mxu0 0.0
    %305 = vmatpush1.msra.mxu0 %v265
    %306 = vmatprep.subr.mxu0 0.0
    %307 = vmatpush2.msra.mxu0 0.0
    %308 = vmatprep.subr.mxu0 0.0
    %309 = vmatpush2.msra.mxu0 0.0
    %310 = vmatprep.subr.mxu0 0.0
    %311 = vmatpush2.msra.mxu0 0.0
    %312 = vmatprep.subr.mxu0 0.0
    %313 = vmatpush2.msra.mxu0 0.0
    %314 = vmatprep.subr.mxu0 0.0
    %315 = vmatpush2.msra.mxu0 0.0
    %316 = vmatprep.subr.mxu0 0.0
    %317 = vmatpush2.msra.mxu0 0.0
    %318 = vmatprep.subr.mxu0 0.0
    %319 = vmatpush2.msra.mxu0 0.0
    %320 = vmatprep.subr.mxu0 0.0
    %321 = vmatpush2.msra.mxu0 0.0
    %322 = vmatprep.subr.mxu0 0.0
    %323 = vmatpush2.msra.mxu0 0.0
    %324 = vmatprep.subr.mxu0 0.0
    %325 = vmatpush2.msra.mxu0 0.0
    %326 = vmatprep.subr.mxu0 0.0
    %327 = vmatpush2.msra.mxu0 0.0
    %328 = vmatprep.subr.mxu0 0.0
    %329 = vmatpush2.msra.mxu0 0.0
    %330 = vmatprep.subr.mxu0 0.0
    %331 = vmatpush2.msra.mxu0 0.0
    %332 = vmatprep.subr.mxu0 0.0
    %333 = vmatpush2.msra.mxu0 0.0
    %334 = vmatprep.subr.mxu0 0.0
    %335 = vmatpush2.msra.mxu0 0.0
    %336 = vmatprep.subr.mxu0 0.0
    %337 = vmatpush2.msra.mxu0 0.0
    %338 = vmatprep.mubr.f32.mxu0 0.0
    %339 = vmatmul.mubr.f32.gmra.mxu0 %v272
    %v340 = vpop.f32.mrf.mxu0
    %v341 = vadd.f32 0.0, %v340
    %v342 = vpop.f32.mrf.mxu0
    %343 = vdwg.mxu0
    %v344 = vadd.f32 %v263, %v341
    %v345 = vxor.u32 %v344, 2147483648
    %v346 = vmul.f32 %v345, 1.442695
    %v347 = vpow.pop %v346
    %v348 = vadd.f32 %v347, 1.0
    %v349 = vrcp.pop %v348
    %v350 = vmul.f32 1.0, %v349
    %v351 = vtanh.pop %v344
    %353 = vrot.lane.b32.xlu0 %v270, 32
    %v354 = vpop.permute.xlu0 %353
    %v356 = vmul.f32 %v350, %v354
    %358 = vrot.lane.b32.xlu0 %v351, 64
    %v359 = vpop.permute.xlu0 %358
    %v361 = vmul.f32 %v350, %v359
    %363 = vrot.lane.b32.xlu0 %v361, 32
    %v364 = vpop.permute.xlu0 %363
    %v366 = vadd.f32 %v356, %v364
    %v367 = vtanh.pop %v366
    %369 = vrot.lane.b32.xlu0 %v367, 64
    %v370 = vpop.permute.xlu0 %369
    %v372 = vmul.f32 %v350, %v370
    %374 = vrot.lane.b32.xlu0 %v372, 32
    %v375 = vpop.permute.xlu0 %374
    %vm377 = vcmask 254976
    %378 = vst.msk [vmem:[#allocation2] sm:$0x3] %vm377, %v375
    %v379 = vsel %vm120, %v375, 0
    %381 = vmatprep.subr.mxu0 0.0
    %382 = vmatpush1.msra.mxu0 0.0
    %383 = vmatprep.subr.mxu0 0.0
    %384 = vmatpush1.msra.mxu0 0.0
    %385 = vmatprep.subr.mxu0 0.0
    %386 = vmatpush1.msra.mxu0 0.0
    %387 = vmatprep.subr.mxu0 0.0
    %388 = vmatpush1.msra.mxu0 0.0
    %389 = vmatprep.subr.mxu0 0.0
    %390 = vmatpush1.msra.mxu0 0.0
    %391 = vmatprep.subr.mxu0 0.0
    %392 = vmatpush1.msra.mxu0 0.0
    %393 = vmatprep.subr.mxu0 0.0
    %394 = vmatpush1.msra.mxu0 0.0
    %395 = vmatprep.subr.mxu0 0.0
    %396 = vmatpush1.msra.mxu0 0.0
    %397 = vmatprep.subr.mxu0 0.0
    %398 = vmatpush1.msra.mxu0 0.0
    %399 = vmatprep.subr.mxu0 0.0
    %400 = vmatpush1.msra.mxu0 0.0
    %401 = vmatprep.subr.mxu0 0.0
    %402 = vmatpush1.msra.mxu0 0.0
    %403 = vmatprep.subr.mxu0 0.0
    %404 = vmatpush1.msra.mxu0 0.0
    %405 = vmatprep.subr.mxu0 0.0
    %406 = vmatpush1.msra.mxu0 %v268
    %407 = vmatprep.subr.mxu0 0.0
    %408 = vmatpush1.msra.mxu0 %v267
    %409 = vmatprep.subr.mxu0 0.0
    %410 = vmatpush1.msra.mxu0 %v266
    %411 = vmatprep.subr.mxu0 0.0
    %412 = vmatpush1.msra.mxu0 %v265
    %413 = vmatprep.subr.mxu0 0.0
    %414 = vmatpush2.msra.mxu0 0.0
    %415 = vmatprep.subr.mxu0 0.0
    %416 = vmatpush2.msra.mxu0 0.0
    %417 = vmatprep.subr.mxu0 0.0
    %418 = vmatpush2.msra.mxu0 0.0
    %419 = vmatprep.subr.mxu0 0.0
    %420 = vmatpush2.msra.mxu0 0.0
    %421 = vmatprep.subr.mxu0 0.0
    %422 = vmatpush2.msra.mxu0 0.0
    %423 = vmatprep.subr.mxu0 0.0
    %424 = vmatpush2.msra.mxu0 0.0
    %425 = vmatprep.subr.mxu0 0.0
    %426 = vmatpush2.msra.mxu0 0.0
    %427 = vmatprep.subr.mxu0 0.0
    %428 = vmatpush2.msra.mxu0 0.0
    %429 = vmatprep.subr.mxu0 0.0
    %430 = vmatpush2.msra.mxu0 0.0
    %431 = vmatprep.subr.mxu0 0.0
    %432 = vmatpush2.msra.mxu0 0.0
    %433 = vmatprep.subr.mxu0 0.0
    %434 = vmatpush2.msra.mxu0 0.0
    %435 = vmatprep.subr.mxu0 0.0
    %436 = vmatpush2.msra.mxu0 0.0
    %437 = vmatprep.subr.mxu0 0.0
    %438 = vmatpush2.msra.mxu0 0.0
    %439 = vmatprep.subr.mxu0 0.0
    %440 = vmatpush2.msra.mxu0 0.0
    %441 = vmatprep.subr.mxu0 0.0
    %442 = vmatpush2.msra.mxu0 0.0
    %443 = vmatprep.subr.mxu0 0.0
    %444 = vmatpush2.msra.mxu0 0.0
    %445 = vmatprep.mubr.f32.mxu0 0.0
    %446 = vmatmul.mubr.f32.gmra.mxu0 %v379
    %v447 = vpop.f32.mrf.mxu0
    %v448 = vadd.f32 0.0, %v447
    %v449 = vpop.f32.mrf.mxu0
    %450 = vdwg.mxu0
    %v452 = vrot.slane %v448, 6
    %v454 = vadd.f32 %v263, %v452
    %v455 = vxor.u32 %v454, 2147483648
    %v456 = vmul.f32 %v455, 1.442695
    %v457 = vpow.pop %v456
    %v458 = vadd.f32 %v457, 1.0
    %v459 = vrcp.pop %v458
    %v460 = vmul.f32 1.0, %v459
    %v461 = vtanh.pop %v454
    %v463 = vrot.slane %v366, 6
    %v465 = vmul.f32 %v460, %v463
    %467 = vrot.lane.b32.xlu0 %v461, 64
    %v468 = vpop.permute.xlu0 %467
    %v470 = vmul.f32 %v460, %v468
    %472 = vrot.lane.b32.xlu0 %v470, 32
    %v473 = vpop.permute.xlu0 %472
    %v475 = vadd.f32 %v465, %v473
    %v476 = vtanh.pop %v475
    %478 = vrot.lane.b32.xlu0 %v476, 64
    %v479 = vpop.permute.xlu0 %478
    %v481 = vmul.f32 %v460, %v479
    %483 = vrot.lane.b32.xlu0 %v481, 32
    %v484 = vpop.permute.xlu0 %483
    %vm486 = vcmask 257026
    %487 = vst.msk [vmem:[#allocation2] sm:$0xc] %vm486, %v484
    %v488 = vrot.slane %v481, 2
    %489 = vrot.lane.b32.xlu0 %v488, 32
    %v490 = vpop.permute.xlu0 %489
    %v491 = vsel %vm120, %v490, 0
    %493 = vmatprep.subr.mxu0 0.0
    %494 = vmatpush1.msra.mxu0 0.0
    %495 = vmatprep.subr.mxu0 0.0
    %496 = vmatpush1.msra.mxu0 0.0
    %497 = vmatprep.subr.mxu0 0.0
    %498 = vmatpush1.msra.mxu0 0.0
    %499 = vmatprep.subr.mxu0 0.0
    %500 = vmatpush1.msra.mxu0 0.0
    %501 = vmatprep.subr.mxu0 0.0
    %502 = vmatpush1.msra.mxu0 0.0
    %503 = vmatprep.subr.mxu0 0.0
    %504 = vmatpush1.msra.mxu0 0.0
    %505 = vmatprep.subr.mxu0 0.0
    %506 = vmatpush1.msra.mxu0 0.0
    %507 = vmatprep.subr.mxu0 0.0
    %508 = vmatpush1.msra.mxu0 0.0
    %509 = vmatprep.subr.mxu0 0.0
    %510 = vmatpush1.msra.mxu0 0.0
    %511 = vmatprep.subr.mxu0 0.0
    %512 = vmatpush1.msra.mxu0 0.0
    %513 = vmatprep.subr.mxu0 0.0
    %514 = vmatpush1.msra.mxu0 0.0
    %515 = vmatprep.subr.mxu0 0.0
    %516 = vmatpush1.msra.mxu0 0.0
    %517 = vmatprep.subr.mxu0 0.0
    %518 = vmatpush1.msra.mxu0 %v268
    %519 = vmatprep.subr.mxu0 0.0
    %520 = vmatpush1.msra.mxu0 %v267
    %521 = vmatprep.subr.mxu0 0.0
    %522 = vmatpush1.msra.mxu0 %v266
    %523 = vmatprep.subr.mxu0 0.0
    %524 = vmatpush1.msra.mxu0 %v265
    %525 = vmatprep.subr.mxu0 0.0
    %526 = vmatpush2.msra.mxu0 0.0
    %527 = vmatprep.subr.mxu0 0.0
    %528 = vmatpush2.msra.mxu0 0.0
    %529 = vmatprep.subr.mxu0 0.0
    %530 = vmatpush2.msra.mxu0 0.0
    %531 = vmatprep.subr.mxu0 0.0
    %532 = vmatpush2.msra.mxu0 0.0
    %533 = vmatprep.subr.mxu0 0.0
    %534 = vmatpush2.msra.mxu0 0.0
    %535 = vmatprep.subr.mxu0 0.0
    %536 = vmatpush2.msra.mxu0 0.0
    %537 = vmatprep.subr.mxu0 0.0
    %538 = vmatpush2.msra.mxu0 0.0
    %539 = vmatprep.subr.mxu0 0.0
    %540 = vmatpush2.msra.mxu0 0.0
    %541 = vmatprep.subr.mxu0 0.0
    %542 = vmatpush2.msra.mxu0 0.0
    %543 = vmatprep.subr.mxu0 0.0
    %544 = vmatpush2.msra.mxu0 0.0
    %545 = vmatprep.subr.mxu0 0.0
    %546 = vmatpush2.msra.mxu0 0.0
    %547 = vmatprep.subr.mxu0 0.0
    %548 = vmatpush2.msra.mxu0 0.0
    %549 = vmatprep.subr.mxu0 0.0
    %550 = vmatpush2.msra.mxu0 0.0
    %551 = vmatprep.subr.mxu0 0.0
    %552 = vmatpush2.msra.mxu0 0.0
    %553 = vmatprep.subr.mxu0 0.0
    %554 = vmatpush2.msra.mxu0 0.0
    %555 = vmatprep.subr.mxu0 0.0
    %556 = vmatpush2.msra.mxu0 0.0
    %557 = vmatprep.mubr.f32.mxu0 0.0
    %558 = vmatmul.mubr.f32.gmra.mxu0 %v491
    %v559 = vpop.f32.mrf.mxu0
    %v560 = vadd.f32 0.0, %v559
    %v561 = vpop.f32.mrf.mxu0
    %562 = vdwg.mxu0
    %v564 = vrot.slane %v560, 4
    %v566 = vadd.f32 %v263, %v564
    %v567 = vxor.u32 %v566, 2147483648
    %v568 = vmul.f32 %v567, 1.442695
    %v569 = vpow.pop %v568
    %v570 = vadd.f32 %v569, 1.0
    %v571 = vrcp.pop %v570
    %v572 = vmul.f32 1.0, %v571
    %v573 = vtanh.pop %v566
    %v575 = vrot.slane %v475, 6
    %v577 = vmul.f32 %v572, %v575
    %579 = vrot.lane.b32.xlu0 %v573, 64
    %v580 = vpop.permute.xlu0 %579
    %v582 = vmul.f32 %v572, %v580
    %584 = vrot.lane.b32.xlu0 %v582, 32
    %v585 = vpop.permute.xlu0 %584
    %v587 = vadd.f32 %v577, %v585
    %v588 = vtanh.pop %v587
    %590 = vrot.lane.b32.xlu0 %v588, 64
    %v591 = vpop.permute.xlu0 %590
    %v593 = vmul.f32 %v572, %v591
    %595 = vrot.lane.b32.xlu0 %v593, 32
    %v596 = vpop.permute.xlu0 %595
    %vm598 = vcmask 259076
    %599 = vst.msk [vmem:[#allocation2] sm:$0x30] %vm598, %v596
    %v600 = vrot.slane %v593, 4
    %601 = vrot.lane.b32.xlu0 %v600, 32
    %v602 = vpop.permute.xlu0 %601
    %v603 = vsel %vm120, %v602, 0
    %605 = vmatprep.subr.mxu0 0.0
    %606 = vmatpush1.msra.mxu0 0.0
    %607 = vmatprep.subr.mxu0 0.0
    %608 = vmatpush1.msra.mxu0 0.0
    %609 = vmatprep.subr.mxu0 0.0
    %610 = vmatpush1.msra.mxu0 0.0
    %611 = vmatprep.subr.mxu0 0.0
    %612 = vmatpush1.msra.mxu0 0.0
    %613 = vmatprep.subr.mxu0 0.0
    %614 = vmatpush1.msra.mxu0 0.0
    %615 = vmatprep.subr.mxu0 0.0
    %616 = vmatpush1.msra.mxu0 0.0
    %617 = vmatprep.subr.mxu0 0.0
    %618 = vmatpush1.msra.mxu0 0.0
    %619 = vmatprep.subr.mxu0 0.0
    %620 = vmatpush1.msra.mxu0 0.0
    %621 = vmatprep.subr.mxu0 0.0
    %622 = vmatpush1.msra.mxu0 0.0
    %623 = vmatprep.subr.mxu0 0.0
    %624 = vmatpush1.msra.mxu0 0.0
    %625 = vmatprep.subr.mxu0 0.0
    %626 = vmatpush1.msra.mxu0 0.0
    %627 = vmatprep.subr.mxu0 0.0
    %628 = vmatpush1.msra.mxu0 0.0
    %629 = vmatprep.subr.mxu0 0.0
    %630 = vmatpush1.msra.mxu0 %v268
    %631 = vmatprep.subr.mxu0 0.0
    %632 = vmatpush1.msra.mxu0 %v267
    %633 = vmatprep.subr.mxu0 0.0
    %634 = vmatpush1.msra.mxu0 %v266
    %635 = vmatprep.subr.mxu0 0.0
    %636 = vmatpush1.msra.mxu0 %v265
    %637 = vmatprep.subr.mxu0 0.0
    %638 = vmatpush2.msra.mxu0 0.0
    %639 = vmatprep.subr.mxu0 0.0
    %640 = vmatpush2.msra.mxu0 0.0
    %641 = vmatprep.subr.mxu0 0.0
    %642 = vmatpush2.msra.mxu0 0.0
    %643 = vmatprep.subr.mxu0 0.0
    %644 = vmatpush2.msra.mxu0 0.0
    %645 = vmatprep.subr.mxu0 0.0
    %646 = vmatpush2.msra.mxu0 0.0
    %647 = vmatprep.subr.mxu0 0.0
    %648 = vmatpush2.msra.mxu0 0.0
    %649 = vmatprep.subr.mxu0 0.0
    %650 = vmatpush2.msra.mxu0 0.0
    %651 = vmatprep.subr.mxu0 0.0
    %652 = vmatpush2.msra.mxu0 0.0
    %653 = vmatprep.subr.mxu0 0.0
    %654 = vmatpush2.msra.mxu0 0.0
    %655 = vmatprep.subr.mxu0 0.0
    %656 = vmatpush2.msra.mxu0 0.0
    %657 = vmatprep.subr.mxu0 0.0
    %658 = vmatpush2.msra.mxu0 0.0
    %659 = vmatprep.subr.mxu0 0.0
    %660 = vmatpush2.msra.mxu0 0.0
    %661 = vmatprep.subr.mxu0 0.0
    %662 = vmatpush2.msra.mxu0 0.0
    %663 = vmatprep.subr.mxu0 0.0
    %664 = vmatpush2.msra.mxu0 0.0
    %665 = vmatprep.subr.mxu0 0.0
    %666 = vmatpush2.msra.mxu0 0.0
    %667 = vmatprep.subr.mxu0 0.0
    %668 = vmatpush2.msra.mxu0 0.0
    %669 = vmatprep.mubr.f32.mxu0 0.0
    %670 = vmatmul.mubr.f32.gmra.mxu0 %v603
    %v671 = vpop.f32.mrf.mxu0
    %v672 = vadd.f32 0.0, %v671
    %v673 = vpop.f32.mrf.mxu0
    %674 = vdwg.mxu0
    %v676 = vrot.slane %v672, 2
    %v678 = vadd.f32 %v263, %v676
    %v679 = vxor.u32 %v678, 2147483648
    %v680 = vmul.f32 %v679, 1.442695
    %v681 = vpow.pop %v680
    %v682 = vadd.f32 %v681, 1.0
    %v683 = vrcp.pop %v682
    %v684 = vmul.f32 1.0, %v683
    %v685 = vtanh.pop %v678
    %v687 = vrot.slane %v587, 6
    %v689 = vmul.f32 %v684, %v687
    %691 = vrot.lane.b32.xlu0 %v685, 64
    %v692 = vpop.permute.xlu0 %691
    %v694 = vmul.f32 %v684, %v692
    %696 = vrot.lane.b32.xlu0 %v694, 32
    %v697 = vpop.permute.xlu0 %696
    %v699 = vadd.f32 %v689, %v697
    %v700 = vtanh.pop %v699
    %702 = vrot.lane.b32.xlu0 %v700, 64
    %v703 = vpop.permute.xlu0 %702
    %v705 = vmul.f32 %v684, %v703
    %707 = vrot.lane.b32.xlu0 %v705, 32
    %v708 = vpop.permute.xlu0 %707
    %vm710 = vcmask 261126
    %711 = vst.msk [vmem:[#allocation2] sm:$0xc0] %vm710, %v708
    %v712 = vrot.slane %v705, 6
    %713 = vrot.lane.b32.xlu0 %v712, 32
    %v714 = vpop.permute.xlu0 %713
    %v715 = vsel %vm120, %v714, 0
    %717 = vmatprep.subr.mxu0 0.0
    %718 = vmatpush1.msra.mxu0 0.0
    %719 = vmatprep.subr.mxu0 0.0
    %720 = vmatpush1.msra.mxu0 0.0
    %721 = vmatprep.subr.mxu0 0.0
    %722 = vmatpush1.msra.mxu0 0.0
    %723 = vmatprep.subr.mxu0 0.0
    %724 = vmatpush1.msra.mxu0 0.0
    %725 = vmatprep.subr.mxu0 0.0
    %726 = vmatpush1.msra.mxu0 0.0
    %727 = vmatprep.subr.mxu0 0.0
    %728 = vmatpush1.msra.mxu0 0.0
    %729 = vmatprep.subr.mxu0 0.0
    %730 = vmatpush1.msra.mxu0 0.0
    %731 = vmatprep.subr.mxu0 0.0
    %732 = vmatpush1.msra.mxu0 0.0
    %733 = vmatprep.subr.mxu0 0.0
    %734 = vmatpush1.msra.mxu0 0.0
    %735 = vmatprep.subr.mxu0 0.0
    %736 = vmatpush1.msra.mxu0 0.0
    %737 = vmatprep.subr.mxu0 0.0
    %738 = vmatpush1.msra.mxu0 0.0
    %739 = vmatprep.subr.mxu0 0.0
    %740 = vmatpush1.msra.mxu0 0.0
    %741 = vmatprep.subr.mxu0 0.0
    %742 = vmatpush1.msra.mxu0 %v268
    %743 = vmatprep.subr.mxu0 0.0
    %744 = vmatpush1.msra.mxu0 %v267
    %745 = vmatprep.subr.mxu0 0.0
    %746 = vmatpush1.msra.mxu0 %v266
    %747 = vmatprep.subr.mxu0 0.0
    %748 = vmatpush1.msra.mxu0 %v265
    %749 = vmatprep.subr.mxu0 0.0
    %750 = vmatpush2.msra.mxu0 0.0
    %751 = vmatprep.subr.mxu0 0.0
    %752 = vmatpush2.msra.mxu0 0.0
    %753 = vmatprep.subr.mxu0 0.0
    %754 = vmatpush2.msra.mxu0 0.0
    %755 = vmatprep.subr.mxu0 0.0
    %756 = vmatpush2.msra.mxu0 0.0
    %757 = vmatprep.subr.mxu0 0.0
    %758 = vmatpush2.msra.mxu0 0.0
    %759 = vmatprep.subr.mxu0 0.0
    %760 = vmatpush2.msra.mxu0 0.0
    %761 = vmatprep.subr.mxu0 0.0
    %762 = vmatpush2.msra.mxu0 0.0
    %763 = vmatprep.subr.mxu0 0.0
    %764 = vmatpush2.msra.mxu0 0.0
    %765 = vmatprep.subr.mxu0 0.0
    %766 = vmatpush2.msra.mxu0 0.0
    %767 = vmatprep.subr.mxu0 0.0
    %768 = vmatpush2.msra.mxu0 0.0
    %769 = vmatprep.subr.mxu0 0.0
    %770 = vmatpush2.msra.mxu0 0.0
    %771 = vmatprep.subr.mxu0 0.0
    %772 = vmatpush2.msra.mxu0 0.0
    %773 = vmatprep.subr.mxu0 0.0
    %774 = vmatpush2.msra.mxu0 0.0
    %775 = vmatprep.subr.mxu0 0.0
    %776 = vmatpush2.msra.mxu0 0.0
    %777 = vmatprep.subr.mxu0 0.0
    %778 = vmatpush2.msra.mxu0 0.0
    %779 = vmatprep.subr.mxu0 0.0
    %780 = vmatpush2.msra.mxu0 0.0
    %781 = vmatprep.mubr.f32.mxu0 0.0
    %782 = vmatmul.mubr.f32.gmra.mxu0 %v715
    %v783 = vpop.f32.mrf.mxu0
    %v784 = vadd.f32 0.0, %v783
    %v785 = vpop.f32.mrf.mxu0
    %786 = vdwg.mxu0
    %v787 = vadd.f32 %v264, %v784
    %v788 = vxor.u32 %v787, 2147483648
    %v789 = vmul.f32 %v788, 1.442695
    %v790 = vpow.pop %v789
    %v791 = vadd.f32 %v790, 1.0
    %v792 = vrcp.pop %v791
    %v793 = vmul.f32 1.0, %v792
    %v794 = vtanh.pop %v787
    %v796 = vrot.slane %v699, 6
    %v798 = vmul.f32 %v793, %v796
    %800 = vrot.lane.b32.xlu0 %v794, 64
    %v801 = vpop.permute.xlu0 %800
    %v803 = vmul.f32 %v793, %v801
    %805 = vrot.lane.b32.xlu0 %v803, 32
    %v806 = vpop.permute.xlu0 %805
    %v808 = vadd.f32 %v798, %v806
    %v809 = vtanh.pop %v808
    %811 = vrot.lane.b32.xlu0 %v809, 64
    %v812 = vpop.permute.xlu0 %811
    %v814 = vmul.f32 %v793, %v812
    %816 = vrot.lane.b32.xlu0 %v814, 32
    %v817 = vpop.permute.xlu0 %816
    %819 = vst.msk [vmem:[#allocation2 + $0x8] sm:$0x3] %vm377, %v817
    %v820 = vsel %vm120, %v817, 0
    %822 = vmatprep.subr.mxu0 0.0
    %823 = vmatpush1.msra.mxu0 0.0
    %824 = vmatprep.subr.mxu0 0.0
    %825 = vmatpush1.msra.mxu0 0.0
    %826 = vmatprep.subr.mxu0 0.0
    %827 = vmatpush1.msra.mxu0 0.0
    %828 = vmatprep.subr.mxu0 0.0
    %829 = vmatpush1.msra.mxu0 0.0
    %830 = vmatprep.subr.mxu0 0.0
    %831 = vmatpush1.msra.mxu0 0.0
    %832 = vmatprep.subr.mxu0 0.0
    %833 = vmatpush1.msra.mxu0 0.0
    %834 = vmatprep.subr.mxu0 0.0
    %835 = vmatpush1.msra.mxu0 0.0
    %836 = vmatprep.subr.mxu0 0.0
    %837 = vmatpush1.msra.mxu0 0.0
    %838 = vmatprep.subr.mxu0 0.0
    %839 = vmatpush1.msra.mxu0 0.0
    %840 = vmatprep.subr.mxu0 0.0
    %841 = vmatpush1.msra.mxu0 0.0
    %842 = vmatprep.subr.mxu0 0.0
    %843 = vmatpush1.msra.mxu0 0.0
    %844 = vmatprep.subr.mxu0 0.0
    %845 = vmatpush1.msra.mxu0 0.0
    %846 = vmatprep.subr.mxu0 0.0
    %847 = vmatpush1.msra.mxu0 %v268
    %848 = vmatprep.subr.mxu0 0.0
    %849 = vmatpush1.msra.mxu0 %v267
    %850 = vmatprep.subr.mxu0 0.0
    %851 = vmatpush1.msra.mxu0 %v266
    %852 = vmatprep.subr.mxu0 0.0
    %853 = vmatpush1.msra.mxu0 %v265
    %854 = vmatprep.subr.mxu0 0.0
    %855 = vmatpush2.msra.mxu0 0.0
    %856 = vmatprep.subr.mxu0 0.0
    %857 = vmatpush2.msra.mxu0 0.0
    %858 = vmatprep.subr.mxu0 0.0
    %859 = vmatpush2.msra.mxu0 0.0
    %860 = vmatprep.subr.mxu0 0.0
    %861 = vmatpush2.msra.mxu0 0.0
    %862 = vmatprep.subr.mxu0 0.0
    %863 = vmatpush2.msra.mxu0 0.0
    %864 = vmatprep.subr.mxu0 0.0
    %865 = vmatpush2.msra.mxu0 0.0
    %866 = vmatprep.subr.mxu0 0.0
    %867 = vmatpush2.msra.mxu0 0.0
    %868 = vmatprep.subr.mxu0 0.0
    %869 = vmatpush2.msra.mxu0 0.0
    %870 = vmatprep.subr.mxu0 0.0
    %871 = vmatpush2.msra.mxu0 0.0
    %872 = vmatprep.subr.mxu0 0.0
    %873 = vmatpush2.msra.mxu0 0.0
    %874 = vmatprep.subr.mxu0 0.0
    %875 = vmatpush2.msra.mxu0 0.0
    %876 = vmatprep.subr.mxu0 0.0
    %877 = vmatpush2.msra.mxu0 0.0
    %878 = vmatprep.subr.mxu0 0.0
    %879 = vmatpush2.msra.mxu0 0.0
    %880 = vmatprep.subr.mxu0 0.0
    %881 = vmatpush2.msra.mxu0 0.0
    %882 = vmatprep.subr.mxu0 0.0
    %883 = vmatpush2.msra.mxu0 0.0
    %884 = vmatprep.subr.mxu0 0.0
    %885 = vmatpush2.msra.mxu0 0.0
    %886 = vmatprep.mubr.f32.mxu0 0.0
    %887 = vmatmul.mubr.f32.gmra.mxu0 %v820
    %v888 = vpop.f32.mrf.mxu0
    %v889 = vadd.f32 0.0, %v888
    %v890 = vpop.f32.mrf.mxu0
    %891 = vdwg.mxu0
    %v893 = vrot.slane %v889, 6
    %v895 = vadd.f32 %v264, %v893
    %v896 = vxor.u32 %v895, 2147483648
    %v897 = vmul.f32 %v896, 1.442695
    %v898 = vpow.pop %v897
    %v899 = vadd.f32 %v898, 1.0
    %v900 = vrcp.pop %v899
    %v901 = vmul.f32 1.0, %v900
    %v902 = vtanh.pop %v895
    %v904 = vrot.slane %v808, 6
    %v906 = vmul.f32 %v901, %v904
    %908 = vrot.lane.b32.xlu0 %v902, 64
    %v909 = vpop.permute.xlu0 %908
    %v911 = vmul.f32 %v901, %v909
    %913 = vrot.lane.b32.xlu0 %v911, 32
    %v914 = vpop.permute.xlu0 %913
    %v916 = vadd.f32 %v906, %v914
    %v917 = vtanh.pop %v916
    %919 = vrot.lane.b32.xlu0 %v917, 64
    %v920 = vpop.permute.xlu0 %919
    %v922 = vmul.f32 %v901, %v920
    %924 = vrot.lane.b32.xlu0 %v922, 32
    %v925 = vpop.permute.xlu0 %924
    %927 = vst.msk [vmem:[#allocation2 + $0x8] sm:$0xc] %vm486, %v925
    %v928 = vrot.slane %v922, 2
    %929 = vrot.lane.b32.xlu0 %v928, 32
    %v930 = vpop.permute.xlu0 %929
    %v931 = vsel %vm120, %v930, 0
    %933 = vmatprep.subr.mxu0 0.0
    %934 = vmatpush1.msra.mxu0 0.0
    %935 = vmatprep.subr.mxu0 0.0
    %936 = vmatpush1.msra.mxu0 0.0
    %937 = vmatprep.subr.mxu0 0.0
    %938 = vmatpush1.msra.mxu0 0.0
    %939 = vmatprep.subr.mxu0 0.0
    %940 = vmatpush1.msra.mxu0 0.0
    %941 = vmatprep.subr.mxu0 0.0
    %942 = vmatpush1.msra.mxu0 0.0
    %943 = vmatprep.subr.mxu0 0.0
    %944 = vmatpush1.msra.mxu0 0.0
    %945 = vmatprep.subr.mxu0 0.0
    %946 = vmatpush1.msra.mxu0 0.0
    %947 = vmatprep.subr.mxu0 0.0
    %948 = vmatpush1.msra.mxu0 0.0
    %949 = vmatprep.subr.mxu0 0.0
    %950 = vmatpush1.msra.mxu0 0.0
    %951 = vmatprep.subr.mxu0 0.0
    %952 = vmatpush1.msra.mxu0 0.0
    %953 = vmatprep.subr.mxu0 0.0
    %954 = vmatpush1.msra.mxu0 0.0
    %955 = vmatprep.subr.mxu0 0.0
    %956 = vmatpush1.msra.mxu0 0.0
    %957 = vmatprep.subr.mxu0 0.0
    %958 = vmatpush1.msra.mxu0 %v268
    %959 = vmatprep.subr.mxu0 0.0
    %960 = vmatpush1.msra.mxu0 %v267
    %961 = vmatprep.subr.mxu0 0.0
    %962 = vmatpush1.msra.mxu0 %v266
    %963 = vmatprep.subr.mxu0 0.0
    %964 = vmatpush1.msra.mxu0 %v265
    %965 = vmatprep.subr.mxu0 0.0
    %966 = vmatpush2.msra.mxu0 0.0
    %967 = vmatprep.subr.mxu0 0.0
    %968 = vmatpush2.msra.mxu0 0.0
    %969 = vmatprep.subr.mxu0 0.0
    %970 = vmatpush2.msra.mxu0 0.0
    %971 = vmatprep.subr.mxu0 0.0
    %972 = vmatpush2.msra.mxu0 0.0
    %973 = vmatprep.subr.mxu0 0.0
    %974 = vmatpush2.msra.mxu0 0.0
    %975 = vmatprep.subr.mxu0 0.0
    %976 = vmatpush2.msra.mxu0 0.0
    %977 = vmatprep.subr.mxu0 0.0
    %978 = vmatpush2.msra.mxu0 0.0
    %979 = vmatprep.subr.mxu0 0.0
    %980 = vmatpush2.msra.mxu0 0.0
    %981 = vmatprep.subr.mxu0 0.0
    %982 = vmatpush2.msra.mxu0 0.0
    %983 = vmatprep.subr.mxu0 0.0
    %984 = vmatpush2.msra.mxu0 0.0
    %985 = vmatprep.subr.mxu0 0.0
    %986 = vmatpush2.msra.mxu0 0.0
    %987 = vmatprep.subr.mxu0 0.0
    %988 = vmatpush2.msra.mxu0 0.0
    %989 = vmatprep.subr.mxu0 0.0
    %990 = vmatpush2.msra.mxu0 0.0
    %991 = vmatprep.subr.mxu0 0.0
    %992 = vmatpush2.msra.mxu0 0.0
    %993 = vmatprep.subr.mxu0 0.0
    %994 = vmatpush2.msra.mxu0 0.0
    %995 = vmatprep.subr.mxu0 0.0
    %996 = vmatpush2.msra.mxu0 0.0
    %997 = vmatprep.mubr.f32.mxu0 0.0
    %998 = vmatmul.mubr.f32.gmra.mxu0 %v931
    %v999 = vpop.f32.mrf.mxu0
    %v1000 = vadd.f32 0.0, %v999
    %v1001 = vpop.f32.mrf.mxu0
    %1002 = vdwg.mxu0
    %v1004 = vrot.slane %v1000, 4
    %v1006 = vadd.f32 %v264, %v1004
    %v1007 = vxor.u32 %v1006, 2147483648
    %v1008 = vmul.f32 %v1007, 1.442695
    %v1009 = vpow.pop %v1008
    %v1010 = vadd.f32 %v1009, 1.0
    %v1011 = vrcp.pop %v1010
    %v1012 = vmul.f32 1.0, %v1011
    %v1013 = vtanh.pop %v1006
    %v1015 = vrot.slane %v916, 6
    %v1017 = vmul.f32 %v1012, %v1015
    %1019 = vrot.lane.b32.xlu0 %v1013, 64
    %v1020 = vpop.permute.xlu0 %1019
    %v1022 = vmul.f32 %v1012, %v1020
    %1024 = vrot.lane.b32.xlu0 %v1022, 32
    %v1025 = vpop.permute.xlu0 %1024
    %v1027 = vadd.f32 %v1017, %v1025
    %v1028 = vtanh.pop %v1027
    %1030 = vrot.lane.b32.xlu0 %v1028, 64
    %v1031 = vpop.permute.xlu0 %1030
    %v1033 = vmul.f32 %v1012, %v1031
    %1035 = vrot.lane.b32.xlu0 %v1033, 32
    %v1036 = vpop.permute.xlu0 %1035
    %1038 = vst.msk [vmem:[#allocation2 + $0x8] sm:$0x30] %vm598, %v1036
    %v1039 = vrot.slane %v1033, 4
    %1040 = vrot.lane.b32.xlu0 %v1039, 32
    %v1041 = vpop.permute.xlu0 %1040
    %v1042 = vsel %vm120, %v1041, 0
    %1044 = vmatprep.subr.mxu0 0.0
    %1045 = vmatpush1.msra.mxu0 0.0
    %1046 = vmatprep.subr.mxu0 0.0
    %1047 = vmatpush1.msra.mxu0 0.0
    %1048 = vmatprep.subr.mxu0 0.0
    %1049 = vmatpush1.msra.mxu0 0.0
    %1050 = vmatprep.subr.mxu0 0.0
    %1051 = vmatpush1.msra.mxu0 0.0
    %1052 = vmatprep.subr.mxu0 0.0
    %1053 = vmatpush1.msra.mxu0 0.0
    %1054 = vmatprep.subr.mxu0 0.0
    %1055 = vmatpush1.msra.mxu0 0.0
    %1056 = vmatprep.subr.mxu0 0.0
    %1057 = vmatpush1.msra.mxu0 0.0
    %1058 = vmatprep.subr.mxu0 0.0
    %1059 = vmatpush1.msra.mxu0 0.0
    %1060 = vmatprep.subr.mxu0 0.0
    %1061 = vmatpush1.msra.mxu0 0.0
    %1062 = vmatprep.subr.mxu0 0.0
    %1063 = vmatpush1.msra.mxu0 0.0
    %1064 = vmatprep.subr.mxu0 0.0
    %1065 = vmatpush1.msra.mxu0 0.0
    %1066 = vmatprep.subr.mxu0 0.0
    %1067 = vmatpush1.msra.mxu0 0.0
    %1068 = vmatprep.subr.mxu0 0.0
    %1069 = vmatpush1.msra.mxu0 %v268
    %1070 = vmatprep.subr.mxu0 0.0
    %1071 = vmatpush1.msra.mxu0 %v267
    %1072 = vmatprep.subr.mxu0 0.0
    %1073 = vmatpush1.msra.mxu0 %v266
    %1074 = vmatprep.subr.mxu0 0.0
    %1075 = vmatpush1.msra.mxu0 %v265
    %1076 = vmatprep.subr.mxu0 0.0
    %1077 = vmatpush2.msra.mxu0 0.0
    %1078 = vmatprep.subr.mxu0 0.0
    %1079 = vmatpush2.msra.mxu0 0.0
    %1080 = vmatprep.subr.mxu0 0.0
    %1081 = vmatpush2.msra.mxu0 0.0
    %1082 = vmatprep.subr.mxu0 0.0
    %1083 = vmatpush2.msra.mxu0 0.0
    %1084 = vmatprep.subr.mxu0 0.0
    %1085 = vmatpush2.msra.mxu0 0.0
    %1086 = vmatprep.subr.mxu0 0.0
    %1087 = vmatpush2.msra.mxu0 0.0
    %1088 = vmatprep.subr.mxu0 0.0
    %1089 = vmatpush2.msra.mxu0 0.0
    %1090 = vmatprep.subr.mxu0 0.0
    %1091 = vmatpush2.msra.mxu0 0.0
    %1092 = vmatprep.subr.mxu0 0.0
    %1093 = vmatpush2.msra.mxu0 0.0
    %1094 = vmatprep.subr.mxu0 0.0
    %1095 = vmatpush2.msra.mxu0 0.0
    %1096 = vmatprep.subr.mxu0 0.0
    %1097 = vmatpush2.msra.mxu0 0.0
    %1098 = vmatprep.subr.mxu0 0.0
    %1099 = vmatpush2.msra.mxu0 0.0
    %1100 = vmatprep.subr.mxu0 0.0
    %1101 = vmatpush2.msra.mxu0 0.0
    %1102 = vmatprep.subr.mxu0 0.0
    %1103 = vmatpush2.msra.mxu0 0.0
    %1104 = vmatprep.subr.mxu0 0.0
    %1105 = vmatpush2.msra.mxu0 0.0
    %1106 = vmatprep.subr.mxu0 0.0
    %1107 = vmatpush2.msra.mxu0 0.0
    %1108 = vmatprep.mubr.f32.mxu0 0.0
    %1109 = vmatmul.mubr.f32.gmra.mxu0 %v1042
    %v1110 = vpop.f32.mrf.mxu0
    %v1111 = vadd.f32 0.0, %v1110
    %v1112 = vpop.f32.mrf.mxu0
    %1113 = vdwg.mxu0
    %v1115 = vrot.slane %v1111, 2
    %v1117 = vadd.f32 %v264, %v1115
    %v1118 = vxor.u32 %v1117, 2147483648
    %v1119 = vmul.f32 %v1118, 1.442695
    %v1120 = vpow.pop %v1119
    %v1121 = vadd.f32 %v1120, 1.0
    %v1122 = vrcp.pop %v1121
    %v1123 = vmul.f32 1.0, %v1122
    %v1124 = vtanh.pop %v1117
    %v1126 = vrot.slane %v1027, 6
    %v1128 = vmul.f32 %v1123, %v1126
    %1130 = vrot.lane.b32.xlu0 %v1124, 64
    %v1131 = vpop.permute.xlu0 %1130
    %v1133 = vmul.f32 %v1123, %v1131
    %1135 = vrot.lane.b32.xlu0 %v1133, 32
    %v1136 = vpop.permute.xlu0 %1135
    %v1138 = vadd.f32 %v1128, %v1136
    %v1139 = vtanh.pop %v1138
    %1141 = vrot.lane.b32.xlu0 %v1139, 64
    %v1142 = vpop.permute.xlu0 %1141
    %v1144 = vmul.f32 %v1123, %v1142
    %1146 = vrot.lane.b32.xlu0 %v1144, 32
    %v1147 = vpop.permute.xlu0 %1146
    %1149 = vst.msk [vmem:[#allocation2 + $0x8] sm:$0xc0] %vm710, %v1147
    %1150 = vst.msk [vmem:[#allocation12 - $0x6] sm:$0xc0] %vm710, %v1147
    %1152 = vrot.lane.b32.xlu0 %v1138, 96
    %v1153 = vpop.permute.xlu0 %1152
    %1155 = vst.msk [vmem:[#allocation14 - $0x6] sm:$0xc0] %vm710, %v1153
    %v1156 = vld [vmem:[#allocation2] sm:$0xff]
    %v1157 = vld [vmem:[#allocation2 + $0x8] sm:$0xff]
    %v1158 = vld [vmem:[%s9] sm:$0xff]
    %v1159 = vld [vmem:[%s9 + $0x8] sm:$0xff]
    %v1160 = vld [vmem:[%s9 + $0x10] sm:$0xff]
    %v1161 = vld [vmem:[%s9 + $0x18] sm:$0xff]
    %v1162 = vld [vmem:[%s10] sm:$0x1]
    %v1164 = vlaneseq
    %v1165 = vshrl.u32 %v1164, 7
    %v1166 = vsub.s32 0, %v1165
    %v1167 = vrot.slane %v1162, %v1166
    %v1170 = vsel %vm120, %v1156, 0
    %v1173 = vsel %vm120, %v1157, 0
    %1175 = vmatprep.subr.mxu0 0.0
    %1176 = vmatpush1.msra.mxu0 0.0
    %1177 = vmatprep.subr.mxu0 0.0
    %1178 = vmatpush1.msra.mxu0 0.0
    %1179 = vmatprep.subr.mxu0 0.0
    %1180 = vmatpush1.msra.mxu0 0.0
    %1181 = vmatprep.subr.mxu0 0.0
    %1182 = vmatpush1.msra.mxu0 0.0
    %1183 = vmatprep.subr.mxu0 0.0
    %1184 = vmatpush1.msra.mxu0 0.0
    %1185 = vmatprep.subr.mxu0 0.0
    %1186 = vmatpush1.msra.mxu0 0.0
    %1187 = vmatprep.subr.mxu0 0.0
    %1188 = vmatpush1.msra.mxu0 0.0
    %1189 = vmatprep.subr.mxu0 0.0
    %1190 = vmatpush1.msra.mxu0 0.0
    %1191 = vmatprep.subr.mxu0 0.0
    %1192 = vmatpush1.msra.mxu0 0.0
    %1193 = vmatprep.subr.mxu0 0.0
    %1194 = vmatpush1.msra.mxu0 0.0
    %1195 = vmatprep.subr.mxu0 0.0
    %1196 = vmatpush1.msra.mxu0 0.0
    %1197 = vmatprep.subr.mxu0 0.0
    %1198 = vmatpush1.msra.mxu0 0.0
    %1199 = vmatprep.subr.mxu0 0.0
    %1200 = vmatpush1.msra.mxu0 %v1161
    %1201 = vmatprep.subr.mxu0 0.0
    %1202 = vmatpush1.msra.mxu0 %v1160
    %1203 = vmatprep.subr.mxu0 0.0
    %1204 = vmatpush1.msra.mxu0 %v1159
    %1205 = vmatprep.subr.mxu0 0.0
    %1206 = vmatpush1.msra.mxu0 %v1158
    %1207 = vmatprep.subr.mxu0 0.0
    %1208 = vmatpush2.msra.mxu0 0.0
    %1209 = vmatprep.subr.mxu0 0.0
    %1210 = vmatpush2.msra.mxu0 0.0
    %1211 = vmatprep.subr.mxu0 0.0
    %1212 = vmatpush2.msra.mxu0 0.0
    %1213 = vmatprep.subr.mxu0 0.0
    %1214 = vmatpush2.msra.mxu0 0.0
    %1215 = vmatprep.subr.mxu0 0.0
    %1216 = vmatpush2.msra.mxu0 0.0
    %1217 = vmatprep.subr.mxu0 0.0
    %1218 = vmatpush2.msra.mxu0 0.0
    %1219 = vmatprep.subr.mxu0 0.0
    %1220 = vmatpush2.msra.mxu0 0.0
    %1221 = vmatprep.subr.mxu0 0.0
    %1222 = vmatpush2.msra.mxu0 0.0
    %1223 = vmatprep.subr.mxu0 0.0
    %1224 = vmatpush2.msra.mxu0 0.0
    %1225 = vmatprep.subr.mxu0 0.0
    %1226 = vmatpush2.msra.mxu0 0.0
    %1227 = vmatprep.subr.mxu0 0.0
    %1228 = vmatpush2.msra.mxu0 0.0
    %1229 = vmatprep.subr.mxu0 0.0
    %1230 = vmatpush2.msra.mxu0 0.0
    %1231 = vmatprep.subr.mxu0 0.0
    %1232 = vmatpush2.msra.mxu0 0.0
    %1233 = vmatprep.subr.mxu0 0.0
    %1234 = vmatpush2.msra.mxu0 0.0
    %1235 = vmatprep.subr.mxu0 0.0
    %1236 = vmatpush2.msra.mxu0 0.0
    %1237 = vmatprep.subr.mxu0 0.0
    %1238 = vmatpush2.msra.mxu0 0.0
    %1239 = vmatprep.mubr.f32.mxu0 0.0
    %1240 = vmatmul.mubr.f32.gmra.mxu0 %v1170
    %v1241 = vpop.f32.mrf.mxu0
    %v1242 = vadd.f32 %v1167, %v1241
    %v1243 = vpop.f32.mrf.mxu0
    %1244 = vmatprep.mubr.f32.mxu0 0.0
    %1245 = vmatmul.mubr.f32.gmra.mxu0 %v1173
    %v1246 = vpop.f32.mrf.mxu0
    %v1247 = vadd.f32 %v1167, %v1246
    %v1248 = vpop.f32.mrf.mxu0
    %1249 = vdwg.mxu0
    %v1250 = vadd.f32 %v1242, %v116
    %v1251 = vadd.f32 %v1247, %v117
    %v1252 = vld [vmem:[%s11] sm:$0x1]
    %v1253 = vld [vmem:[%s12] sm:$0x1]
    %v1254 = vsel %vm120, %v1250, 0.0
    %1255 = vadd.xlane.f32.xlu0 %v1254
    %v1256 = vpop.xlane.xlu0 %1255
    %v1257 = vsel %vm120, %v1251, 0.0
    %1258 = vadd.xlane.f32.xlu0 %v1257
    %v1259 = vpop.xlane.xlu0 %1258
    %v1260 = vmul.f32 %v1256, %v127
    %v1261 = vmul.f32 %v1259, %v127
    %v1262 = vsub.f32 %v1250, %v1260
    %v1263 = vsub.f32 %v1251, %v1261
    %v1264 = vmul.f32 %v1262, %v1262
    %v1265 = vmul.f32 %v1263, %v1263
    %v1266 = vsel %vm120, %v1264, 0.0
    %1267 = vadd.xlane.f32.xlu0 %v1266
    %v1268 = vpop.xlane.xlu0 %1267
    %v1269 = vsel %vm120, %v1265, 0.0
    %1270 = vadd.xlane.f32.xlu0 %v1269
    %v1271 = vpop.xlane.xlu0 %1270
    %v1272 = vmul.f32 %v1268, %v127
    %v1273 = vmul.f32 %v1271, %v127
    %v1274 = vadd.f32 %v1272, 1e-05
    %v1275 = vadd.f32 %v1273, 1e-05
    %v1276 = vrsqrt.pop %v1274
    %v1277 = vrsqrt.pop %v1275
    %v1278 = vmul.f32 %v1262, %v1276
    %v1279 = vmul.f32 %v1263, %v1277
    %v1281 = vlaneseq
    %v1282 = vshrl.u32 %v1281, 7
    %v1283 = vsub.s32 0, %v1282
    %v1284 = vrot.slane %v1252, %v1283
    %v1286 = vmul.f32 %v1278, %v1284
    %v1287 = vmul.f32 %v1279, %v1284
    %v1289 = vlaneseq
    %v1290 = vshrl.u32 %v1289, 7
    %v1291 = vsub.s32 0, %v1290
    %v1292 = vrot.slane %v1253, %v1291
    %v1294 = vadd.f32 %v1286, %v1292
    %v1295 = vadd.f32 %v1287, %v1292
    %v1296 = vld [vmem:[#allocation9] sm:$0xff]
    %v1297 = vld [vmem:[#allocation9 + $0x8] sm:$0xff]
    %v1298 = vld [vmem:[#allocation9 + $0x10] sm:$0xff]
    %v1299 = vld [vmem:[#allocation9 + $0x18] sm:$0xff]
    %v1300 = vld [vmem:[%s14] sm:$0x1]
    %v1302 = vlaneseq
    %v1303 = vshrl.u32 %v1302, 7
    %v1304 = vsub.s32 0, %v1303
    %v1305 = vrot.slane %v1300, %v1304
    %v1308 = vsel %vm120, %v1294, 0
    %v1311 = vsel %vm120, %v1295, 0
    %1313 = vmatprep.subr.mxu0 0.0
    %1314 = vmatpush1.msra.mxu0 0.0
    %1315 = vmatprep.subr.mxu0 0.0
    %1316 = vmatpush1.msra.mxu0 0.0
    %1317 = vmatprep.subr.mxu0 0.0
    %1318 = vmatpush1.msra.mxu0 0.0
    %1319 = vmatprep.subr.mxu0 0.0
    %1320 = vmatpush1.msra.mxu0 0.0
    %1321 = vmatprep.subr.mxu0 0.0
    %1322 = vmatpush1.msra.mxu0 0.0
    %1323 = vmatprep.subr.mxu0 0.0
    %1324 = vmatpush1.msra.mxu0 0.0
    %1325 = vmatprep.subr.mxu0 0.0
    %1326 = vmatpush1.msra.mxu0 0.0
    %1327 = vmatprep.subr.mxu0 0.0
    %1328 = vmatpush1.msra.mxu0 0.0
    %1329 = vmatprep.subr.mxu0 0.0
    %1330 = vmatpush1.msra.mxu0 0.0
    %1331 = vmatprep.subr.mxu0 0.0
    %1332 = vmatpush1.msra.mxu0 0.0
    %1333 = vmatprep.subr.mxu0 0.0
    %1334 = vmatpush1.msra.mxu0 0.0
    %1335 = vmatprep.subr.mxu0 0.0
    %1336 = vmatpush1.msra.mxu0 0.0
    %1337 = vmatprep.subr.mxu0 0.0
    %1338 = vmatpush1.msra.mxu0 %v1299
    %1339 = vmatprep.subr.mxu0 0.0
    %1340 = vmatpush1.msra.mxu0 %v1298
    %1341 = vmatprep.subr.mxu0 0.0
    %1342 = vmatpush1.msra.mxu0 %v1297
    %1343 = vmatprep.subr.mxu0 0.0
    %1344 = vmatpush1.msra.mxu0 %v1296
    %1345 = vmatprep.subr.mxu0 0.0
    %1346 = vmatpush2.msra.mxu0 0.0
    %1347 = vmatprep.subr.mxu0 0.0
    %1348 = vmatpush2.msra.mxu0 0.0
    %1349 = vmatprep.subr.mxu0 0.0
    %1350 = vmatpush2.msra.mxu0 0.0
    %1351 = vmatprep.subr.mxu0 0.0
    %1352 = vmatpush2.msra.mxu0 0.0
    %1353 = vmatprep.subr.mxu0 0.0
    %1354 = vmatpush2.msra.mxu0 0.0
    %1355 = vmatprep.subr.mxu0 0.0
    %1356 = vmatpush2.msra.mxu0 0.0
    %1357 = vmatprep.subr.mxu0 0.0
    %1358 = vmatpush2.msra.mxu0 0.0
    %1359 = vmatprep.subr.mxu0 0.0
    %1360 = vmatpush2.msra.mxu0 0.0
    %1361 = vmatprep.subr.mxu0 0.0
    %1362 = vmatpush2.msra.mxu0 0.0
    %1363 = vmatprep.subr.mxu0 0.0
    %1364 = vmatpush2.msra.mxu0 0.0
    %1365 = vmatprep.subr.mxu0 0.0
    %1366 = vmatpush2.msra.mxu0 0.0
    %1367 = vmatprep.subr.mxu0 0.0
    %1368 = vmatpush2.msra.mxu0 0.0
    %1369 = vmatprep.subr.mxu0 0.0
    %1370 = vmatpush2.msra.mxu0 0.0
    %1371 = vmatprep.subr.mxu0 0.0
    %1372 = vmatpush2.msra.mxu0 0.0
    %1373 = vmatprep.subr.mxu0 0.0
    %1374 = vmatpush2.msra.mxu0 0.0
    %1375 = vmatprep.subr.mxu0 0.0
    %1376 = vmatpush2.msra.mxu0 0.0
    %1377 = vmatprep.mubr.f32.mxu0 0.0
    %1378 = vmatmul.mubr.f32.gmra.mxu0 %v1308
    %v1379 = vpop.f32.mrf.mxu0
    %v1380 = vadd.f32 %v1305, %v1379
    %v1381 = vpop.f32.mrf.mxu0
    %1382 = vmatprep.mubr.f32.mxu0 0.0
    %1383 = vmatmul.mubr.f32.gmra.mxu0 %v1311
    %v1384 = vpop.f32.mrf.mxu0
    %v1385 = vadd.f32 %v1305, %v1384
    %v1386 = vpop.f32.mrf.mxu0
    %1387 = vdwg.mxu0
    %v1388 = vmul.f32 %v1380, 0.5
    %v1389 = vmul.f32 %v1385, 0.5
    %v1390 = vmul.f32 %v1380, 0.70710677
    %v1391 = vmul.f32 %v1385, 0.70710677
    %v1392 = verf.f32.pop %v1390
    %v1393 = verf.f32.pop %v1391
    %v1394 = vadd.f32 %v1392, 1.0
    %v1395 = vadd.f32 %v1393, 1.0
    %v1396 = vmul.f32 %v1388, %v1394
    %v1397 = vmul.f32 %v1389, %v1395
    %v1398 = vld [vmem:[%s15] sm:$0xff]
    %v1399 = vld [vmem:[%s15 + $0x8] sm:$0xff]
    %v1400 = vld [vmem:[%s15 + $0x10] sm:$0xff]
    %v1401 = vld [vmem:[%s15 + $0x18] sm:$0xff]
    %v1402 = vld [vmem:[%s15 + $0x20] sm:$0xff]
    %v1403 = vld [vmem:[%s15 + $0x28] sm:$0xff]
    %v1404 = vld [vmem:[%s15 + $0x30] sm:$0xff]
    %v1405 = vld [vmem:[%s15 + $0x38] sm:$0xff]
    %v1406 = vld [vmem:[%s16] sm:$0x1]
    %v1408 = vlaneseq
    %v1409 = vshrl.u32 %v1408, 7
    %v1410 = vsub.s32 0, %v1409
    %v1411 = vrot.slane %v1406, %v1410
    %vm1413 = vcmask 523264
    %v1415 = vsel %vm1413, %v1396, 0
    %v1418 = vsel %vm1413, %v1397, 0
    %1420 = vmatprep.subr.mxu0 0.0
    %1421 = vmatpush1.msra.mxu0 0.0
    %1422 = vmatprep.subr.mxu0 0.0
    %1423 = vmatpush1.msra.mxu0 0.0
    %1424 = vmatprep.subr.mxu0 0.0
    %1425 = vmatpush1.msra.mxu0 0.0
    %1426 = vmatprep.subr.mxu0 0.0
    %1427 = vmatpush1.msra.mxu0 0.0
    %1428 = vmatprep.subr.mxu0 0.0
    %1429 = vmatpush1.msra.mxu0 0.0
    %1430 = vmatprep.subr.mxu0 0.0
    %1431 = vmatpush1.msra.mxu0 0.0
    %1432 = vmatprep.subr.mxu0 0.0
    %1433 = vmatpush1.msra.mxu0 0.0
    %1434 = vmatprep.subr.mxu0 0.0
    %1435 = vmatpush1.msra.mxu0 0.0
    %1436 = vmatprep.subr.mxu0 0.0
    %1437 = vmatpush1.msra.mxu0 %v1405
    %1438 = vmatprep.subr.mxu0 0.0
    %1439 = vmatpush1.msra.mxu0 %v1404
    %1440 = vmatprep.subr.mxu0 0.0
    %1441 = vmatpush1.msra.mxu0 %v1403
    %1442 = vmatprep.subr.mxu0 0.0
    %1443 = vmatpush1.msra.mxu0 %v1402
    %1444 = vmatprep.subr.mxu0 0.0
    %1445 = vmatpush1.msra.mxu0 %v1401
    %1446 = vmatprep.subr.mxu0 0.0
    %1447 = vmatpush1.msra.mxu0 %v1400
    %1448 = vmatprep.subr.mxu0 0.0
    %1449 = vmatpush1.msra.mxu0 %v1399
    %1450 = vmatprep.subr.mxu0 0.0
    %1451 = vmatpush1.msra.mxu0 %v1398
    %1452 = vmatprep.subr.mxu0 0.0
    %1453 = vmatpush2.msra.mxu0 0.0
    %1454 = vmatprep.subr.mxu0 0.0
    %1455 = vmatpush2.msra.mxu0 0.0
    %1456 = vmatprep.subr.mxu0 0.0
    %1457 = vmatpush2.msra.mxu0 0.0
    %1458 = vmatprep.subr.mxu0 0.0
    %1459 = vmatpush2.msra.mxu0 0.0
    %1460 = vmatprep.subr.mxu0 0.0
    %1461 = vmatpush2.msra.mxu0 0.0
    %1462 = vmatprep.subr.mxu0 0.0
    %1463 = vmatpush2.msra.mxu0 0.0
    %1464 = vmatprep.subr.mxu0 0.0
    %1465 = vmatpush2.msra.mxu0 0.0
    %1466 = vmatprep.subr.mxu0 0.0
    %1467 = vmatpush2.msra.mxu0 0.0
    %1468 = vmatprep.subr.mxu0 0.0
    %1469 = vmatpush2.msra.mxu0 0.0
    %1470 = vmatprep.subr.mxu0 0.0
    %1471 = vmatpush2.msra.mxu0 0.0
    %1472 = vmatprep.subr.mxu0 0.0
    %1473 = vmatpush2.msra.mxu0 0.0
    %1474 = vmatprep.subr.mxu0 0.0
    %1475 = vmatpush2.msra.mxu0 0.0
    %1476 = vmatprep.subr.mxu0 0.0
    %1477 = vmatpush2.msra.mxu0 0.0
    %1478 = vmatprep.subr.mxu0 0.0
    %1479 = vmatpush2.msra.mxu0 0.0
    %1480 = vmatprep.subr.mxu0 0.0
    %1481 = vmatpush2.msra.mxu0 0.0
    %1482 = vmatprep.subr.mxu0 0.0
    %1483 = vmatpush2.msra.mxu0 0.0
    %1484 = vmatprep.mubr.f32.mxu0 0.0
    %1485 = vmatmul.mubr.f32.gmra.mxu0 %v1415
    %v1486 = vpop.f32.mrf.mxu0
    %v1487 = vadd.f32 %v1411, %v1486
    %v1488 = vpop.f32.mrf.mxu0
    %1489 = vmatprep.mubr.f32.mxu0 0.0
    %1490 = vmatmul.mubr.f32.gmra.mxu0 %v1418
    %v1491 = vpop.f32.mrf.mxu0
    %v1492 = vadd.f32 %v1411, %v1491
    %v1493 = vpop.f32.mrf.mxu0
    %1494 = vdwg.mxu0
    %v1495 = vadd.f32 %v1250, %v1487
    %v1496 = vadd.f32 %v1251, %v1492
    %s1497 = scalar_lea.vmem %s3, 1
    %v1498 = vld [vmem:[%s1497] sm:$0x1]
    %s1499 = scalar_lea.vmem %s4, 1
    %v1500 = vld [vmem:[%s1499] sm:$0x1]
    %v1501 = vsel %vm120, %v1495, 0.0
    %1502 = vadd.xlane.f32.xlu0 %v1501
    %v1503 = vpop.xlane.xlu0 %1502
    %v1504 = vsel %vm120, %v1496, 0.0
    %1505 = vadd.xlane.f32.xlu0 %v1504
    %v1506 = vpop.xlane.xlu0 %1505
    %v1507 = vmul.f32 %v1503, %v127
    %v1508 = vmul.f32 %v1506, %v127
    %v1509 = vsub.f32 %v1495, %v1507
    %v1510 = vsub.f32 %v1496, %v1508
    %v1511 = vmul.f32 %v1509, %v1509
    %v1512 = vmul.f32 %v1510, %v1510
    %v1513 = vsel %vm120, %v1511, 0.0
    %1514 = vadd.xlane.f32.xlu0 %v1513
    %v1515 = vpop.xlane.xlu0 %1514
    %v1516 = vsel %vm120, %v1512, 0.0
    %1517 = vadd.xlane.f32.xlu0 %v1516
    %v1518 = vpop.xlane.xlu0 %1517
    %v1519 = vmul.f32 %v1515, %v127
    %v1520 = vmul.f32 %v1518, %v127
    %v1521 = vadd.f32 %v1519, 1e-05
    %v1522 = vadd.f32 %v1520, 1e-05
    %v1523 = vrsqrt.pop %v1521
    %v1524 = vrsqrt.pop %v1522
    %v1525 = vmul.f32 %v1509, %v1523
    %v1526 = vmul.f32 %v1510, %v1524
    %v1528 = vlaneseq
    %v1529 = vshrl.u32 %v1528, 7
    %v1530 = vsub.s32 0, %v1529
    %v1531 = vrot.slane %v1498, %v1530
    %v1533 = vmul.f32 %v1525, %v1531
    %v1534 = vmul.f32 %v1526, %v1531
    %v1536 = vlaneseq
    %v1537 = vshrl.u32 %v1536, 7
    %v1538 = vsub.s32 0, %v1537
    %v1539 = vrot.slane %v1500, %v1538
    %v1541 = vadd.f32 %v1533, %v1539
    %v1542 = vadd.f32 %v1534, %v1539
    %s1543 = scalar_lea.vmem %s5, 32
    %v1544 = vld [vmem:[%s1543] sm:$0xff]
    %v1545 = vld [vmem:[%s1543 + $0x8] sm:$0xff]
    %v1546 = vld [vmem:[%s1543 + $0x10] sm:$0xff]
    %v1547 = vld [vmem:[%s1543 + $0x18] sm:$0xff]
    %s1548 = scalar_lea.vmem %s6, 1
    %v1549 = vld [vmem:[%s1548] sm:$0x1]
    %v1551 = vlaneseq
    %v1552 = vshrl.u32 %v1551, 7
    %v1553 = vsub.s32 0, %v1552
    %v1554 = vrot.slane %v1549, %v1553
    %v1557 = vsel %vm120, %v1541, 0
    %v1560 = vsel %vm120, %v1542, 0
    %1562 = vmatprep.subr.mxu0 0.0
    %1563 = vmatpush1.msra.mxu0 0.0
    %1564 = vmatprep.subr.mxu0 0.0
    %1565 = vmatpush1.msra.mxu0 0.0
    %1566 = vmatprep.subr.mxu0 0.0
    %1567 = vmatpush1.msra.mxu0 0.0
    %1568 = vmatprep.subr.mxu0 0.0
    %1569 = vmatpush1.msra.mxu0 0.0
    %1570 = vmatprep.subr.mxu0 0.0
    %1571 = vmatpush1.msra.mxu0 0.0
    %1572 = vmatprep.subr.mxu0 0.0
    %1573 = vmatpush1.msra.mxu0 0.0
    %1574 = vmatprep.subr.mxu0 0.0
    %1575 = vmatpush1.msra.mxu0 0.0
    %1576 = vmatprep.subr.mxu0 0.0
    %1577 = vmatpush1.msra.mxu0 0.0
    %1578 = vmatprep.subr.mxu0 0.0
    %1579 = vmatpush1.msra.mxu0 0.0
    %1580 = vmatprep.subr.mxu0 0.0
    %1581 = vmatpush1.msra.mxu0 0.0
    %1582 = vmatprep.subr.mxu0 0.0
    %1583 = vmatpush1.msra.mxu0 0.0
    %1584 = vmatprep.subr.mxu0 0.0
    %1585 = vmatpush1.msra.mxu0 0.0
    %1586 = vmatprep.subr.mxu0 0.0
    %1587 = vmatpush1.msra.mxu0 %v1547
    %1588 = vmatprep.subr.mxu0 0.0
    %1589 = vmatpush1.msra.mxu0 %v1546
    %1590 = vmatprep.subr.mxu0 0.0
    %1591 = vmatpush1.msra.mxu0 %v1545
    %1592 = vmatprep.subr.mxu0 0.0
    %1593 = vmatpush1.msra.mxu0 %v1544
    %1594 = vmatprep.subr.mxu0 0.0
    %1595 = vmatpush2.msra.mxu0 0.0
    %1596 = vmatprep.subr.mxu0 0.0
    %1597 = vmatpush2.msra.mxu0 0.0
    %1598 = vmatprep.subr.mxu0 0.0
    %1599 = vmatpush2.msra.mxu0 0.0
    %1600 = vmatprep.subr.mxu0 0.0
    %1601 = vmatpush2.msra.mxu0 0.0
    %1602 = vmatprep.subr.mxu0 0.0
    %1603 = vmatpush2.msra.mxu0 0.0
    %1604 = vmatprep.subr.mxu0 0.0
    %1605 = vmatpush2.msra.mxu0 0.0
    %1606 = vmatprep.subr.mxu0 0.0
    %1607 = vmatpush2.msra.mxu0 0.0
    %1608 = vmatprep.subr.mxu0 0.0
    %1609 = vmatpush2.msra.mxu0 0.0
    %1610 = vmatprep.subr.mxu0 0.0
    %1611 = vmatpush2.msra.mxu0 0.0
    %1612 = vmatprep.subr.mxu0 0.0
    %1613 = vmatpush2.msra.mxu0 0.0
    %1614 = vmatprep.subr.mxu0 0.0
    %1615 = vmatpush2.msra.mxu0 0.0
    %1616 = vmatprep.subr.mxu0 0.0
    %1617 = vmatpush2.msra.mxu0 0.0
    %1618 = vmatprep.subr.mxu0 0.0
    %1619 = vmatpush2.msra.mxu0 0.0
    %1620 = vmatprep.subr.mxu0 0.0
    %1621 = vmatpush2.msra.mxu0 0.0
    %1622 = vmatprep.subr.mxu0 0.0
    %1623 = vmatpush2.msra.mxu0 0.0
    %1624 = vmatprep.subr.mxu0 0.0
    %1625 = vmatpush2.msra.mxu0 0.0
    %1626 = vmatprep.mubr.f32.mxu0 0.0
    %1627 = vmatmul.mubr.f32.gmra.mxu0 %v1557
    %v1628 = vpop.f32.mrf.mxu0
    %v1629 = vadd.f32 %v1554, %v1628
    %v1630 = vpop.f32.mrf.mxu0
    %1631 = vmatprep.mubr.f32.mxu0 0.0
    %1632 = vmatmul.mubr.f32.gmra.mxu0 %v1560
    %v1633 = vpop.f32.mrf.mxu0
    %v1634 = vadd.f32 %v1554, %v1633
    %v1635 = vpop.f32.mrf.mxu0
    %1636 = vdwg.mxu0
    %s1637 = scalar_lea.vmem %s8, 1
    %v1638 = vld [vmem:[%s1637] sm:$0x1]
    %v1640 = vlaneseq
    %v1641 = vshrl.u32 %v1640, 7
    %v1642 = vsub.s32 0, %v1641
    %v1643 = vrot.slane %v1638, %v1642
    %v1645 = vadd.f32 %v1629, %v1643
    %v1646 = vadd.f32 %v1634, %v1643
    %s1647 = scalar_lea.vmem %s7, 32
    %v1648 = vld [vmem:[%s1647] sm:$0xff]
    %v1649 = vld [vmem:[%s1647 + $0x8] sm:$0xff]
    %v1650 = vld [vmem:[%s1647 + $0x10] sm:$0xff]
    %v1651 = vld [vmem:[%s1647 + $0x18] sm:$0xff]
    %s1652 = scalar_lea.vmem [#allocation6], 2
    %v1653 = vld [vmem:[%s1652] sm:$0x3]
    %s1654 = scalar_lea.vmem [#allocation8], 2
    %v1655 = vld [vmem:[%s1654] sm:$0x3]
    %v1657 = vsel %vm120, %v1653, 0
    %1659 = vmatprep.subr.mxu0 0.0
    %1660 = vmatpush1.msra.mxu0 0.0
    %1661 = vmatprep.subr.mxu0 0.0
    %1662 = vmatpush1.msra.mxu0 0.0
    %1663 = vmatprep.subr.mxu0 0.0
    %1664 = vmatpush1.msra.mxu0 0.0
    %1665 = vmatprep.subr.mxu0 0.0
    %1666 = vmatpush1.msra.mxu0 0.0
    %1667 = vmatprep.subr.mxu0 0.0
    %1668 = vmatpush1.msra.mxu0 0.0
    %1669 = vmatprep.subr.mxu0 0.0
    %1670 = vmatpush1.msra.mxu0 0.0
    %1671 = vmatprep.subr.mxu0 0.0
    %1672 = vmatpush1.msra.mxu0 0.0
    %1673 = vmatprep.subr.mxu0 0.0
    %1674 = vmatpush1.msra.mxu0 0.0
    %1675 = vmatprep.subr.mxu0 0.0
    %1676 = vmatpush1.msra.mxu0 0.0
    %1677 = vmatprep.subr.mxu0 0.0
    %1678 = vmatpush1.msra.mxu0 0.0
    %1679 = vmatprep.subr.mxu0 0.0
    %1680 = vmatpush1.msra.mxu0 0.0
    %1681 = vmatprep.subr.mxu0 0.0
    %1682 = vmatpush1.msra.mxu0 0.0
    %1683 = vmatprep.subr.mxu0 0.0
    %1684 = vmatpush1.msra.mxu0 %v1651
    %1685 = vmatprep.subr.mxu0 0.0
    %1686 = vmatpush1.msra.mxu0 %v1650
    %1687 = vmatprep.subr.mxu0 0.0
    %1688 = vmatpush1.msra.mxu0 %v1649
    %1689 = vmatprep.subr.mxu0 0.0
    %1690 = vmatpush1.msra.mxu0 %v1648
    %1691 = vmatprep.subr.mxu0 0.0
    %1692 = vmatpush2.msra.mxu0 0.0
    %1693 = vmatprep.subr.mxu0 0.0
    %1694 = vmatpush2.msra.mxu0 0.0
    %1695 = vmatprep.subr.mxu0 0.0
    %1696 = vmatpush2.msra.mxu0 0.0
    %1697 = vmatprep.subr.mxu0 0.0
    %1698 = vmatpush2.msra.mxu0 0.0
    %1699 = vmatprep.subr.mxu0 0.0
    %1700 = vmatpush2.msra.mxu0 0.0
    %1701 = vmatprep.subr.mxu0 0.0
    %1702 = vmatpush2.msra.mxu0 0.0
    %1703 = vmatprep.subr.mxu0 0.0
    %1704 = vmatpush2.msra.mxu0 0.0
    %1705 = vmatprep.subr.mxu0 0.0
    %1706 = vmatpush2.msra.mxu0 0.0
    %1707 = vmatprep.subr.mxu0 0.0
    %1708 = vmatpush2.msra.mxu0 0.0
    %1709 = vmatprep.subr.mxu0 0.0
    %1710 = vmatpush2.msra.mxu0 0.0
    %1711 = vmatprep.subr.mxu0 0.0
    %1712 = vmatpush2.msra.mxu0 0.0
    %1713 = vmatprep.subr.mxu0 0.0
    %1714 = vmatpush2.msra.mxu0 0.0
    %1715 = vmatprep.subr.mxu0 0.0
    %1716 = vmatpush2.msra.mxu0 0.0
    %1717 = vmatprep.subr.mxu0 0.0
    %1718 = vmatpush2.msra.mxu0 0.0
    %1719 = vmatprep.subr.mxu0 0.0
    %1720 = vmatpush2.msra.mxu0 0.0
    %1721 = vmatprep.subr.mxu0 0.0
    %1722 = vmatpush2.msra.mxu0 0.0
    %1723 = vmatprep.mubr.f32.mxu0 0.0
    %1724 = vmatmul.mubr.f32.gmra.mxu0 %v1657
    %v1725 = vpop.f32.mrf.mxu0
    %v1726 = vadd.f32 0.0, %v1725
    %v1727 = vpop.f32.mrf.mxu0
    %1728 = vdwg.mxu0
    %v1729 = vadd.f32 %v1645, %v1726
    %v1730 = vxor.u32 %v1729, 2147483648
    %v1731 = vmul.f32 %v1730, 1.442695
    %v1732 = vpow.pop %v1731
    %v1733 = vadd.f32 %v1732, 1.0
    %v1734 = vrcp.pop %v1733
    %v1735 = vmul.f32 1.0, %v1734
    %v1736 = vtanh.pop %v1729
    %1738 = vrot.lane.b32.xlu0 %v1655, 32
    %v1739 = vpop.permute.xlu0 %1738
    %v1741 = vmul.f32 %v1735, %v1739
    %1743 = vrot.lane.b32.xlu0 %v1736, 64
    %v1744 = vpop.permute.xlu0 %1743
    %v1746 = vmul.f32 %v1735, %v1744
    %1748 = vrot.lane.b32.xlu0 %v1746, 32
    %v1749 = vpop.permute.xlu0 %1748
    %v1751 = vadd.f32 %v1741, %v1749
    %v1752 = vtanh.pop %v1751
    %1754 = vrot.lane.b32.xlu0 %v1752, 64
    %v1755 = vpop.permute.xlu0 %1754
    %v1757 = vmul.f32 %v1735, %v1755
    %1759 = vrot.lane.b32.xlu0 %v1757, 32
    %v1760 = vpop.permute.xlu0 %1759
    %1762 = vst.msk [vmem:[#allocation2] sm:$0x3] %vm377, %v1760
    %v1763 = vsel %vm120, %v1760, 0
    %1765 = vmatprep.subr.mxu0 0.0
    %1766 = vmatpush1.msra.mxu0 0.0
    %1767 = vmatprep.subr.mxu0 0.0
    %1768 = vmatpush1.msra.mxu0 0.0
    %1769 = vmatprep.subr.mxu0 0.0
    %1770 = vmatpush1.msra.mxu0 0.0
    %1771 = vmatprep.subr.mxu0 0.0
    %1772 = vmatpush1.msra.mxu0 0.0
    %1773 = vmatprep.subr.mxu0 0.0
    %1774 = vmatpush1.msra.mxu0 0.0
    %1775 = vmatprep.subr.mxu0 0.0
    %1776 = vmatpush1.msra.mxu0 0.0
    %1777 = vmatprep.subr.mxu0 0.0
    %1778 = vmatpush1.msra.mxu0 0.0
    %1779 = vmatprep.subr.mxu0 0.0
    %1780 = vmatpush1.msra.mxu0 0.0
    %1781 = vmatprep.subr.mxu0 0.0
    %1782 = vmatpush1.msra.mxu0 0.0
    %1783 = vmatprep.subr.mxu0 0.0
    %1784 = vmatpush1.msra.mxu0 0.0
    %1785 = vmatprep.subr.mxu0 0.0
    %1786 = vmatpush1.msra.mxu0 0.0
    %1787 = vmatprep.subr.mxu0 0.0
    %1788 = vmatpush1.msra.mxu0 0.0
    %1789 = vmatprep.subr.mxu0 0.0
    %1790 = vmatpush1.msra.mxu0 %v1651
    %1791 = vmatprep.subr.mxu0 0.0
    %1792 = vmatpush1.msra.mxu0 %v1650
    %1793 = vmatprep.subr.mxu0 0.0
    %1794 = vmatpush1.msra.mxu0 %v1649
    %1795 = vmatprep.subr.mxu0 0.0
    %1796 = vmatpush1.msra.mxu0 %v1648
    %1797 = vmatprep.subr.mxu0 0.0
    %1798 = vmatpush2.msra.mxu0 0.0
    %1799 = vmatprep.subr.mxu0 0.0
    %1800 = vmatpush2.msra.mxu0 0.0
    %1801 = vmatprep.subr.mxu0 0.0
    %1802 = vmatpush2.msra.mxu0 0.0
    %1803 = vmatprep.subr.mxu0 0.0
    %1804 = vmatpush2.msra.mxu0 0.0
    %1805 = vmatprep.subr.mxu0 0.0
    %1806 = vmatpush2.msra.mxu0 0.0
    %1807 = vmatprep.subr.mxu0 0.0
    %1808 = vmatpush2.msra.mxu0 0.0
    %1809 = vmatprep.subr.mxu0 0.0
    %1810 = vmatpush2.msra.mxu0 0.0
    %1811 = vmatprep.subr.mxu0 0.0
    %1812 = vmatpush2.msra.mxu0 0.0
    %1813 = vmatprep.subr.mxu0 0.0
    %1814 = vmatpush2.msra.mxu0 0.0
    %1815 = vmatprep.subr.mxu0 0.0
    %1816 = vmatpush2.msra.mxu0 0.0
    %1817 = vmatprep.subr.mxu0 0.0
    %1818 = vmatpush2.msra.mxu0 0.0
    %1819 = vmatprep.subr.mxu0 0.0
    %1820 = vmatpush2.msra.mxu0 0.0
    %1821 = vmatprep.subr.mxu0 0.0
    %1822 = vmatpush2.msra.mxu0 0.0
    %1823 = vmatprep.subr.mxu0 0.0
    %1824 = vmatpush2.msra.mxu0 0.0
    %1825 = vmatprep.subr.mxu0 0.0
    %1826 = vmatpush2.msra.mxu0 0.0
    %1827 = vmatprep.subr.mxu0 0.0
    %1828 = vmatpush2.msra.mxu0 0.0
    %1829 = vmatprep.mubr.f32.mxu0 0.0
    %1830 = vmatmul.mubr.f32.gmra.mxu0 %v1763
    %v1831 = vpop.f32.mrf.mxu0
    %v1832 = vadd.f32 0.0, %v1831
    %v1833 = vpop.f32.mrf.mxu0
    %1834 = vdwg.mxu0
    %v1836 = vrot.slane %v1832, 6
    %v1838 = vadd.f32 %v1645, %v1836
    %v1839 = vxor.u32 %v1838, 2147483648
    %v1840 = vmul.f32 %v1839, 1.442695
    %v1841 = vpow.pop %v1840
    %v1842 = vadd.f32 %v1841, 1.0
    %v1843 = vrcp.pop %v1842
    %v1844 = vmul.f32 1.0, %v1843
    %v1845 = vtanh.pop %v1838
    %v1847 = vrot.slane %v1751, 6
    %v1849 = vmul.f32 %v1844, %v1847
    %1851 = vrot.lane.b32.xlu0 %v1845, 64
    %v1852 = vpop.permute.xlu0 %1851
    %v1854 = vmul.f32 %v1844, %v1852
    %1856 = vrot.lane.b32.xlu0 %v1854, 32
    %v1857 = vpop.permute.xlu0 %1856
    %v1859 = vadd.f32 %v1849, %v1857
    %v1860 = vtanh.pop %v1859
    %1862 = vrot.lane.b32.xlu0 %v1860, 64
    %v1863 = vpop.permute.xlu0 %1862
    %v1865 = vmul.f32 %v1844, %v1863
    %1867 = vrot.lane.b32.xlu0 %v1865, 32
    %v1868 = vpop.permute.xlu0 %1867
    %1870 = vst.msk [vmem:[#allocation2] sm:$0xc] %vm486, %v1868
    %v1871 = vrot.slane %v1865, 2
    %1872 = vrot.lane.b32.xlu0 %v1871, 32
    %v1873 = vpop.permute.xlu0 %1872
    %v1874 = vsel %vm120, %v1873, 0
    %1876 = vmatprep.subr.mxu0 0.0
    %1877 = vmatpush1.msra.mxu0 0.0
    %1878 = vmatprep.subr.mxu0 0.0
    %1879 = vmatpush1.msra.mxu0 0.0
    %1880 = vmatprep.subr.mxu0 0.0
    %1881 = vmatpush1.msra.mxu0 0.0
    %1882 = vmatprep.subr.mxu0 0.0
    %1883 = vmatpush1.msra.mxu0 0.0
    %1884 = vmatprep.subr.mxu0 0.0
    %1885 = vmatpush1.msra.mxu0 0.0
    %1886 = vmatprep.subr.mxu0 0.0
    %1887 = vmatpush1.msra.mxu0 0.0
    %1888 = vmatprep.subr.mxu0 0.0
    %1889 = vmatpush1.msra.mxu0 0.0
    %1890 = vmatprep.subr.mxu0 0.0
    %1891 = vmatpush1.msra.mxu0 0.0
    %1892 = vmatprep.subr.mxu0 0.0
    %1893 = vmatpush1.msra.mxu0 0.0
    %1894 = vmatprep.subr.mxu0 0.0
    %1895 = vmatpush1.msra.mxu0 0.0
    %1896 = vmatprep.subr.mxu0 0.0
    %1897 = vmatpush1.msra.mxu0 0.0
    %1898 = vmatprep.subr.mxu0 0.0
    %1899 = vmatpush1.msra.mxu0 0.0
    %1900 = vmatprep.subr.mxu0 0.0
    %1901 = vmatpush1.msra.mxu0 %v1651
    %1902 = vmatprep.subr.mxu0 0.0
    %1903 = vmatpush1.msra.mxu0 %v1650
    %1904 = vmatprep.subr.mxu0 0.0
    %1905 = vmatpush1.msra.mxu0 %v1649
    %1906 = vmatprep.subr.mxu0 0.0
    %1907 = vmatpush1.msra.mxu0 %v1648
    %1908 = vmatprep.subr.mxu0 0.0
    %1909 = vmatpush2.msra.mxu0 0.0
    %1910 = vmatprep.subr.mxu0 0.0
    %1911 = vmatpush2.msra.mxu0 0.0
    %1912 = vmatprep.subr.mxu0 0.0
    %1913 = vmatpush2.msra.mxu0 0.0
    %1914 = vmatprep.subr.mxu0 0.0
    %1915 = vmatpush2.msra.mxu0 0.0
    %1916 = vmatprep.subr.mxu0 0.0
    %1917 = vmatpush2.msra.mxu0 0.0
    %1918 = vmatprep.subr.mxu0 0.0
    %1919 = vmatpush2.msra.mxu0 0.0
    %1920 = vmatprep.subr.mxu0 0.0
    %1921 = vmatpush2.msra.mxu0 0.0
    %1922 = vmatprep.subr.mxu0 0.0
    %1923 = vmatpush2.msra.mxu0 0.0
    %1924 = vmatprep.subr.mxu0 0.0
    %1925 = vmatpush2.msra.mxu0 0.0
    %1926 = vmatprep.subr.mxu0 0.0
    %1927 = vmatpush2.msra.mxu0 0.0
    %1928 = vmatprep.subr.mxu0 0.0
    %1929 = vmatpush2.msra.mxu0 0.0
    %1930 = vmatprep.subr.mxu0 0.0
    %1931 = vmatpush2.msra.mxu0 0.0
    %1932 = vmatprep.subr.mxu0 0.0
    %1933 = vmatpush2.msra.mxu0 0.0
    %1934 = vmatprep.subr.mxu0 0.0
    %1935 = vmatpush2.msra.mxu0 0.0
    %1936 = vmatprep.subr.mxu0 0.0
    %1937 = vmatpush2.msra.mxu0 0.0
    %1938 = vmatprep.subr.mxu0 0.0
    %1939 = vmatpush2.msra.mxu0 0.0
    %1940 = vmatprep.mubr.f32.mxu0 0.0
    %1941 = vmatmul.mubr.f32.gmra.mxu0 %v1874
    %v1942 = vpop.f32.mrf.mxu0
    %v1943 = vadd.f32 0.0, %v1942
    %v1944 = vpop.f32.mrf.mxu0
    %1945 = vdwg.mxu0
    %v1947 = vrot.slane %v1943, 4
    %v1949 = vadd.f32 %v1645, %v1947
    %v1950 = vxor.u32 %v1949, 2147483648
    %v1951 = vmul.f32 %v1950, 1.442695
    %v1952 = vpow.pop %v1951
    %v1953 = vadd.f32 %v1952, 1.0
    %v1954 = vrcp.pop %v1953
    %v1955 = vmul.f32 1.0, %v1954
    %v1956 = vtanh.pop %v1949
    %v1958 = vrot.slane %v1859, 6
    %v1960 = vmul.f32 %v1955, %v1958
    %1962 = vrot.lane.b32.xlu0 %v1956, 64
    %v1963 = vpop.permute.xlu0 %1962
    %v1965 = vmul.f32 %v1955, %v1963
    %1967 = vrot.lane.b32.xlu0 %v1965, 32
    %v1968 = vpop.permute.xlu0 %1967
    %v1970 = vadd.f32 %v1960, %v1968
    %v1971 = vtanh.pop %v1970
    %1973 = vrot.lane.b32.xlu0 %v1971, 64
    %v1974 = vpop.permute.xlu0 %1973
    %v1976 = vmul.f32 %v1955, %v1974
    %1978 = vrot.lane.b32.xlu0 %v1976, 32
    %v1979 = vpop.permute.xlu0 %1978
    %1981 = vst.msk [vmem:[#allocation2] sm:$0x30] %vm598, %v1979
    %v1982 = vrot.slane %v1976, 4
    %1983 = vrot.lane.b32.xlu0 %v1982, 32
    %v1984 = vpop.permute.xlu0 %1983
    %v1985 = vsel %vm120, %v1984, 0
    %1987 = vmatprep.subr.mxu0 0.0
    %1988 = vmatpush1.msra.mxu0 0.0
    %1989 = vmatprep.subr.mxu0 0.0
    %1990 = vmatpush1.msra.mxu0 0.0
    %1991 = vmatprep.subr.mxu0 0.0
    %1992 = vmatpush1.msra.mxu0 0.0
    %1993 = vmatprep.subr.mxu0 0.0
    %1994 = vmatpush1.msra.mxu0 0.0
    %1995 = vmatprep.subr.mxu0 0.0
    %1996 = vmatpush1.msra.mxu0 0.0
    %1997 = vmatprep.subr.mxu0 0.0
    %1998 = vmatpush1.msra.mxu0 0.0
    %1999 = vmatprep.subr.mxu0 0.0
    %2000 = vmatpush1.msra.mxu0 0.0
    %2001 = vmatprep.subr.mxu0 0.0
    %2002 = vmatpush1.msra.mxu0 0.0
    %2003 = vmatprep.subr.mxu0 0.0
    %2004 = vmatpush1.msra.mxu0 0.0
    %2005 = vmatprep.subr.mxu0 0.0
    %2006 = vmatpush1.msra.mxu0 0.0
    %2007 = vmatprep.subr.mxu0 0.0
    %2008 = vmatpush1.msra.mxu0 0.0
    %2009 = vmatprep.subr.mxu0 0.0
    %2010 = vmatpush1.msra.mxu0 0.0
    %2011 = vmatprep.subr.mxu0 0.0
    %2012 = vmatpush1.msra.mxu0 %v1651
    %2013 = vmatprep.subr.mxu0 0.0
    %2014 = vmatpush1.msra.mxu0 %v1650
    %2015 = vmatprep.subr.mxu0 0.0
    %2016 = vmatpush1.msra.mxu0 %v1649
    %2017 = vmatprep.subr.mxu0 0.0
    %2018 = vmatpush1.msra.mxu0 %v1648
    %2019 = vmatprep.subr.mxu0 0.0
    %2020 = vmatpush2.msra.mxu0 0.0
    %2021 = vmatprep.subr.mxu0 0.0
    %2022 = vmatpush2.msra.mxu0 0.0
    %2023 = vmatprep.subr.mxu0 0.0
    %2024 = vmatpush2.msra.mxu0 0.0
    %2025 = vmatprep.subr.mxu0 0.0
    %2026 = vmatpush2.msra.mxu0 0.0
    %2027 = vmatprep.subr.mxu0 0.0
    %2028 = vmatpush2.msra.mxu0 0.0
    %2029 = vmatprep.subr.mxu0 0.0
    %2030 = vmatpush2.msra.mxu0 0.0
    %2031 = vmatprep.subr.mxu0 0.0
    %2032 = vmatpush2.msra.mxu0 0.0
    %2033 = vmatprep.subr.mxu0 0.0
    %2034 = vmatpush2.msra.mxu0 0.0
    %2035 = vmatprep.subr.mxu0 0.0
    %2036 = vmatpush2.msra.mxu0 0.0
    %2037 = vmatprep.subr.mxu0 0.0
    %2038 = vmatpush2.msra.mxu0 0.0
    %2039 = vmatprep.subr.mxu0 0.0
    %2040 = vmatpush2.msra.mxu0 0.0
    %2041 = vmatprep.subr.mxu0 0.0
    %2042 = vmatpush2.msra.mxu0 0.0
    %2043 = vmatprep.subr.mxu0 0.0
    %2044 = vmatpush2.msra.mxu0 0.0
    %2045 = vmatprep.subr.mxu0 0.0
    %2046 = vmatpush2.msra.mxu0 0.0
    %2047 = vmatprep.subr.mxu0 0.0
    %2048 = vmatpush2.msra.mxu0 0.0
    %2049 = vmatprep.subr.mxu0 0.0
    %2050 = vmatpush2.msra.mxu0 0.0
    %2051 = vmatprep.mubr.f32.mxu0 0.0
    %2052 = vmatmul.mubr.f32.gmra.mxu0 %v1985
    %v2053 = vpop.f32.mrf.mxu0
    %v2054 = vadd.f32 0.0, %v2053
    %v2055 = vpop.f32.mrf.mxu0
    %2056 = vdwg.mxu0
    %v2058 = vrot.slane %v2054, 2
    %v2060 = vadd.f32 %v1645, %v2058
    %v2061 = vxor.u32 %v2060, 2147483648
    %v2062 = vmul.f32 %v2061, 1.442695
    %v2063 = vpow.pop %v2062
    %v2064 = vadd.f32 %v2063, 1.0
    %v2065 = vrcp.pop %v2064
    %v2066 = vmul.f32 1.0, %v2065
    %v2067 = vtanh.pop %v2060
    %v2069 = vrot.slane %v1970, 6
    %v2071 = vmul.f32 %v2066, %v2069
    %2073 = vrot.lane.b32.xlu0 %v2067, 64
    %v2074 = vpop.permute.xlu0 %2073
    %v2076 = vmul.f32 %v2066, %v2074
    %2078 = vrot.lane.b32.xlu0 %v2076, 32
    %v2079 = vpop.permute.xlu0 %2078
    %v2081 = vadd.f32 %v2071, %v2079
    %v2082 = vtanh.pop %v2081
    %2084 = vrot.lane.b32.xlu0 %v2082, 64
    %v2085 = vpop.permute.xlu0 %2084
    %v2087 = vmul.f32 %v2066, %v2085
    %2089 = vrot.lane.b32.xlu0 %v2087, 32
    %v2090 = vpop.permute.xlu0 %2089
    %2092 = vst.msk [vmem:[#allocation2] sm:$0xc0] %vm710, %v2090
    %v2093 = vrot.slane %v2087, 6
    %2094 = vrot.lane.b32.xlu0 %v2093, 32
    %v2095 = vpop.permute.xlu0 %2094
    %v2096 = vsel %vm120, %v2095, 0
    %2098 = vmatprep.subr.mxu0 0.0
    %2099 = vmatpush1.msra.mxu0 0.0
    %2100 = vmatprep.subr.mxu0 0.0
    %2101 = vmatpush1.msra.mxu0 0.0
    %2102 = vmatprep.subr.mxu0 0.0
    %2103 = vmatpush1.msra.mxu0 0.0
    %2104 = vmatprep.subr.mxu0 0.0
    %2105 = vmatpush1.msra.mxu0 0.0
    %2106 = vmatprep.subr.mxu0 0.0
    %2107 = vmatpush1.msra.mxu0 0.0
    %2108 = vmatprep.subr.mxu0 0.0
    %2109 = vmatpush1.msra.mxu0 0.0
    %2110 = vmatprep.subr.mxu0 0.0
    %2111 = vmatpush1.msra.mxu0 0.0
    %2112 = vmatprep.subr.mxu0 0.0
    %2113 = vmatpush1.msra.mxu0 0.0
    %2114 = vmatprep.subr.mxu0 0.0
    %2115 = vmatpush1.msra.mxu0 0.0
    %2116 = vmatprep.subr.mxu0 0.0
    %2117 = vmatpush1.msra.mxu0 0.0
    %2118 = vmatprep.subr.mxu0 0.0
    %2119 = vmatpush1.msra.mxu0 0.0
    %2120 = vmatprep.subr.mxu0 0.0
    %2121 = vmatpush1.msra.mxu0 0.0
    %2122 = vmatprep.subr.mxu0 0.0
    %2123 = vmatpush1.msra.mxu0 %v1651
    %2124 = vmatprep.subr.mxu0 0.0
    %2125 = vmatpush1.msra.mxu0 %v1650
    %2126 = vmatprep.subr.mxu0 0.0
    %2127 = vmatpush1.msra.mxu0 %v1649
    %2128 = vmatprep.subr.mxu0 0.0
    %2129 = vmatpush1.msra.mxu0 %v1648
    %2130 = vmatprep.subr.mxu0 0.0
    %2131 = vmatpush2.msra.mxu0 0.0
    %2132 = vmatprep.subr.mxu0 0.0
    %2133 = vmatpush2.msra.mxu0 0.0
    %2134 = vmatprep.subr.mxu0 0.0
    %2135 = vmatpush2.msra.mxu0 0.0
    %2136 = vmatprep.subr.mxu0 0.0
    %2137 = vmatpush2.msra.mxu0 0.0
    %2138 = vmatprep.subr.mxu0 0.0
    %2139 = vmatpush2.msra.mxu0 0.0
    %2140 = vmatprep.subr.mxu0 0.0
    %2141 = vmatpush2.msra.mxu0 0.0
    %2142 = vmatprep.subr.mxu0 0.0
    %2143 = vmatpush2.msra.mxu0 0.0
    %2144 = vmatprep.subr.mxu0 0.0
    %2145 = vmatpush2.msra.mxu0 0.0
    %2146 = vmatprep.subr.mxu0 0.0
    %2147 = vmatpush2.msra.mxu0 0.0
    %2148 = vmatprep.subr.mxu0 0.0
    %2149 = vmatpush2.msra.mxu0 0.0
    %2150 = vmatprep.subr.mxu0 0.0
    %2151 = vmatpush2.msra.mxu0 0.0
    %2152 = vmatprep.subr.mxu0 0.0
    %2153 = vmatpush2.msra.mxu0 0.0
    %2154 = vmatprep.subr.mxu0 0.0
    %2155 = vmatpush2.msra.mxu0 0.0
    %2156 = vmatprep.subr.mxu0 0.0
    %2157 = vmatpush2.msra.mxu0 0.0
    %2158 = vmatprep.subr.mxu0 0.0
    %2159 = vmatpush2.msra.mxu0 0.0
    %2160 = vmatprep.subr.mxu0 0.0
    %2161 = vmatpush2.msra.mxu0 0.0
    %2162 = vmatprep.mubr.f32.mxu0 0.0
    %2163 = vmatmul.mubr.f32.gmra.mxu0 %v2096
    %v2164 = vpop.f32.mrf.mxu0
    %v2165 = vadd.f32 0.0, %v2164
    %v2166 = vpop.f32.mrf.mxu0
    %2167 = vdwg.mxu0
    %v2168 = vadd.f32 %v1646, %v2165
    %v2169 = vxor.u32 %v2168, 2147483648
    %v2170 = vmul.f32 %v2169, 1.442695
    %v2171 = vpow.pop %v2170
    %v2172 = vadd.f32 %v2171, 1.0
    %v2173 = vrcp.pop %v2172
    %v2174 = vmul.f32 1.0, %v2173
    %v2175 = vtanh.pop %v2168
    %v2177 = vrot.slane %v2081, 6
    %v2179 = vmul.f32 %v2174, %v2177
    %2181 = vrot.lane.b32.xlu0 %v2175, 64
    %v2182 = vpop.permute.xlu0 %2181
    %v2184 = vmul.f32 %v2174, %v2182
    %2186 = vrot.lane.b32.xlu0 %v2184, 32
    %v2187 = vpop.permute.xlu0 %2186
    %v2189 = vadd.f32 %v2179, %v2187
    %v2190 = vtanh.pop %v2189
    %2192 = vrot.lane.b32.xlu0 %v2190, 64
    %v2193 = vpop.permute.xlu0 %2192
    %v2195 = vmul.f32 %v2174, %v2193
    %2197 = vrot.lane.b32.xlu0 %v2195, 32
    %v2198 = vpop.permute.xlu0 %2197
    %2200 = vst.msk [vmem:[#allocation2 + $0x8] sm:$0x3] %vm377, %v2198
    %v2201 = vsel %vm120, %v2198, 0
    %2203 = vmatprep.subr.mxu0 0.0
    %2204 = vmatpush1.msra.mxu0 0.0
    %2205 = vmatprep.subr.mxu0 0.0
    %2206 = vmatpush1.msra.mxu0 0.0
    %2207 = vmatprep.subr.mxu0 0.0
    %2208 = vmatpush1.msra.mxu0 0.0
    %2209 = vmatprep.subr.mxu0 0.0
    %2210 = vmatpush1.msra.mxu0 0.0
    %2211 = vmatprep.subr.mxu0 0.0
    %2212 = vmatpush1.msra.mxu0 0.0
    %2213 = vmatprep.subr.mxu0 0.0
    %2214 = vmatpush1.msra.mxu0 0.0
    %2215 = vmatprep.subr.mxu0 0.0
    %2216 = vmatpush1.msra.mxu0 0.0
    %2217 = vmatprep.subr.mxu0 0.0
    %2218 = vmatpush1.msra.mxu0 0.0
    %2219 = vmatprep.subr.mxu0 0.0
    %2220 = vmatpush1.msra.mxu0 0.0
    %2221 = vmatprep.subr.mxu0 0.0
    %2222 = vmatpush1.msra.mxu0 0.0
    %2223 = vmatprep.subr.mxu0 0.0
    %2224 = vmatpush1.msra.mxu0 0.0
    %2225 = vmatprep.subr.mxu0 0.0
    %2226 = vmatpush1.msra.mxu0 0.0
    %2227 = vmatprep.subr.mxu0 0.0
    %2228 = vmatpush1.msra.mxu0 %v1651
    %2229 = vmatprep.subr.mxu0 0.0
    %2230 = vmatpush1.msra.mxu0 %v1650
    %2231 = vmatprep.subr.mxu0 0.0
    %2232 = vmatpush1.msra.mxu0 %v1649
    %2233 = vmatprep.subr.mxu0 0.0
    %2234 = vmatpush1.msra.mxu0 %v1648
    %2235 = vmatprep.subr.mxu0 0.0
    %2236 = vmatpush2.msra.mxu0 0.0
    %2237 = vmatprep.subr.mxu0 0.0
    %2238 = vmatpush2.msra.mxu0 0.0
    %2239 = vmatprep.subr.mxu0 0.0
    %2240 = vmatpush2.msra.mxu0 0.0
    %2241 = vmatprep.subr.mxu0 0.0
    %2242 = vmatpush2.msra.mxu0 0.0
    %2243 = vmatprep.subr.mxu0 0.0
    %2244 = vmatpush2.msra.mxu0 0.0
    %2245 = vmatprep.subr.mxu0 0.0
    %2246 = vmatpush2.msra.mxu0 0.0
    %2247 = vmatprep.subr.mxu0 0.0
    %2248 = vmatpush2.msra.mxu0 0.0
    %2249 = vmatprep.subr.mxu0 0.0
    %2250 = vmatpush2.msra.mxu0 0.0
    %2251 = vmatprep.subr.mxu0 0.0
    %2252 = vmatpush2.msra.mxu0 0.0
    %2253 = vmatprep.subr.mxu0 0.0
    %2254 = vmatpush2.msra.mxu0 0.0
    %2255 = vmatprep.subr.mxu0 0.0
    %2256 = vmatpush2.msra.mxu0 0.0
    %2257 = vmatprep.subr.mxu0 0.0
    %2258 = vmatpush2.msra.mxu0 0.0
    %2259 = vmatprep.subr.mxu0 0.0
    %2260 = vmatpush2.msra.mxu0 0.0
    %2261 = vmatprep.subr.mxu0 0.0
    %2262 = vmatpush2.msra.mxu0 0.0
    %2263 = vmatprep.subr.mxu0 0.0
    %2264 = vmatpush2.msra.mxu0 0.0
    %2265 = vmatprep.subr.mxu0 0.0
    %2266 = vmatpush2.msra.mxu0 0.0
    %2267 = vmatprep.mubr.f32.mxu0 0.0
    %2268 = vmatmul.mubr.f32.gmra.mxu0 %v2201
    %v2269 = vpop.f32.mrf.mxu0
    %v2270 = vadd.f32 0.0, %v2269
    %v2271 = vpop.f32.mrf.mxu0
    %2272 = vdwg.mxu0
    %v2274 = vrot.slane %v2270, 6
    %v2276 = vadd.f32 %v1646, %v2274
    %v2277 = vxor.u32 %v2276, 2147483648
    %v2278 = vmul.f32 %v2277, 1.442695
    %v2279 = vpow.pop %v2278
    %v2280 = vadd.f32 %v2279, 1.0
    %v2281 = vrcp.pop %v2280
    %v2282 = vmul.f32 1.0, %v2281
    %v2283 = vtanh.pop %v2276
    %v2285 = vrot.slane %v2189, 6
    %v2287 = vmul.f32 %v2282, %v2285
    %2289 = vrot.lane.b32.xlu0 %v2283, 64
    %v2290 = vpop.permute.xlu0 %2289
    %v2292 = vmul.f32 %v2282, %v2290
    %2294 = vrot.lane.b32.xlu0 %v2292, 32
    %v2295 = vpop.permute.xlu0 %2294
    %v2297 = vadd.f32 %v2287, %v2295
    %v2298 = vtanh.pop %v2297
    %2300 = vrot.lane.b32.xlu0 %v2298, 64
    %v2301 = vpop.permute.xlu0 %2300
    %v2303 = vmul.f32 %v2282, %v2301
    %2305 = vrot.lane.b32.xlu0 %v2303, 32
    %v2306 = vpop.permute.xlu0 %2305
    %2308 = vst.msk [vmem:[#allocation2 + $0x8] sm:$0xc] %vm486, %v2306
    %v2309 = vrot.slane %v2303, 2
    %2310 = vrot.lane.b32.xlu0 %v2309, 32
    %v2311 = vpop.permute.xlu0 %2310
    %v2312 = vsel %vm120, %v2311, 0
    %2314 = vmatprep.subr.mxu0 0.0
    %2315 = vmatpush1.msra.mxu0 0.0
    %2316 = vmatprep.subr.mxu0 0.0
    %2317 = vmatpush1.msra.mxu0 0.0
    %2318 = vmatprep.subr.mxu0 0.0
    %2319 = vmatpush1.msra.mxu0 0.0
    %2320 = vmatprep.subr.mxu0 0.0
    %2321 = vmatpush1.msra.mxu0 0.0
    %2322 = vmatprep.subr.mxu0 0.0
    %2323 = vmatpush1.msra.mxu0 0.0
    %2324 = vmatprep.subr.mxu0 0.0
    %2325 = vmatpush1.msra.mxu0 0.0
    %2326 = vmatprep.subr.mxu0 0.0
    %2327 = vmatpush1.msra.mxu0 0.0
    %2328 = vmatprep.subr.mxu0 0.0
    %2329 = vmatpush1.msra.mxu0 0.0
    %2330 = vmatprep.subr.mxu0 0.0
    %2331 = vmatpush1.msra.mxu0 0.0
    %2332 = vmatprep.subr.mxu0 0.0
    %2333 = vmatpush1.msra.mxu0 0.0
    %2334 = vmatprep.subr.mxu0 0.0
    %2335 = vmatpush1.msra.mxu0 0.0
    %2336 = vmatprep.subr.mxu0 0.0
    %2337 = vmatpush1.msra.mxu0 0.0
    %2338 = vmatprep.subr.mxu0 0.0
    %2339 = vmatpush1.msra.mxu0 %v1651
    %2340 = vmatprep.subr.mxu0 0.0
    %2341 = vmatpush1.msra.mxu0 %v1650
    %2342 = vmatprep.subr.mxu0 0.0
    %2343 = vmatpush1.msra.mxu0 %v1649
    %2344 = vmatprep.subr.mxu0 0.0
    %2345 = vmatpush1.msra.mxu0 %v1648
    %2346 = vmatprep.subr.mxu0 0.0
    %2347 = vmatpush2.msra.mxu0 0.0
    %2348 = vmatprep.subr.mxu0 0.0
    %2349 = vmatpush2.msra.mxu0 0.0
    %2350 = vmatprep.subr.mxu0 0.0
    %2351 = vmatpush2.msra.mxu0 0.0
    %2352 = vmatprep.subr.mxu0 0.0
    %2353 = vmatpush2.msra.mxu0 0.0
    %2354 = vmatprep.subr.mxu0 0.0
    %2355 = vmatpush2.msra.mxu0 0.0
    %2356 = vmatprep.subr.mxu0 0.0
    %2357 = vmatpush2.msra.mxu0 0.0
    %2358 = vmatprep.subr.mxu0 0.0
    %2359 = vmatpush2.msra.mxu0 0.0
    %2360 = vmatprep.subr.mxu0 0.0
    %2361 = vmatpush2.msra.mxu0 0.0
    %2362 = vmatprep.subr.mxu0 0.0
    %2363 = vmatpush2.msra.mxu0 0.0
    %2364 = vmatprep.subr.mxu0 0.0
    %2365 = vmatpush2.msra.mxu0 0.0
    %2366 = vmatprep.subr.mxu0 0.0
    %2367 = vmatpush2.msra.mxu0 0.0
    %2368 = vmatprep.subr.mxu0 0.0
    %2369 = vmatpush2.msra.mxu0 0.0
    %2370 = vmatprep.subr.mxu0 0.0
    %2371 = vmatpush2.msra.mxu0 0.0
    %2372 = vmatprep.subr.mxu0 0.0
    %2373 = vmatpush2.msra.mxu0 0.0
    %2374 = vmatprep.subr.mxu0 0.0
    %2375 = vmatpush2.msra.mxu0 0.0
    %2376 = vmatprep.subr.mxu0 0.0
    %2377 = vmatpush2.msra.mxu0 0.0
    %2378 = vmatprep.mubr.f32.mxu0 0.0
    %2379 = vmatmul.mubr.f32.gmra.mxu0 %v2312
    %v2380 = vpop.f32.mrf.mxu0
    %v2381 = vadd.f32 0.0, %v2380
    %v2382 = vpop.f32.mrf.mxu0
    %2383 = vdwg.mxu0
    %v2385 = vrot.slane %v2381, 4
    %v2387 = vadd.f32 %v1646, %v2385
    %v2388 = vxor.u32 %v2387, 2147483648
    %v2389 = vmul.f32 %v2388, 1.442695
    %v2390 = vpow.pop %v2389
    %v2391 = vadd.f32 %v2390, 1.0
    %v2392 = vrcp.pop %v2391
    %v2393 = vmul.f32 1.0, %v2392
    %v2394 = vtanh.pop %v2387
    %v2396 = vrot.slane %v2297, 6
    %v2398 = vmul.f32 %v2393, %v2396
    %2400 = vrot.lane.b32.xlu0 %v2394, 64
    %v2401 = vpop.permute.xlu0 %2400
    %v2403 = vmul.f32 %v2393, %v2401
    %2405 = vrot.lane.b32.xlu0 %v2403, 32
    %v2406 = vpop.permute.xlu0 %2405
    %v2408 = vadd.f32 %v2398, %v2406
    %v2409 = vtanh.pop %v2408
    %2411 = vrot.lane.b32.xlu0 %v2409, 64
    %v2412 = vpop.permute.xlu0 %2411
    %v2414 = vmul.f32 %v2393, %v2412
    %2416 = vrot.lane.b32.xlu0 %v2414, 32
    %v2417 = vpop.permute.xlu0 %2416
    %2419 = vst.msk [vmem:[#allocation2 + $0x8] sm:$0x30] %vm598, %v2417
    %v2420 = vrot.slane %v2414, 4
    %2421 = vrot.lane.b32.xlu0 %v2420, 32
    %v2422 = vpop.permute.xlu0 %2421
    %v2423 = vsel %vm120, %v2422, 0
    %2425 = vmatprep.subr.mxu0 0.0
    %2426 = vmatpush1.msra.mxu0 0.0
    %2427 = vmatprep.subr.mxu0 0.0
    %2428 = vmatpush1.msra.mxu0 0.0
    %2429 = vmatprep.subr.mxu0 0.0
    %2430 = vmatpush1.msra.mxu0 0.0
    %2431 = vmatprep.subr.mxu0 0.0
    %2432 = vmatpush1.msra.mxu0 0.0
    %2433 = vmatprep.subr.mxu0 0.0
    %2434 = vmatpush1.msra.mxu0 0.0
    %2435 = vmatprep.subr.mxu0 0.0
    %2436 = vmatpush1.msra.mxu0 0.0
    %2437 = vmatprep.subr.mxu0 0.0
    %2438 = vmatpush1.msra.mxu0 0.0
    %2439 = vmatprep.subr.mxu0 0.0
    %2440 = vmatpush1.msra.mxu0 0.0
    %2441 = vmatprep.subr.mxu0 0.0
    %2442 = vmatpush1.msra.mxu0 0.0
    %2443 = vmatprep.subr.mxu0 0.0
    %2444 = vmatpush1.msra.mxu0 0.0
    %2445 = vmatprep.subr.mxu0 0.0
    %2446 = vmatpush1.msra.mxu0 0.0
    %2447 = vmatprep.subr.mxu0 0.0
    %2448 = vmatpush1.msra.mxu0 0.0
    %2449 = vmatprep.subr.mxu0 0.0
    %2450 = vmatpush1.msra.mxu0 %v1651
    %2451 = vmatprep.subr.mxu0 0.0
    %2452 = vmatpush1.msra.mxu0 %v1650
    %2453 = vmatprep.subr.mxu0 0.0
    %2454 = vmatpush1.msra.mxu0 %v1649
    %2455 = vmatprep.subr.mxu0 0.0
    %2456 = vmatpush1.msra.mxu0 %v1648
    %2457 = vmatprep.subr.mxu0 0.0
    %2458 = vmatpush2.msra.mxu0 0.0
    %2459 = vmatprep.subr.mxu0 0.0
    %2460 = vmatpush2.msra.mxu0 0.0
    %2461 = vmatprep.subr.mxu0 0.0
    %2462 = vmatpush2.msra.mxu0 0.0
    %2463 = vmatprep.subr.mxu0 0.0
    %2464 = vmatpush2.msra.mxu0 0.0
    %2465 = vmatprep.subr.mxu0 0.0
    %2466 = vmatpush2.msra.mxu0 0.0
    %2467 = vmatprep.subr.mxu0 0.0
    %2468 = vmatpush2.msra.mxu0 0.0
    %2469 = vmatprep.subr.mxu0 0.0
    %2470 = vmatpush2.msra.mxu0 0.0
    %2471 = vmatprep.subr.mxu0 0.0
    %2472 = vmatpush2.msra.mxu0 0.0
    %2473 = vmatprep.subr.mxu0 0.0
    %2474 = vmatpush2.msra.mxu0 0.0
    %2475 = vmatprep.subr.mxu0 0.0
    %2476 = vmatpush2.msra.mxu0 0.0
    %2477 = vmatprep.subr.mxu0 0.0
    %2478 = vmatpush2.msra.mxu0 0.0
    %2479 = vmatprep.subr.mxu0 0.0
    %2480 = vmatpush2.msra.mxu0 0.0
    %2481 = vmatprep.subr.mxu0 0.0
    %2482 = vmatpush2.msra.mxu0 0.0
    %2483 = vmatprep.subr.mxu0 0.0
    %2484 = vmatpush2.msra.mxu0 0.0
    %2485 = vmatprep.subr.mxu0 0.0
    %2486 = vmatpush2.msra.mxu0 0.0
    %2487 = vmatprep.subr.mxu0 0.0
    %2488 = vmatpush2.msra.mxu0 0.0
    %2489 = vmatprep.mubr.f32.mxu0 0.0
    %2490 = vmatmul.mubr.f32.gmra.mxu0 %v2423
    %v2491 = vpop.f32.mrf.mxu0
    %v2492 = vadd.f32 0.0, %v2491
    %v2493 = vpop.f32.mrf.mxu0
    %2494 = vdwg.mxu0
    %v2496 = vrot.slane %v2492, 2
    %v2498 = vadd.f32 %v1646, %v2496
    %v2499 = vxor.u32 %v2498, 2147483648
    %v2500 = vmul.f32 %v2499, 1.442695
    %v2501 = vpow.pop %v2500
    %v2502 = vadd.f32 %v2501, 1.0
    %v2503 = vrcp.pop %v2502
    %v2504 = vmul.f32 1.0, %v2503
    %v2505 = vtanh.pop %v2498
    %v2507 = vrot.slane %v2408, 6
    %v2509 = vmul.f32 %v2504, %v2507
    %2511 = vrot.lane.b32.xlu0 %v2505, 64
    %v2512 = vpop.permute.xlu0 %2511
    %v2514 = vmul.f32 %v2504, %v2512
    %2516 = vrot.lane.b32.xlu0 %v2514, 32
    %v2517 = vpop.permute.xlu0 %2516
    %v2519 = vadd.f32 %v2509, %v2517
    %v2520 = vtanh.pop %v2519
    %2522 = vrot.lane.b32.xlu0 %v2520, 64
    %v2523 = vpop.permute.xlu0 %2522
    %v2525 = vmul.f32 %v2504, %v2523
    %2527 = vrot.lane.b32.xlu0 %v2525, 32
    %v2528 = vpop.permute.xlu0 %2527
    %2530 = vst.msk [vmem:[#allocation2 + $0x8] sm:$0xc0] %vm710, %v2528
    %s2531 = scalar_lea.vmem [#allocation12], 2
    %2532 = vst.msk [vmem:[%s2531 - $0x6] sm:$0xc0] %vm710, %v2528
    %2534 = vrot.lane.b32.xlu0 %v2519, 96
    %v2535 = vpop.permute.xlu0 %2534
    %s2537 = scalar_lea.vmem [#allocation14], 2
    %2538 = vst.msk [vmem:[%s2537 - $0x6] sm:$0xc0] %vm710, %v2535
    %v2539 = vld [vmem:[#allocation2] sm:$0xff]
    %v2540 = vld [vmem:[#allocation2 + $0x8] sm:$0xff]
    %s2541 = scalar_lea.vmem %s9, 32
    %v2542 = vld [vmem:[%s2541] sm:$0xff]
    %v2543 = vld [vmem:[%s2541 + $0x8] sm:$0xff]
    %v2544 = vld [vmem:[%s2541 + $0x10] sm:$0xff]
    %v2545 = vld [vmem:[%s2541 + $0x18] sm:$0xff]
    %s2546 = scalar_lea.vmem %s10, 1
    %v2547 = vld [vmem:[%s2546] sm:$0x1]
    %v2549 = vlaneseq
    %v2550 = vshrl.u32 %v2549, 7
    %v2551 = vsub.s32 0, %v2550
    %v2552 = vrot.slane %v2547, %v2551
    %v2555 = vsel %vm120, %v2539, 0
    %v2558 = vsel %vm120, %v2540, 0
    %2560 = vmatprep.subr.mxu0 0.0
    %2561 = vmatpush1.msra.mxu0 0.0
    %2562 = vmatprep.subr.mxu0 0.0
    %2563 = vmatpush1.msra.mxu0 0.0
    %2564 = vmatprep.subr.mxu0 0.0
    %2565 = vmatpush1.msra.mxu0 0.0
    %2566 = vmatprep.subr.mxu0 0.0
    %2567 = vmatpush1.msra.mxu0 0.0
    %2568 = vmatprep.subr.mxu0 0.0
    %2569 = vmatpush1.msra.mxu0 0.0
    %2570 = vmatprep.subr.mxu0 0.0
    %2571 = vmatpush1.msra.mxu0 0.0
    %2572 = vmatprep.subr.mxu0 0.0
    %2573 = vmatpush1.msra.mxu0 0.0
    %2574 = vmatprep.subr.mxu0 0.0
    %2575 = vmatpush1.msra.mxu0 0.0
    %2576 = vmatprep.subr.mxu0 0.0
    %2577 = vmatpush1.msra.mxu0 0.0
    %2578 = vmatprep.subr.mxu0 0.0
    %2579 = vmatpush1.msra.mxu0 0.0
    %2580 = vmatprep.subr.mxu0 0.0
    %2581 = vmatpush1.msra.mxu0 0.0
    %2582 = vmatprep.subr.mxu0 0.0
    %2583 = vmatpush1.msra.mxu0 0.0
    %2584 = vmatprep.subr.mxu0 0.0
    %2585 = vmatpush1.msra.mxu0 %v2545
    %2586 = vmatprep.subr.mxu0 0.0
    %2587 = vmatpush1.msra.mxu0 %v2544
    %2588 = vmatprep.subr.mxu0 0.0
    %2589 = vmatpush1.msra.mxu0 %v2543
    %2590 = vmatprep.subr.mxu0 0.0
    %2591 = vmatpush1.msra.mxu0 %v2542
    %2592 = vmatprep.subr.mxu0 0.0
    %2593 = vmatpush2.msra.mxu0 0.0
    %2594 = vmatprep.subr.mxu0 0.0
    %2595 = vmatpush2.msra.mxu0 0.0
    %2596 = vmatprep.subr.mxu0 0.0
    %2597 = vmatpush2.msra.mxu0 0.0
    %2598 = vmatprep.subr.mxu0 0.0
    %2599 = vmatpush2.msra.mxu0 0.0
    %2600 = vmatprep.subr.mxu0 0.0
    %2601 = vmatpush2.msra.mxu0 0.0
    %2602 = vmatprep.subr.mxu0 0.0
    %2603 = vmatpush2.msra.mxu0 0.0
    %2604 = vmatprep.subr.mxu0 0.0
    %2605 = vmatpush2.msra.mxu0 0.0
    %2606 = vmatprep.subr.mxu0 0.0
    %2607 = vmatpush2.msra.mxu0 0.0
    %2608 = vmatprep.subr.mxu0 0.0
    %2609 = vmatpush2.msra.mxu0 0.0
    %2610 = vmatprep.subr.mxu0 0.0
    %2611 = vmatpush2.msra.mxu0 0.0
    %2612 = vmatprep.subr.mxu0 0.0
    %2613 = vmatpush2.msra.mxu0 0.0
    %2614 = vmatprep.subr.mxu0 0.0
    %2615 = vmatpush2.msra.mxu0 0.0
    %2616 = vmatprep.subr.mxu0 0.0
    %2617 = vmatpush2.msra.mxu0 0.0
    %2618 = vmatprep.subr.mxu0 0.0
    %2619 = vmatpush2.msra.mxu0 0.0
    %2620 = vmatprep.subr.mxu0 0.0
    %2621 = vmatpush2.msra.mxu0 0.0
    %2622 = vmatprep.subr.mxu0 0.0
    %2623 = vmatpush2.msra.mxu0 0.0
    %2624 = vmatprep.mubr.f32.mxu0 0.0
    %2625 = vmatmul.mubr.f32.gmra.mxu0 %v2555
    %v2626 = vpop.f32.mrf.mxu0
    %v2627 = vadd.f32 %v2552, %v2626
    %v2628 = vpop.f32.mrf.mxu0
    %2629 = vmatprep.mubr.f32.mxu0 0.0
    %2630 = vmatmul.mubr.f32.gmra.mxu0 %v2558
    %v2631 = vpop.f32.mrf.mxu0
    %v2632 = vadd.f32 %v2552, %v2631
    %v2633 = vpop.f32.mrf.mxu0
    %2634 = vdwg.mxu0
    %v2635 = vadd.f32 %v2627, %v1495
    %v2636 = vadd.f32 %v2632, %v1496
    %s2637 = scalar_lea.vmem %s11, 1
    %v2638 = vld [vmem:[%s2637] sm:$0x1]
    %s2639 = scalar_lea.vmem %s12, 1
    %v2640 = vld [vmem:[%s2639] sm:$0x1]
    %v2641 = vsel %vm120, %v2635, 0.0
    %2642 = vadd.xlane.f32.xlu0 %v2641
    %v2643 = vpop.xlane.xlu0 %2642
    %v2644 = vsel %vm120, %v2636, 0.0
    %2645 = vadd.xlane.f32.xlu0 %v2644
    %v2646 = vpop.xlane.xlu0 %2645
    %v2647 = vmul.f32 %v2643, %v127
    %v2648 = vmul.f32 %v2646, %v127
    %v2649 = vsub.f32 %v2635, %v2647
    %v2650 = vsub.f32 %v2636, %v2648
    %v2651 = vmul.f32 %v2649, %v2649
    %v2652 = vmul.f32 %v2650, %v2650
    %v2653 = vsel %vm120, %v2651, 0.0
    %2654 = vadd.xlane.f32.xlu0 %v2653
    %v2655 = vpop.xlane.xlu0 %2654
    %v2656 = vsel %vm120, %v2652, 0.0
    %2657 = vadd.xlane.f32.xlu0 %v2656
    %v2658 = vpop.xlane.xlu0 %2657
    %v2659 = vmul.f32 %v2655, %v127
    %v2660 = vmul.f32 %v2658, %v127
    %v2661 = vadd.f32 %v2659, 1e-05
    %v2662 = vadd.f32 %v2660, 1e-05
    %v2663 = vrsqrt.pop %v2661
    %v2664 = vrsqrt.pop %v2662
    %v2665 = vmul.f32 %v2649, %v2663
    %v2666 = vmul.f32 %v2650, %v2664
    %v2668 = vlaneseq
    %v2669 = vshrl.u32 %v2668, 7
    %v2670 = vsub.s32 0, %v2669
    %v2671 = vrot.slane %v2638, %v2670
    %v2673 = vmul.f32 %v2665, %v2671
    %v2674 = vmul.f32 %v2666, %v2671
    %v2676 = vlaneseq
    %v2677 = vshrl.u32 %v2676, 7
    %v2678 = vsub.s32 0, %v2677
    %v2679 = vrot.slane %v2640, %v2678
    %v2681 = vadd.f32 %v2673, %v2679
    %v2682 = vadd.f32 %v2674, %v2679
    %s2683 = scalar_lea.vmem [#allocation9], 32
    %v2684 = vld [vmem:[%s2683] sm:$0xff]
    %v2685 = vld [vmem:[%s2683 + $0x8] sm:$0xff]
    %v2686 = vld [vmem:[%s2683 + $0x10] sm:$0xff]
    %v2687 = vld [vmem:[%s2683 + $0x18] sm:$0xff]
    %s2688 = scalar_lea.vmem %s14, 1
    %v2689 = vld [vmem:[%s2688] sm:$0x1]
    %v2691 = vlaneseq
    %v2692 = vshrl.u32 %v2691, 7
    %v2693 = vsub.s32 0, %v2692
    %v2694 = vrot.slane %v2689, %v2693
    %v2697 = vsel %vm120, %v2681, 0
    %v2700 = vsel %vm120, %v2682, 0
    %2702 = vmatprep.subr.mxu0 0.0
    %2703 = vmatpush1.msra.mxu0 0.0
    %2704 = vmatprep.subr.mxu0 0.0
    %2705 = vmatpush1.msra.mxu0 0.0
    %2706 = vmatprep.subr.mxu0 0.0
    %2707 = vmatpush1.msra.mxu0 0.0
    %2708 = vmatprep.subr.mxu0 0.0
    %2709 = vmatpush1.msra.mxu0 0.0
    %2710 = vmatprep.subr.mxu0 0.0
    %2711 = vmatpush1.msra.mxu0 0.0
    %2712 = vmatprep.subr.mxu0 0.0
    %2713 = vmatpush1.msra.mxu0 0.0
    %2714 = vmatprep.subr.mxu0 0.0
    %2715 = vmatpush1.msra.mxu0 0.0
    %2716 = vmatprep.subr.mxu0 0.0
    %2717 = vmatpush1.msra.mxu0 0.0
    %2718 = vmatprep.subr.mxu0 0.0
    %2719 = vmatpush1.msra.mxu0 0.0
    %2720 = vmatprep.subr.mxu0 0.0
    %2721 = vmatpush1.msra.mxu0 0.0
    %2722 = vmatprep.subr.mxu0 0.0
    %2723 = vmatpush1.msra.mxu0 0.0
    %2724 = vmatprep.subr.mxu0 0.0
    %2725 = vmatpush1.msra.mxu0 0.0
    %2726 = vmatprep.subr.mxu0 0.0
    %2727 = vmatpush1.msra.mxu0 %v2687
    %2728 = vmatprep.subr.mxu0 0.0
    %2729 = vmatpush1.msra.mxu0 %v2686
    %2730 = vmatprep.subr.mxu0 0.0
    %2731 = vmatpush1.msra.mxu0 %v2685
    %2732 = vmatprep.subr.mxu0 0.0
    %2733 = vmatpush1.msra.mxu0 %v2684
    %2734 = vmatprep.subr.mxu0 0.0
    %2735 = vmatpush2.msra.mxu0 0.0
    %2736 = vmatprep.subr.mxu0 0.0
    %2737 = vmatpush2.msra.mxu0 0.0
    %2738 = vmatprep.subr.mxu0 0.0
    %2739 = vmatpush2.msra.mxu0 0.0
    %2740 = vmatprep.subr.mxu0 0.0
    %2741 = vmatpush2.msra.mxu0 0.0
    %2742 = vmatprep.subr.mxu0 0.0
    %2743 = vmatpush2.msra.mxu0 0.0
    %2744 = vmatprep.subr.mxu0 0.0
    %2745 = vmatpush2.msra.mxu0 0.0
    %2746 = vmatprep.subr.mxu0 0.0
    %2747 = vmatpush2.msra.mxu0 0.0
    %2748 = vmatprep.subr.mxu0 0.0
    %2749 = vmatpush2.msra.mxu0 0.0
    %2750 = vmatprep.subr.mxu0 0.0
    %2751 = vmatpush2.msra.mxu0 0.0
    %2752 = vmatprep.subr.mxu0 0.0
    %2753 = vmatpush2.msra.mxu0 0.0
    %2754 = vmatprep.subr.mxu0 0.0
    %2755 = vmatpush2.msra.mxu0 0.0
    %2756 = vmatprep.subr.mxu0 0.0
    %2757 = vmatpush2.msra.mxu0 0.0
    %2758 = vmatprep.subr.mxu0 0.0
    %2759 = vmatpush2.msra.mxu0 0.0
    %2760 = vmatprep.subr.mxu0 0.0
    %2761 = vmatpush2.msra.mxu0 0.0
    %2762 = vmatprep.subr.mxu0 0.0
    %2763 = vmatpush2.msra.mxu0 0.0
    %2764 = vmatprep.subr.mxu0 0.0
    %2765 = vmatpush2.msra.mxu0 0.0
    %2766 = vmatprep.mubr.f32.mxu0 0.0
    %2767 = vmatmul.mubr.f32.gmra.mxu0 %v2697
    %v2768 = vpop.f32.mrf.mxu0
    %v2769 = vadd.f32 %v2694, %v2768
    %v2770 = vpop.f32.mrf.mxu0
    %2771 = vmatprep.mubr.f32.mxu0 0.0
    %2772 = vmatmul.mubr.f32.gmra.mxu0 %v2700
    %v2773 = vpop.f32.mrf.mxu0
    %v2774 = vadd.f32 %v2694, %v2773
    %v2775 = vpop.f32.mrf.mxu0
    %2776 = vdwg.mxu0
    %v2777 = vmul.f32 %v2769, 0.5
    %v2778 = vmul.f32 %v2774, 0.5
    %v2779 = vmul.f32 %v2769, 0.70710677
    %v2780 = vmul.f32 %v2774, 0.70710677
    %v2781 = verf.f32.pop %v2779
    %v2782 = verf.f32.pop %v2780
    %v2783 = vadd.f32 %v2781, 1.0
    %v2784 = vadd.f32 %v2782, 1.0
    %v2785 = vmul.f32 %v2777, %v2783
    %v2786 = vmul.f32 %v2778, %v2784
    %s2787 = scalar_lea.vmem %s15, 64
    %v2788 = vld [vmem:[%s2787] sm:$0xff]
    %v2789 = vld [vmem:[%s2787 + $0x8] sm:$0xff]
    %v2790 = vld [vmem:[%s2787 + $0x10] sm:$0xff]
    %v2791 = vld [vmem:[%s2787 + $0x18] sm:$0xff]
    %v2792 = vld [vmem:[%s2787 + $0x20] sm:$0xff]
    %v2793 = vld [vmem:[%s2787 + $0x28] sm:$0xff]
    %v2794 = vld [vmem:[%s2787 + $0x30] sm:$0xff]
    %v2795 = vld [vmem:[%s2787 + $0x38] sm:$0xff]
    %s2796 = scalar_lea.vmem %s16, 1
    %v2797 = vld [vmem:[%s2796] sm:$0x1]
    %v2799 = vlaneseq
    %v2800 = vshrl.u32 %v2799, 7
    %v2801 = vsub.s32 0, %v2800
    %v2802 = vrot.slane %v2797, %v2801
    %v2805 = vsel %vm1413, %v2785, 0
    %v2808 = vsel %vm1413, %v2786, 0
    %2810 = vmatprep.subr.mxu0 0.0
    %2811 = vmatpush1.msra.mxu0 0.0
    %2812 = vmatprep.subr.mxu0 0.0
    %2813 = vmatpush1.msra.mxu0 0.0
    %2814 = vmatprep.subr.mxu0 0.0
    %2815 = vmatpush1.msra.mxu0 0.0
    %2816 = vmatprep.subr.mxu0 0.0
    %2817 = vmatpush1.msra.mxu0 0.0
    %2818 = vmatprep.subr.mxu0 0.0
    %2819 = vmatpush1.msra.mxu0 0.0
    %2820 = vmatprep.subr.mxu0 0.0
    %2821 = vmatpush1.msra.mxu0 0.0
    %2822 = vmatprep.subr.mxu0 0.0
    %2823 = vmatpush1.msra.mxu0 0.0
    %2824 = vmatprep.subr.mxu0 0.0
    %2825 = vmatpush1.msra.mxu0 0.0
    %2826 = vmatprep.subr.mxu0 0.0
    %2827 = vmatpush1.msra.mxu0 %v2795
    %2828 = vmatprep.subr.mxu0 0.0
    %2829 = vmatpush1.msra.mxu0 %v2794
    %2830 = vmatprep.subr.mxu0 0.0
    %2831 = vmatpush1.msra.mxu0 %v2793
    %2832 = vmatprep.subr.mxu0 0.0
    %2833 = vmatpush1.msra.mxu0 %v2792
    %2834 = vmatprep.subr.mxu0 0.0
    %2835 = vmatpush1.msra.mxu0 %v2791
    %2836 = vmatprep.subr.mxu0 0.0
    %2837 = vmatpush1.msra.mxu0 %v2790
    %2838 = vmatprep.subr.mxu0 0.0
    %2839 = vmatpush1.msra.mxu0 %v2789
    %2840 = vmatprep.subr.mxu0 0.0
    %2841 = vmatpush1.msra.mxu0 %v2788
    %2842 = vmatprep.subr.mxu0 0.0
    %2843 = vmatpush2.msra.mxu0 0.0
    %2844 = vmatprep.subr.mxu0 0.0
    %2845 = vmatpush2.msra.mxu0 0.0
    %2846 = vmatprep.subr.mxu0 0.0
    %2847 = vmatpush2.msra.mxu0 0.0
    %2848 = vmatprep.subr.mxu0 0.0
    %2849 = vmatpush2.msra.mxu0 0.0
    %2850 = vmatprep.subr.mxu0 0.0
    %2851 = vmatpush2.msra.mxu0 0.0
    %2852 = vmatprep.subr.mxu0 0.0
    %2853 = vmatpush2.msra.mxu0 0.0
    %2854 = vmatprep.subr.mxu0 0.0
    %2855 = vmatpush2.msra.mxu0 0.0
    %2856 = vmatprep.subr.mxu0 0.0
    %2857 = vmatpush2.msra.mxu0 0.0
    %2858 = vmatprep.subr.mxu0 0.0
    %2859 = vmatpush2.msra.mxu0 0.0
    %2860 = vmatprep.subr.mxu0 0.0
    %2861 = vmatpush2.msra.mxu0 0.0
    %2862 = vmatprep.subr.mxu0 0.0
    %2863 = vmatpush2.msra.mxu0 0.0
    %2864 = vmatprep.subr.mxu0 0.0
    %2865 = vmatpush2.msra.mxu0 0.0
    %2866 = vmatprep.subr.mxu0 0.0
    %2867 = vmatpush2.msra.mxu0 0.0
    %2868 = vmatprep.subr.mxu0 0.0
    %2869 = vmatpush2.msra.mxu0 0.0
    %2870 = vmatprep.subr.mxu0 0.0
    %2871 = vmatpush2.msra.mxu0 0.0
    %2872 = vmatprep.subr.mxu0 0.0
    %2873 = vmatpush2.msra.mxu0 0.0
    %2874 = vmatprep.mubr.f32.mxu0 0.0
    %2875 = vmatmul.mubr.f32.gmra.mxu0 %v2805
    %v2876 = vpop.f32.mrf.mxu0
    %v2877 = vadd.f32 %v2802, %v2876
    %v2878 = vpop.f32.mrf.mxu0
    %2879 = vmatprep.mubr.f32.mxu0 0.0
    %2880 = vmatmul.mubr.f32.gmra.mxu0 %v2808
    %v2881 = vpop.f32.mrf.mxu0
    %v2882 = vadd.f32 %v2802, %v2881
    %v2883 = vpop.f32.mrf.mxu0
    %2884 = vdwg.mxu0
    %v2885 = vadd.f32 %v2635, %v2877
    %v2886 = vadd.f32 %v2636, %v2882
    %2887 = vst.msk [vmem:[#allocation11] sm:$0xff] %vm120, %v2885
    %2888 = vst.msk [vmem:[#allocation11 + $0x8] sm:$0xff] %vm120, %v2886
    // Predicated region
    $region86: #{tpu_custom_call.1} parent=1 // pred_check
      _
    $region87: #{tpu_custom_call.1} parent=1 // pred_check_branch
      %2890 = sbr.rel (0) target = $region89
    $region88: #{tpu_custom_call.1} parent=1 // pred_region
      %s2892 = ssub.s32 256, 256
      %2893 = vsyncadd [#allocation5], %s2892
      %s2894 = sshll.u32 [#allocation11], 4
      %s2895 = int_to_ptr.vmem [resolvable:$true] %s2894
      %2900 = dma.vmem_to_hbm [thread:$0]  %s2895, 256, %s17, [#allocation5], 128, 128, 8
    $region89: #{tpu_custom_call.1} parent=1 // pred_fallthru
      _
    // Predicated region
    $region90: #{tpu_custom_call.1} parent=1 // pred_check
      _
    $region91: #{tpu_custom_call.1} parent=1 // pred_check_branch
      %2902 = sbr.rel (0) target = $region93
    $region92: #{tpu_custom_call.1} parent=1 // pred_region
      %s2904 = ssub.s32 64, 64
      %2905 = vsyncadd [#allocation13], %s2904
      %s2906 = sshll.u32 [#allocation12], 4
      %s2907 = int_to_ptr.vmem [resolvable:$true] %s2906
      %2912 = dma.vmem_to_hbm [thread:$0]  %s2907, 64, %s18, [#allocation13], 32, 32, 2
    $region93: #{tpu_custom_call.1} parent=1 // pred_fallthru
      _
    // Predicated region
    $region94: #{tpu_custom_call.1} parent=1 // pred_check
      _
    $region95: #{tpu_custom_call.1} parent=1 // pred_check_branch
      %2914 = sbr.rel (0) target = $region97
    $region96: #{tpu_custom_call.1} parent=1 // pred_region
      %s2916 = ssub.s32 64, 64
      %2917 = vsyncadd [#allocation13], %s2916
      %s2918 = sshll.u32 [#allocation14], 4
      %s2919 = int_to_ptr.vmem [resolvable:$true] %s2918
      %2924 = dma.vmem_to_hbm [thread:$0]  %s2919, 64, %s19, [#allocation13], 32, 32, 2
    $region97: #{tpu_custom_call.1} parent=1 // pred_fallthru
      _
    // Predicated region
    $region98: #{tpu_custom_call.1} parent=1 // pred_check
      _
    $region99: #{tpu_custom_call.1} parent=1 // pred_check_branch
      %2926 = sbr.rel (0) target = $region101
    $region100: #{tpu_custom_call.1} parent=1 // pred_region
      %2927 = dma.done [#allocation5], 256
    $region101: #{tpu_custom_call.1} parent=1 // pred_fallthru
      _
    // Predicated region
    $region102: #{tpu_custom_call.1} parent=1 // pred_check
      _
    $region103: #{tpu_custom_call.1} parent=1 // pred_check_branch
      %2929 = sbr.rel (0) target = $region105
    $region104: #{tpu_custom_call.1} parent=1 // pred_region
      %2930 = dma.done [#allocation13], 64
    $region105: #{tpu_custom_call.1} parent=1 // pred_fallthru
      _
    // Predicated region
    $region106: #{tpu_custom_call.1} parent=1 // pred_check
      _
    $region107: #{tpu_custom_call.1} parent=1 // pred_check_branch
      %2932 = sbr.rel (0) target = $region109
    $region108: #{tpu_custom_call.1} parent=1 // pred_region
      %2933 = dma.done [#allocation13], 64
    $region109: #{tpu_custom_call.1} parent=1 // pred_fallthru
      _
    %2934 = vsyncpa [#allocation4], 1
    %2935 = vsyncpa [#allocation7], 1
    %2936 = vsyncpa [#allocation10], 1
    %2937 = vsyncpa [#allocation5], 1
    %2938 = vsyncpa [#allocation13], 1

</llo_original>
